<compile_context>
chip_gen: v5e
topology: v5e:2x2
jax: 0.10.0
libtpu: 0.0.40
codegen_flags: <defaults>
</compile_context>

<pallas_src>
import math
from functools import partial, lru_cache

import numpy as np
import jax
import jax.numpy as jnp
from jax import lax
from jax.experimental import pallas as pl
from jax.experimental.pallas import tpu as pltpu


def _round_up(x, m):
    return (x + m - 1) // m * m


@lru_cache(maxsize=None)
def _vmem_limit_bytes():
    # ~85% of physical VMEM (≈108 MiB on v5e/v6e, ≈54 MiB on v7x);
    # conservative 64 MiB if the query is unavailable.
    try:
        return int(pltpu.get_tpu_info().vmem_capacity_bytes * 0.85)
    except Exception:
        return 64 * 1024 * 1024


# ----------------------------------------------------------------------------
# GELU (erf-based, Abramowitz & Stegun 7.1.26 rational erf, |err| ~1.5e-7;
# the reciprocal runs on the EUP with approx=True).  Matches torch nn.GELU()
# ("none" approximation) to ~1e-3 absolute at f32.  Kept in f32 (v5e has no
# bf16 VPU/EUP path).
def _gelu(x):
    a1, a2, a3, a4, a5 = 0.254829592, -0.284496736, 1.421413741, -1.453152027, 1.061405429
    p = 0.3275911
    z = x * 0.7071067811865476
    za = jnp.abs(z)
    t = pl.reciprocal(1.0 + p * za, approx=True)
    poly = ((((a5 * t + a4) * t + a3) * t + a2) * t + a1) * t
    erf_abs = 1.0 - poly * jnp.exp(-za * za)
    erf = jnp.where(z >= 0.0, erf_abs, -erf_abs)
    return 0.5 * x * (1.0 + erf)


# ----------------------------------------------------------------------------
# Fused Inception conv -> GELU -> conv kernel.  One batch element per grid
# step; each conv is K*K whole-plane MXU dots over the flattened padded plane.
#
# Flat geometry per batch element (Wp = round_up(W + 3P, 8), M = H*Wp):
#   x_ref  : (1, (H+2P+1)*Wp, Cin) bf16, zero-padded input plane, flattened
#            row-major: rows (top P, data H, bottom P+1), cols (left 2P,
#            data W, right Wp-W-2P >= P).
#   xs_ref : (K, (H+2P)*Wp, Cin)   bf16 scratch; xs[dw][j] = x_flat[j + dw],
#            so conv1 tap (dh,dw) reads xs[dw] at 8-aligned offset dh*Wp.
#   mid_ref: ((H+2P+1)*Wp, Cmid)   bf16 scratch, padded GELU(conv1) plane
#            (rows: top P, data H, bottom P+1).  Valid data cols [P, P+W).
#   o_ref  : (1, H*Wp, Cout)       f32; cols [W, Wp) of each row chunk are
#            garbage and are sliced off by the wrapper.
def _inception_conv_gelu_conv_kernel(x_ref, w1_ref, b1_ref, w2_ref, b2_ref,
                                     o_ref, xs_ref, mid_ref,
                                     *, H, W, K, P, Wp):
    KK = K * K
    M = H * Wp
    LS = (H + 2 * P) * Wp
    Cmid = w1_ref.shape[-1]

    # Pre-build the K dw-shifted copies of the input plane (one relayout pass
    # per dw instead of one per tap).
    for dw in range(K):
        xs_ref[dw] = x_ref[0, dw:dw + LS, :]

    # ---- conv1: K*K (M, Cin) @ (Cin, Cmid) MXU dots, accumulated in vregs ----
    acc = None
    for t in range(KK):
        dh, dw = divmod(t, K)
        prod = jnp.dot(xs_ref[dw, dh * Wp:dh * Wp + M, :], w1_ref[t],
                       preferred_element_type=jnp.float32)
        acc = prod if acc is None else acc + prod

    # ---- bias + GELU + in-kernel column mask (kills the row-wrap garbage
    # columns before they feed conv2) ----
    col = jax.lax.broadcasted_iota(jnp.int32, (M, 1), 0) % Wp
    valid = jnp.logical_and(col >= P, col < P + W)
    mid_val = jnp.where(valid, _gelu(acc + b1_ref[...]), 0.0).astype(mid_ref.dtype)

    # Store the mid plane once; re-zero only the halo rows every step (the
    # interior is fully overwritten; a once-per-core guard is unsafe under
    # "parallel" megacore sharding).
    mid_ref[P * Wp:P * Wp + M, :] = mid_val
    if P > 0:
        mid_ref[0:P * Wp, :] = jnp.zeros((P * Wp, Cmid), mid_ref.dtype)
    mid_ref[P * Wp + M:, :] = jnp.zeros(((P + 1) * Wp, Cmid), mid_ref.dtype)

    # ---- conv2: K*K (M, Cmid) @ (Cmid, Cout) MXU dots, accumulated in vregs,
    # single store ----
    out = None
    for t in range(KK):
        dh, dw = divmod(t, K)
        off = dh * Wp + dw
        prod = jnp.dot(mid_ref[off:off + M, :], w2_ref[t],
                       preferred_element_type=jnp.float32)
        out = prod if out is None else out + prod
    o_ref[0, :, :] = (out + b2_ref[...]).astype(o_ref.dtype)


def inception_conv_block(x2d, w1f, b1, w2f, b2, K):
    """x2d: (B, H, W, Cin) f32; w1f/w2f: (K*K, Cin, Cout) bf16 -> (B, H, W, Cout) f32."""
    B, H, W, Cin = x2d.shape
    P = (K - 1) // 2
    KK = K * K
    Wp = _round_up(W + 3 * P, 8)          # multiple of 8 -> 8-aligned dh*Wp offsets
    M = H * Wp
    LS = (H + 2 * P) * Wp
    LX = (H + 2 * P + 1) * Wp
    LM = (H + 2 * P + 1) * Wp
    Cmid = w1f.shape[-1]
    Cout = w2f.shape[-1]

    # Zero-padded, flattened, bf16 input plane (rows: top P, bottom P+1;
    # cols: left 2P, right Wp-W-2P).
    xp = jnp.pad(x2d.astype(jnp.bfloat16),
                 ((0, 0), (P, P + 1), (2 * P, Wp - W - 2 * P), (0, 0)))
    xf = xp.reshape(B, LX, Cin)

    kernel = partial(_inception_conv_gelu_conv_kernel, H=H, W=W, K=K, P=P, Wp=Wp)

    cost = pl.CostEstimate(
        flops=2 * B * KK * M * (Cin * Cmid + Cmid * Cout),
        transcendentals=B * M * Cmid,
        bytes_accessed=(B * LX * Cin * 2
                        + KK * (Cin * Cmid + Cmid * Cout) * 2
                        + (Cmid + Cout) * 4
                        + B * M * Cout * 4))

    def build_call(single_buffer_weights):
        # Grid-invariant operands: single-buffered (halves their VMEM cost).
        res = dict(pipeline_mode=pl.Buffered(1)) if single_buffer_weights else {}
        in_specs = [
            pl.BlockSpec((1, LX, Cin), lambda b: (b, 0, 0)),
            pl.BlockSpec((KK, Cin, Cmid), lambda b: (0, 0, 0), **res),
            pl.BlockSpec((1, Cmid), lambda b: (0, 0), **res),
            pl.BlockSpec((KK, Cmid, Cout), lambda b: (0, 0, 0), **res),
            pl.BlockSpec((1, Cout), lambda b: (0, 0), **res),
        ]
        return pl.pallas_call(
            kernel,
            out_shape=jax.ShapeDtypeStruct((B, M, Cout), jnp.float32),
            grid_spec=pltpu.PrefetchScalarGridSpec(
                num_scalar_prefetch=0,
                grid=(B,),
                in_specs=in_specs,
                out_specs=pl.BlockSpec((1, M, Cout), lambda b: (b, 0, 0)),
                scratch_shapes=[
                    pltpu.VMEM((K, LS, Cin), jnp.bfloat16),   # dw-shifted x planes
                    pltpu.VMEM((LM, Cmid), jnp.bfloat16),     # padded mid plane
                ]),
            compiler_params=pltpu.CompilerParams(
                dimension_semantics=("parallel",),
                vmem_limit_bytes=_vmem_limit_bytes()),
            cost_estimate=cost,
        )

    try:
        out_flat = jax.block_until_ready(build_call(True)(xf, w1f, b1, w2f, b2))
    except Exception:
        # Fallback: default (double-buffered) specs if Buffered(1) is rejected.
        out_flat = build_call(False)(xf, w1f, b1, w2f, b2)

    # Drop the garbage columns [W, Wp) of each row chunk.
    return out_flat.reshape(B, H, Wp, Cout)[:, :, :W, :]


# ----------------------------------------------------------------------------
# FFT-based period detection (data-dependent reshape sizes -> host side, like
# the PyTorch reference's .cpu().numpy()).
def compute_periods(x, k):
    B, T, N = x.shape
    xf = jnp.fft.rfft(x, axis=1)               # (B, F, N)
    amp = jnp.abs(xf)
    freq = amp.mean(axis=0).mean(axis=-1)      # (F,)
    freq = freq.at[0].set(0.0)
    _, top = jax.lax.top_k(freq, k)
    top = np.asarray(jax.device_get(top))
    periods = T // top
    period_weight = amp.mean(axis=-1)[:, top]  # (B, k)
    return periods, period_weight


# ----------------------------------------------------------------------------
# Params: each Inception_Block_V1 (mean of Conv2d's with kernel sizes
# 1,3,...,2*nk-1, 'same' padding) is collapsed into one equivalent KxK conv
# (K = 2*num_kernels-1) with the mean of the center-embedded weights/biases.
# The MXU-ready flattened bf16 weights are prepared once here (hoisted out of
# the forward).
def init_timesblock_params(key, d_model, d_ff, num_kernels):
    K = 2 * num_kernels - 1

    def make_block(key, cin, cout):
        w_eff = jnp.zeros((K, K, cin, cout), jnp.float32)
        b_eff = jnp.zeros((cout,), jnp.float32)
        for i in range(num_kernels):
            ks = 2 * i + 1
            key, kw, kb = jax.random.split(key, 3)
            fan_in = cin * ks * ks
            w = jax.random.normal(kw, (ks, ks, cin, cout), jnp.float32) * math.sqrt(2.0 / fan_in)
            b = jax.random.normal(kb, (cout,), jnp.float32) * 0.02
            off = (K - ks) // 2
            w_eff = w_eff.at[off:off + ks, off:off + ks, :, :].add(w)
            b_eff = b_eff + b
        return key, w_eff / num_kernels, b_eff / num_kernels

    key, w1, b1 = make_block(key, d_model, d_ff)
    key, w2, b2 = make_block(key, d_ff, d_model)
    return dict(
        w1=w1, b1=b1.reshape(1, -1), w2=w2, b2=b2.reshape(1, -1),
        w1f=w1.reshape(K * K, d_model, d_ff).astype(jnp.bfloat16),
        w2f=w2.reshape(K * K, d_ff, d_model).astype(jnp.bfloat16),
        K=K)


def timesblock_forward(params, x, seq_len, pred_len, top_k):
    B, T, N = x.shape
    total = seq_len + pred_len
    assert T == total
    periods, period_weight = compute_periods(x, top_k)

    K = params["K"]
    w1f, w2f = params["w1f"], params["w2f"]

    res = []
    for i in range(top_k):
        period = int(periods[i])
        if total % period != 0:
            length = (total // period + 1) * period
            pad = jnp.zeros((B, length - total, N), x.dtype)
            out = jnp.concatenate([x, pad], axis=1)
        else:
            length = total
            out = x
        out2d = out.reshape(B, length // period, period, N)          # (B,H,W,C)
        out2d = inception_conv_block(out2d, w1f, params["b1"], w2f, params["b2"], K)
        out = out2d.reshape(B, length, N)[:, :total, :]
        res.append(out)

    # Softmax-weighted aggregation + residual in plain JAX (XLA fuses this).
    res_stacked = jnp.stack(res, axis=-1)                             # (B,T,N,k)
    pw = jax.nn.softmax(period_weight, axis=1).astype(jnp.float32)    # (B,k)
    return x + jnp.einsum("btnk,bk->btn", res_stacked, pw)


# ----------------------------------------------------------------------------
# Pure-JAX f32 references for correctness checks.
def _conv_block_reference(x2d, params):
    h = lax.conv_general_dilated(x2d, params["w1"], (1, 1), "SAME",
                                 dimension_numbers=("NHWC", "HWIO", "NHWC"))
    h = jax.nn.gelu(h + params["b1"].reshape(1, 1, 1, -1), approximate=False)
    o = lax.conv_general_dilated(h, params["w2"], (1, 1), "SAME",
                                 dimension_numbers=("NHWC", "HWIO", "NHWC"))
    return o + params["b2"].reshape(1, 1, 1, -1)


def _reference_forward(params, x, seq_len, pred_len, top_k):
    B, T, N = x.shape
    total = seq_len + pred_len
    periods, period_weight = compute_periods(x, top_k)
    res = []
    for i in range(top_k):
        period = int(periods[i])
        if total % period != 0:
            length = (total // period + 1) * period
            pad = jnp.zeros((B, length - total, N), x.dtype)
            out = jnp.concatenate([x, pad], axis=1)
        else:
            length = total
            out = x
        out2d = out.reshape(B, length // period, period, N)
        o = _conv_block_reference(out2d, params)
        res.append(o.reshape(B, length, N)[:, :total, :])
    rs = jnp.stack(res, axis=-1)
    pw = jax.nn.softmax(period_weight, axis=1)
    return x + jnp.einsum("btnk,bk->btn", rs, pw)


if __name__ == "__main__":
    seq_len, pred_len = 12, 4
    d_model, d_ff, num_kernels, top_k = 16, 32, 2, 2
    B = 2
    T = seq_len + pred_len

    key = jax.random.PRNGKey(0)
    kx, kp, kb = jax.random.split(key, 3)
    x = jax.random.normal(kx, (B, T, d_model), jnp.float32)
    params = init_timesblock_params(kp, d_model, d_ff, num_kernels)

    # Block-level check of the fused conv->GELU->conv kernel against an f32
    # lax.conv reference (tighter than the end-to-end check; catches
    # indexing/layout errors).  Residual error is dominated by bf16 MXU
    # operands (~1e-2 absolute on O(1) values).
    xb = jax.random.normal(kb, (2, 4, 8, d_model), jnp.float32)
    blk = inception_conv_block(xb, params["w1f"], params["b1"],
                               params["w2f"], params["b2"], params["K"])
    blk = jax.block_until_ready(blk)
    blk_ref = _conv_block_reference(xb, params)
    np.testing.assert_allclose(np.asarray(blk), np.asarray(blk_ref),
                               rtol=0.05, atol=0.1)

    # Full TimesBlock forward.
    y = timesblock_forward(params, x, seq_len, pred_len, top_k)
    y = jax.block_until_ready(y)

    assert y.shape == (B, T, d_model)
    assert bool(jnp.all(jnp.isfinite(y)))

    y_ref = _reference_forward(params, x, seq_len, pred_len, top_k)
    np.testing.assert_allclose(np.asarray(y), np.asarray(y_ref), rtol=0.1, atol=0.2)

    print("KERNEL_OK")
</pallas_src>

<mosaic_0001>
module attributes {stable_mosaic.version = 11 : i64} {
  func.func @_inception_conv_gelu_conv_kernel(%arg0: i32, %arg1: memref<1x112x16xbf16, #tpu.memory_space<vmem>>, %arg2: memref<9x16x32xbf16, #tpu.memory_space<vmem>>, %arg3: memref<1x32xf32, #tpu.memory_space<vmem>>, %arg4: memref<9x32x16xbf16, #tpu.memory_space<vmem>>, %arg5: memref<1x16xf32, #tpu.memory_space<vmem>>, %arg6: memref<1x64x16xf32, #tpu.memory_space<vmem>>, %arg7: memref<3x96x16xbf16, #tpu.memory_space<vmem>>, %arg8: memref<112x32xbf16, #tpu.memory_space<vmem>>) attributes {dimension_semantics = [#tpu.dimension_semantics<parallel>], iteration_bounds = array<i64: 2>, scalar_prefetch = 0 : i64, scratch_operands = 2 : i64, tpu.core_type = #tpu.core_type<tc>, window_params = [{transform_indices = @transform_0, window_bounds = array<i64: 1, 112, 16>}, {pipeline_mode = #tpu.pipeline_mode<synchronous>, transform_indices = @transform_1, window_bounds = array<i64: 9, 16, 32>}, {pipeline_mode = #tpu.pipeline_mode<synchronous>, transform_indices = @transform_2, window_bounds = array<i64: 1, 32>}, {pipeline_mode = #tpu.pipeline_mode<synchronous>, transform_indices = @transform_3, window_bounds = array<i64: 9, 32, 16>}, {pipeline_mode = #tpu.pipeline_mode<synchronous>, transform_indices = @transform_4, window_bounds = array<i64: 1, 16>}, {transform_indices = @transform_5, window_bounds = array<i64: 1, 64, 16>}]} {
    %c0 = arith.constant 0 : index
    %c0_0 = arith.constant 0 : index
    %c0_1 = arith.constant 0 : index
    %0 = vector.load %arg1[%c0, %c0_0, %c0_1] : memref<1x112x16xbf16, #tpu.memory_space<vmem>>, vector<1x96x16xbf16>
    %1 = vector.shape_cast %0 : vector<1x96x16xbf16> to vector<96x16xbf16>
    %c0_2 = arith.constant 0 : index
    %c0_3 = arith.constant 0 : index
    %c0_4 = arith.constant 0 : index
    %2 = vector.load %arg7[%c0_2, %c0_3, %c0_4] : memref<3x96x16xbf16, #tpu.memory_space<vmem>>, vector<1x96x16xbf16>
    %3 = vector.shape_cast %2 : vector<1x96x16xbf16> to vector<96x16xbf16>
    %4 = vector.shape_cast %1 : vector<96x16xbf16> to vector<1x96x16xbf16>
    tpu.vector_store %arg7[%c0_2, %c0_3, %c0_4], %4 {strides = array<i32>} : memref<3x96x16xbf16, #tpu.memory_space<vmem>>, vector<1x96x16xbf16>,
    %c0_5 = arith.constant 0 : index
    %c1 = arith.constant 1 : index
    %c0_6 = arith.constant 0 : index
    %5 = vector.load %arg1[%c0_5, %c1, %c0_6] : memref<1x112x16xbf16, #tpu.memory_space<vmem>>, vector<1x96x16xbf16>
    %6 = vector.shape_cast %5 : vector<1x96x16xbf16> to vector<96x16xbf16>
    %c1_7 = arith.constant 1 : index
    %c0_8 = arith.constant 0 : index
    %c0_9 = arith.constant 0 : index
    %7 = vector.load %arg7[%c1_7, %c0_8, %c0_9] : memref<3x96x16xbf16, #tpu.memory_space<vmem>>, vector<1x96x16xbf16>
    %8 = vector.shape_cast %7 : vector<1x96x16xbf16> to vector<96x16xbf16>
    %9 = vector.shape_cast %6 : vector<96x16xbf16> to vector<1x96x16xbf16>
    tpu.vector_store %arg7[%c1_7, %c0_8, %c0_9], %9 {strides = array<i32>} : memref<3x96x16xbf16, #tpu.memory_space<vmem>>, vector<1x96x16xbf16>,
    %c0_10 = arith.constant 0 : index
    %c2 = arith.constant 2 : index
    %c0_11 = arith.constant 0 : index
    %10 = vector.load %arg1[%c0_10, %c2, %c0_11] : memref<1x112x16xbf16, #tpu.memory_space<vmem>>, vector<1x96x16xbf16>
    %11 = vector.shape_cast %10 : vector<1x96x16xbf16> to vector<96x16xbf16>
    %c2_12 = arith.constant 2 : index
    %c0_13 = arith.constant 0 : index
    %c0_14 = arith.constant 0 : index
    %12 = vector.load %arg7[%c2_12, %c0_13, %c0_14] : memref<3x96x16xbf16, #tpu.memory_space<vmem>>, vector<1x96x16xbf16>
    %13 = vector.shape_cast %12 : vector<1x96x16xbf16> to vector<96x16xbf16>
    %14 = vector.shape_cast %11 : vector<96x16xbf16> to vector<1x96x16xbf16>
    tpu.vector_store %arg7[%c2_12, %c0_13, %c0_14], %14 {strides = array<i32>} : memref<3x96x16xbf16, #tpu.memory_space<vmem>>, vector<1x96x16xbf16>,
    %c0_15 = arith.constant 0 : index
    %c0_16 = arith.constant 0 : index
    %c0_17 = arith.constant 0 : index
    %15 = vector.load %arg7[%c0_15, %c0_16, %c0_17] : memref<3x96x16xbf16, #tpu.memory_space<vmem>>, vector<1x64x16xbf16>
    %16 = vector.shape_cast %15 : vector<1x64x16xbf16> to vector<64x16xbf16>
    %c0_18 = arith.constant 0 : index
    %c0_19 = arith.constant 0 : index
    %c0_20 = arith.constant 0 : index
    %17 = vector.load %arg2[%c0_18, %c0_19, %c0_20] : memref<9x16x32xbf16, #tpu.memory_space<vmem>>, vector<1x16x32xbf16>
    %18 = vector.shape_cast %17 : vector<1x16x32xbf16> to vector<16x32xbf16>
    %cst = arith.constant dense<0.000000e+00> : vector<64x32xf32>
    %19 = tpu.matmul %16, %18, %cst {dimension_numbers = #tpu.dot_dimension_numbers<[1], [0], [0], [1], [0, 0, 1, 1], [], []>} : vector<64x16xbf16>, vector<16x32xbf16>, vector<64x32xf32> -> vector<64x32xf32>
    %c1_21 = arith.constant 1 : index
    %c0_22 = arith.constant 0 : index
    %c0_23 = arith.constant 0 : index
    %20 = vector.load %arg7[%c1_21, %c0_22, %c0_23] : memref<3x96x16xbf16, #tpu.memory_space<vmem>>, vector<1x64x16xbf16>
    %21 = vector.shape_cast %20 : vector<1x64x16xbf16> to vector<64x16xbf16>
    %c1_24 = arith.constant 1 : index
    %c0_25 = arith.constant 0 : index
    %c0_26 = arith.constant 0 : index
    %22 = vector.load %arg2[%c1_24, %c0_25, %c0_26] : memref<9x16x32xbf16, #tpu.memory_space<vmem>>, vector<1x16x32xbf16>
    %23 = vector.shape_cast %22 : vector<1x16x32xbf16> to vector<16x32xbf16>
    %cst_27 = arith.constant dense<0.000000e+00> : vector<64x32xf32>
    %24 = tpu.matmul %21, %23, %cst_27 {dimension_numbers = #tpu.dot_dimension_numbers<[1], [0], [0], [1], [0, 0, 1, 1], [], []>} : vector<64x16xbf16>, vector<16x32xbf16>, vector<64x32xf32> -> vector<64x32xf32>
    %25 = arith.addf %19, %24 : vector<64x32xf32>
    %c2_28 = arith.constant 2 : index
    %c0_29 = arith.constant 0 : index
    %c0_30 = arith.constant 0 : index
    %26 = vector.load %arg7[%c2_28, %c0_29, %c0_30] : memref<3x96x16xbf16, #tpu.memory_space<vmem>>, vector<1x64x16xbf16>
    %27 = vector.shape_cast %26 : vector<1x64x16xbf16> to vector<64x16xbf16>
    %c2_31 = arith.constant 2 : index
    %c0_32 = arith.constant 0 : index
    %c0_33 = arith.constant 0 : index
    %28 = vector.load %arg2[%c2_31, %c0_32, %c0_33] : memref<9x16x32xbf16, #tpu.memory_space<vmem>>, vector<1x16x32xbf16>
    %29 = vector.shape_cast %28 : vector<1x16x32xbf16> to vector<16x32xbf16>
    %cst_34 = arith.constant dense<0.000000e+00> : vector<64x32xf32>
    %30 = tpu.matmul %27, %29, %cst_34 {dimension_numbers = #tpu.dot_dimension_numbers<[1], [0], [0], [1], [0, 0, 1, 1], [], []>} : vector<64x16xbf16>, vector<16x32xbf16>, vector<64x32xf32> -> vector<64x32xf32>
    %31 = arith.addf %25, %30 : vector<64x32xf32>
    %c0_35 = arith.constant 0 : index
    %c16 = arith.constant 16 : index
    %c0_36 = arith.constant 0 : index
    %32 = vector.load %arg7[%c0_35, %c16, %c0_36] : memref<3x96x16xbf16, #tpu.memory_space<vmem>>, vector<1x64x16xbf16>
    %33 = vector.shape_cast %32 : vector<1x64x16xbf16> to vector<64x16xbf16>
    %c3 = arith.constant 3 : index
    %c0_37 = arith.constant 0 : index
    %c0_38 = arith.constant 0 : index
    %34 = vector.load %arg2[%c3, %c0_37, %c0_38] : memref<9x16x32xbf16, #tpu.memory_space<vmem>>, vector<1x16x32xbf16>
    %35 = vector.shape_cast %34 : vector<1x16x32xbf16> to vector<16x32xbf16>
    %cst_39 = arith.constant dense<0.000000e+00> : vector<64x32xf32>
    %36 = tpu.matmul %33, %35, %cst_39 {dimension_numbers = #tpu.dot_dimension_numbers<[1], [0], [0], [1], [0, 0, 1, 1], [], []>} : vector<64x16xbf16>, vector<16x32xbf16>, vector<64x32xf32> -> vector<64x32xf32>
    %37 = arith.addf %31, %36 : vector<64x32xf32>
    %c1_40 = arith.constant 1 : index
    %c16_41 = arith.constant 16 : index
    %c0_42 = arith.constant 0 : index
    %38 = vector.load %arg7[%c1_40, %c16_41, %c0_42] : memref<3x96x16xbf16, #tpu.memory_space<vmem>>, vector<1x64x16xbf16>
    %39 = vector.shape_cast %38 : vector<1x64x16xbf16> to vector<64x16xbf16>
    %c4 = arith.constant 4 : index
    %c0_43 = arith.constant 0 : index
    %c0_44 = arith.constant 0 : index
    %40 = vector.load %arg2[%c4, %c0_43, %c0_44] : memref<9x16x32xbf16, #tpu.memory_space<vmem>>, vector<1x16x32xbf16>
    %41 = vector.shape_cast %40 : vector<1x16x32xbf16> to vector<16x32xbf16>
    %cst_45 = arith.constant dense<0.000000e+00> : vector<64x32xf32>
    %42 = tpu.matmul %39, %41, %cst_45 {dimension_numbers = #tpu.dot_dimension_numbers<[1], [0], [0], [1], [0, 0, 1, 1], [], []>} : vector<64x16xbf16>, vector<16x32xbf16>, vector<64x32xf32> -> vector<64x32xf32>
    %43 = arith.addf %37, %42 : vector<64x32xf32>
    %c2_46 = arith.constant 2 : index
    %c16_47 = arith.constant 16 : index
    %c0_48 = arith.constant 0 : index
    %44 = vector.load %arg7[%c2_46, %c16_47, %c0_48] : memref<3x96x16xbf16, #tpu.memory_space<vmem>>, vector<1x64x16xbf16>
    %45 = vector.shape_cast %44 : vector<1x64x16xbf16> to vector<64x16xbf16>
    %c5 = arith.constant 5 : index
    %c0_49 = arith.constant 0 : index
    %c0_50 = arith.constant 0 : index
    %46 = vector.load %arg2[%c5, %c0_49, %c0_50] : memref<9x16x32xbf16, #tpu.memory_space<vmem>>, vector<1x16x32xbf16>
    %47 = vector.shape_cast %46 : vector<1x16x32xbf16> to vector<16x32xbf16>
    %cst_51 = arith.constant dense<0.000000e+00> : vector<64x32xf32>
    %48 = tpu.matmul %45, %47, %cst_51 {dimension_numbers = #tpu.dot_dimension_numbers<[1], [0], [0], [1], [0, 0, 1, 1], [], []>} : vector<64x16xbf16>, vector<16x32xbf16>, vector<64x32xf32> -> vector<64x32xf32>
    %49 = arith.addf %43, %48 : vector<64x32xf32>
    %c0_52 = arith.constant 0 : index
    %c32 = arith.constant 32 : index
    %c0_53 = arith.constant 0 : index
    %50 = vector.load %arg7[%c0_52, %c32, %c0_53] : memref<3x96x16xbf16, #tpu.memory_space<vmem>>, vector<1x64x16xbf16>
    %51 = vector.shape_cast %50 : vector<1x64x16xbf16> to vector<64x16xbf16>
    %c6 = arith.constant 6 : index
    %c0_54 = arith.constant 0 : index
    %c0_55 = arith.constant 0 : index
    %52 = vector.load %arg2[%c6, %c0_54, %c0_55] : memref<9x16x32xbf16, #tpu.memory_space<vmem>>, vector<1x16x32xbf16>
    %53 = vector.shape_cast %52 : vector<1x16x32xbf16> to vector<16x32xbf16>
    %cst_56 = arith.constant dense<0.000000e+00> : vector<64x32xf32>
    %54 = tpu.matmul %51, %53, %cst_56 {dimension_numbers = #tpu.dot_dimension_numbers<[1], [0], [0], [1], [0, 0, 1, 1], [], []>} : vector<64x16xbf16>, vector<16x32xbf16>, vector<64x32xf32> -> vector<64x32xf32>
    %55 = arith.addf %49, %54 : vector<64x32xf32>
    %c1_57 = arith.constant 1 : index
    %c32_58 = arith.constant 32 : index
    %c0_59 = arith.constant 0 : index
    %56 = vector.load %arg7[%c1_57, %c32_58, %c0_59] : memref<3x96x16xbf16, #tpu.memory_space<vmem>>, vector<1x64x16xbf16>
    %57 = vector.shape_cast %56 : vector<1x64x16xbf16> to vector<64x16xbf16>
    %c7 = arith.constant 7 : index
    %c0_60 = arith.constant 0 : index
    %c0_61 = arith.constant 0 : index
    %58 = vector.load %arg2[%c7, %c0_60, %c0_61] : memref<9x16x32xbf16, #tpu.memory_space<vmem>>, vector<1x16x32xbf16>
    %59 = vector.shape_cast %58 : vector<1x16x32xbf16> to vector<16x32xbf16>
    %cst_62 = arith.constant dense<0.000000e+00> : vector<64x32xf32>
    %60 = tpu.matmul %57, %59, %cst_62 {dimension_numbers = #tpu.dot_dimension_numbers<[1], [0], [0], [1], [0, 0, 1, 1], [], []>} : vector<64x16xbf16>, vector<16x32xbf16>, vector<64x32xf32> -> vector<64x32xf32>
    %61 = arith.addf %55, %60 : vector<64x32xf32>
    %c2_63 = arith.constant 2 : index
    %c32_64 = arith.constant 32 : index
    %c0_65 = arith.constant 0 : index
    %62 = vector.load %arg7[%c2_63, %c32_64, %c0_65] : memref<3x96x16xbf16, #tpu.memory_space<vmem>>, vector<1x64x16xbf16>
    %63 = vector.shape_cast %62 : vector<1x64x16xbf16> to vector<64x16xbf16>
    %c8 = arith.constant 8 : index
    %c0_66 = arith.constant 0 : index
    %c0_67 = arith.constant 0 : index
    %64 = vector.load %arg2[%c8, %c0_66, %c0_67] : memref<9x16x32xbf16, #tpu.memory_space<vmem>>, vector<1x16x32xbf16>
    %65 = vector.shape_cast %64 : vector<1x16x32xbf16> to vector<16x32xbf16>
    %cst_68 = arith.constant dense<0.000000e+00> : vector<64x32xf32>
    %66 = tpu.matmul %63, %65, %cst_68 {dimension_numbers = #tpu.dot_dimension_numbers<[1], [0], [0], [1], [0, 0, 1, 1], [], []>} : vector<64x16xbf16>, vector<16x32xbf16>, vector<64x32xf32> -> vector<64x32xf32>
    %67 = arith.addf %61, %66 : vector<64x32xf32>
    %68 = tpu.iota {dimensions = array<i32: 0>} : vector<64x1xi32>
    %c16_i32 = arith.constant 16 : i32
    %c0_i32 = arith.constant 0 : i32
    %69 = arith.cmpi eq, %c16_i32, %c0_i32 : i32
    %c1_i32 = arith.constant 1 : i32
    %70 = arith.select %69, %c1_i32, %c16_i32 : i32
    %71 = vector.broadcast %70 : i32 to vector<64x1xi32>
    %72 = arith.remsi %68, %71 : vector<64x1xi32>
    %c0_i32_69 = arith.constant 0 : i32
    %73 = vector.broadcast %c0_i32_69 : i32 to vector<64x1xi32>
    %74 = arith.cmpi ne, %72, %73 : vector<64x1xi32>
    %c0_i32_70 = arith.constant 0 : i32
    %75 = vector.broadcast %c0_i32_70 : i32 to vector<64x1xi32>
    %76 = arith.cmpi slt, %72, %75 : vector<64x1xi32>
    %c0_i32_71 = arith.constant 0 : i32
    %77 = arith.cmpi slt, %70, %c0_i32_71 : i32
    %78 = vector.broadcast %77 : i1 to vector<64x1xi1>
    %79 = vector.broadcast %78 : vector<64x1xi1> to vector<64x1xi1>
    %80 = arith.xori %76, %79 : vector<64x1xi1>
    %81 = arith.andi %80, %74 : vector<64x1xi1>
    %82 = vector.broadcast %70 : i32 to vector<64x1xi32>
    %83 = arith.addi %72, %82 : vector<64x1xi32>
    %84 = arith.select %81, %83, %72 : vector<64x1xi1>, vector<64x1xi32>
    %c1_i32_72 = arith.constant 1 : i32
    %85 = vector.broadcast %c1_i32_72 : i32 to vector<64x1xi32>
    %86 = arith.cmpi sge, %84, %85 : vector<64x1xi32>
    %c9_i32 = arith.constant 9 : i32
    %87 = vector.broadcast %c9_i32 : i32 to vector<64x1xi32>
    %88 = arith.cmpi slt, %84, %87 : vector<64x1xi32>
    %89 = arith.andi %86, %88 : vector<64x1xi1>
    %c0_73 = arith.constant 0 : index
    %c0_74 = arith.constant 0 : index
    %90 = vector.load %arg3[%c0_73, %c0_74] : memref<1x32xf32, #tpu.memory_space<vmem>>, vector<1x32xf32>
    %91 = vector.broadcast %90 : vector<1x32xf32> to vector<64x32xf32>
    %92 = arith.addf %67, %91 : vector<64x32xf32>
    %cst_75 = arith.constant 0.707106769 : f32
    %93 = vector.broadcast %cst_75 : f32 to vector<64x32xf32>
    %94 = arith.mulf %92, %93 : vector<64x32xf32>
    %95 = math.absf %94 : vector<64x32xf32>
    %cst_76 = arith.constant 0.327591091 : f32
    %96 = vector.broadcast %cst_76 : f32 to vector<64x32xf32>
    %97 = arith.mulf %96, %95 : vector<64x32xf32>
    %cst_77 = arith.constant 1.000000e+00 : f32
    %98 = vector.broadcast %cst_77 : f32 to vector<64x32xf32>
    %99 = arith.addf %98, %97 : vector<64x32xf32>
    %100 = tpu.reciprocal %99 {approx = true} : vector<64x32xf32> -> vector<64x32xf32>
    %cst_78 = arith.constant 1.06140542 : f32
    %101 = vector.broadcast %cst_78 : f32 to vector<64x32xf32>
    %102 = arith.mulf %101, %100 : vector<64x32xf32>
    %cst_79 = arith.constant -1.45315206 : f32
    %103 = vector.broadcast %cst_79 : f32 to vector<64x32xf32>
    %104 = arith.addf %102, %103 : vector<64x32xf32>
    %105 = arith.mulf %104, %100 : vector<64x32xf32>
    %cst_80 = arith.constant 1.42141378 : f32
    %106 = vector.broadcast %cst_80 : f32 to vector<64x32xf32>
    %107 = arith.addf %105, %106 : vector<64x32xf32>
    %108 = arith.mulf %107, %100 : vector<64x32xf32>
    %cst_81 = arith.constant -0.284496725 : f32
    %109 = vector.broadcast %cst_81 : f32 to vector<64x32xf32>
    %110 = arith.addf %108, %109 : vector<64x32xf32>
    %111 = arith.mulf %110, %100 : vector<64x32xf32>
    %cst_82 = arith.constant 0.254829586 : f32
    %112 = vector.broadcast %cst_82 : f32 to vector<64x32xf32>
    %113 = arith.addf %111, %112 : vector<64x32xf32>
    %114 = arith.mulf %113, %100 : vector<64x32xf32>
    %cst_83 = arith.constant 0.000000e+00 : f32
    %115 = vector.broadcast %cst_83 : f32 to vector<64x32xf32>
    %116 = arith.subf %115, %95 : vector<64x32xf32>
    %117 = arith.mulf %116, %95 : vector<64x32xf32>
    %118 = math.exp %117 : vector<64x32xf32>
    %119 = arith.mulf %114, %118 : vector<64x32xf32>
    %cst_84 = arith.constant 1.000000e+00 : f32
    %120 = vector.broadcast %cst_84 : f32 to vector<64x32xf32>
    %121 = arith.subf %120, %119 : vector<64x32xf32>
    %cst_85 = arith.constant 0.000000e+00 : f32
    %122 = vector.broadcast %cst_85 : f32 to vector<64x32xf32>
    %123 = arith.cmpf oge, %94, %122 : vector<64x32xf32>
    %cst_86 = arith.constant 0.000000e+00 : f32
    %124 = vector.broadcast %cst_86 : f32 to vector<64x32xf32>
    %125 = arith.subf %124, %121 : vector<64x32xf32>
    %126 = arith.select %123, %121, %125 : vector<64x32xi1>, vector<64x32xf32>
    %cst_87 = arith.constant 5.000000e-01 : f32
    %127 = vector.broadcast %cst_87 : f32 to vector<64x32xf32>
    %128 = arith.mulf %127, %92 : vector<64x32xf32>
    %cst_88 = arith.constant 1.000000e+00 : f32
    %129 = vector.broadcast %cst_88 : f32 to vector<64x32xf32>
    %130 = arith.addf %129, %126 : vector<64x32xf32>
    %131 = arith.mulf %128, %130 : vector<64x32xf32>
    %cst_89 = arith.constant 0.000000e+00 : f32
    %132 = vector.shape_cast %89 : vector<64x1xi1> to vector<64x1xi1>
    %133 = vector.broadcast %132 : vector<64x1xi1> to vector<64x32xi1>
    %134 = vector.broadcast %cst_89 : f32 to vector<64x32xf32>
    %135 = arith.select %133, %131, %134 : vector<64x32xi1>, vector<64x32xf32>
    %136 = arith.truncf %135 : vector<64x32xf32> to vector<64x32xbf16>
    %c16_90 = arith.constant 16 : index
    %c0_91 = arith.constant 0 : index
    %137 = vector.load %arg8[%c16_90, %c0_91] : memref<112x32xbf16, #tpu.memory_space<vmem>>, vector<64x32xbf16>
    tpu.vector_store %arg8[%c16_90, %c0_91], %136 {strides = array<i32>} : memref<112x32xbf16, #tpu.memory_space<vmem>>, vector<64x32xbf16>,
    %cst_92 = arith.constant 0.000000e+00 : bf16
    %138 = vector.broadcast %cst_92 : bf16 to vector<16x32xbf16>
    %c0_93 = arith.constant 0 : index
    %c0_94 = arith.constant 0 : index
    %139 = vector.load %arg8[%c0_93, %c0_94] : memref<112x32xbf16, #tpu.memory_space<vmem>>, vector<16x32xbf16>
    tpu.vector_store %arg8[%c0_93, %c0_94], %138 {strides = array<i32>} : memref<112x32xbf16, #tpu.memory_space<vmem>>, vector<16x32xbf16>,
    %cst_95 = arith.constant 0.000000e+00 : bf16
    %140 = vector.broadcast %cst_95 : bf16 to vector<32x32xbf16>
    %c80 = arith.constant 80 : index
    %c0_96 = arith.constant 0 : index
    %141 = vector.load %arg8[%c80, %c0_96] : memref<112x32xbf16, #tpu.memory_space<vmem>>, vector<32x32xbf16>
    tpu.vector_store %arg8[%c80, %c0_96], %140 {strides = array<i32>} : memref<112x32xbf16, #tpu.memory_space<vmem>>, vector<32x32xbf16>,
    %c0_97 = arith.constant 0 : index
    %c0_98 = arith.constant 0 : index
    %142 = vector.load %arg8[%c0_97, %c0_98] : memref<112x32xbf16, #tpu.memory_space<vmem>>, vector<64x32xbf16>
    %c0_99 = arith.constant 0 : index
    %c0_100 = arith.constant 0 : index
    %c0_101 = arith.constant 0 : index
    %143 = vector.load %arg4[%c0_99, %c0_100, %c0_101] : memref<9x32x16xbf16, #tpu.memory_space<vmem>>, vector<1x32x16xbf16>
    %144 = vector.shape_cast %143 : vector<1x32x16xbf16> to vector<32x16xbf16>
    %cst_102 = arith.constant dense<0.000000e+00> : vector<64x16xf32>
    %145 = tpu.matmul %142, %144, %cst_102 {dimension_numbers = #tpu.dot_dimension_numbers<[1], [0], [0], [1], [0, 0, 1, 1], [], []>} : vector<64x32xbf16>, vector<32x16xbf16>, vector<64x16xf32> -> vector<64x16xf32>
    %c1_103 = arith.constant 1 : index
    %c0_104 = arith.constant 0 : index
    %146 = vector.load %arg8[%c1_103, %c0_104] : memref<112x32xbf16, #tpu.memory_space<vmem>>, vector<64x32xbf16>
    %c1_105 = arith.constant 1 : index
    %c0_106 = arith.constant 0 : index
    %c0_107 = arith.constant 0 : index
    %147 = vector.load %arg4[%c1_105, %c0_106, %c0_107] : memref<9x32x16xbf16, #tpu.memory_space<vmem>>, vector<1x32x16xbf16>
    %148 = vector.shape_cast %147 : vector<1x32x16xbf16> to vector<32x16xbf16>
    %cst_108 = arith.constant dense<0.000000e+00> : vector<64x16xf32>
    %149 = tpu.matmul %146, %148, %cst_108 {dimension_numbers = #tpu.dot_dimension_numbers<[1], [0], [0], [1], [0, 0, 1, 1], [], []>} : vector<64x32xbf16>, vector<32x16xbf16>, vector<64x16xf32> -> vector<64x16xf32>
    %150 = arith.addf %145, %149 : vector<64x16xf32>
    %c2_109 = arith.constant 2 : index
    %c0_110 = arith.constant 0 : index
    %151 = vector.load %arg8[%c2_109, %c0_110] : memref<112x32xbf16, #tpu.memory_space<vmem>>, vector<64x32xbf16>
    %c2_111 = arith.constant 2 : index
    %c0_112 = arith.constant 0 : index
    %c0_113 = arith.constant 0 : index
    %152 = vector.load %arg4[%c2_111, %c0_112, %c0_113] : memref<9x32x16xbf16, #tpu.memory_space<vmem>>, vector<1x32x16xbf16>
    %153 = vector.shape_cast %152 : vector<1x32x16xbf16> to vector<32x16xbf16>
    %cst_114 = arith.constant dense<0.000000e+00> : vector<64x16xf32>
    %154 = tpu.matmul %151, %153, %cst_114 {dimension_numbers = #tpu.dot_dimension_numbers<[1], [0], [0], [1], [0, 0, 1, 1], [], []>} : vector<64x32xbf16>, vector<32x16xbf16>, vector<64x16xf32> -> vector<64x16xf32>
    %155 = arith.addf %150, %154 : vector<64x16xf32>
    %c16_115 = arith.constant 16 : index
    %c0_116 = arith.constant 0 : index
    %156 = vector.load %arg8[%c16_115, %c0_116] : memref<112x32xbf16, #tpu.memory_space<vmem>>, vector<64x32xbf16>
    %c3_117 = arith.constant 3 : index
    %c0_118 = arith.constant 0 : index
    %c0_119 = arith.constant 0 : index
    %157 = vector.load %arg4[%c3_117, %c0_118, %c0_119] : memref<9x32x16xbf16, #tpu.memory_space<vmem>>, vector<1x32x16xbf16>
    %158 = vector.shape_cast %157 : vector<1x32x16xbf16> to vector<32x16xbf16>
    %cst_120 = arith.constant dense<0.000000e+00> : vector<64x16xf32>
    %159 = tpu.matmul %156, %158, %cst_120 {dimension_numbers = #tpu.dot_dimension_numbers<[1], [0], [0], [1], [0, 0, 1, 1], [], []>} : vector<64x32xbf16>, vector<32x16xbf16>, vector<64x16xf32> -> vector<64x16xf32>
    %160 = arith.addf %155, %159 : vector<64x16xf32>
    %c17 = arith.constant 17 : index
    %c0_121 = arith.constant 0 : index
    %161 = vector.load %arg8[%c17, %c0_121] : memref<112x32xbf16, #tpu.memory_space<vmem>>, vector<64x32xbf16>
    %c4_122 = arith.constant 4 : index
    %c0_123 = arith.constant 0 : index
    %c0_124 = arith.constant 0 : index
    %162 = vector.load %arg4[%c4_122, %c0_123, %c0_124] : memref<9x32x16xbf16, #tpu.memory_space<vmem>>, vector<1x32x16xbf16>
    %163 = vector.shape_cast %162 : vector<1x32x16xbf16> to vector<32x16xbf16>
    %cst_125 = arith.constant dense<0.000000e+00> : vector<64x16xf32>
    %164 = tpu.matmul %161, %163, %cst_125 {dimension_numbers = #tpu.dot_dimension_numbers<[1], [0], [0], [1], [0, 0, 1, 1], [], []>} : vector<64x32xbf16>, vector<32x16xbf16>, vector<64x16xf32> -> vector<64x16xf32>
    %165 = arith.addf %160, %164 : vector<64x16xf32>
    %c18 = arith.constant 18 : index
    %c0_126 = arith.constant 0 : index
    %166 = vector.load %arg8[%c18, %c0_126] : memref<112x32xbf16, #tpu.memory_space<vmem>>, vector<64x32xbf16>
    %c5_127 = arith.constant 5 : index
    %c0_128 = arith.constant 0 : index
    %c0_129 = arith.constant 0 : index
    %167 = vector.load %arg4[%c5_127, %c0_128, %c0_129] : memref<9x32x16xbf16, #tpu.memory_space<vmem>>, vector<1x32x16xbf16>
    %168 = vector.shape_cast %167 : vector<1x32x16xbf16> to vector<32x16xbf16>
    %cst_130 = arith.constant dense<0.000000e+00> : vector<64x16xf32>
    %169 = tpu.matmul %166, %168, %cst_130 {dimension_numbers = #tpu.dot_dimension_numbers<[1], [0], [0], [1], [0, 0, 1, 1], [], []>} : vector<64x32xbf16>, vector<32x16xbf16>, vector<64x16xf32> -> vector<64x16xf32>
    %170 = arith.addf %165, %169 : vector<64x16xf32>
    %c32_131 = arith.constant 32 : index
    %c0_132 = arith.constant 0 : index
    %171 = vector.load %arg8[%c32_131, %c0_132] : memref<112x32xbf16, #tpu.memory_space<vmem>>, vector<64x32xbf16>
    %c6_133 = arith.constant 6 : index
    %c0_134 = arith.constant 0 : index
    %c0_135 = arith.constant 0 : index
    %172 = vector.load %arg4[%c6_133, %c0_134, %c0_135] : memref<9x32x16xbf16, #tpu.memory_space<vmem>>, vector<1x32x16xbf16>
    %173 = vector.shape_cast %172 : vector<1x32x16xbf16> to vector<32x16xbf16>
    %cst_136 = arith.constant dense<0.000000e+00> : vector<64x16xf32>
    %174 = tpu.matmul %171, %173, %cst_136 {dimension_numbers = #tpu.dot_dimension_numbers<[1], [0], [0], [1], [0, 0, 1, 1], [], []>} : vector<64x32xbf16>, vector<32x16xbf16>, vector<64x16xf32> -> vector<64x16xf32>
    %175 = arith.addf %170, %174 : vector<64x16xf32>
    %c33 = arith.constant 33 : index
    %c0_137 = arith.constant 0 : index
    %176 = vector.load %arg8[%c33, %c0_137] : memref<112x32xbf16, #tpu.memory_space<vmem>>, vector<64x32xbf16>
    %c7_138 = arith.constant 7 : index
    %c0_139 = arith.constant 0 : index
    %c0_140 = arith.constant 0 : index
    %177 = vector.load %arg4[%c7_138, %c0_139, %c0_140] : memref<9x32x16xbf16, #tpu.memory_space<vmem>>, vector<1x32x16xbf16>
    %178 = vector.shape_cast %177 : vector<1x32x16xbf16> to vector<32x16xbf16>
    %cst_141 = arith.constant dense<0.000000e+00> : vector<64x16xf32>
    %179 = tpu.matmul %176, %178, %cst_141 {dimension_numbers = #tpu.dot_dimension_numbers<[1], [0], [0], [1], [0, 0, 1, 1], [], []>} : vector<64x32xbf16>, vector<32x16xbf16>, vector<64x16xf32> -> vector<64x16xf32>
    %180 = arith.addf %175, %179 : vector<64x16xf32>
    %c34 = arith.constant 34 : index
    %c0_142 = arith.constant 0 : index
    %181 = vector.load %arg8[%c34, %c0_142] : memref<112x32xbf16, #tpu.memory_space<vmem>>, vector<64x32xbf16>
    %c8_143 = arith.constant 8 : index
    %c0_144 = arith.constant 0 : index
    %c0_145 = arith.constant 0 : index
    %182 = vector.load %arg4[%c8_143, %c0_144, %c0_145] : memref<9x32x16xbf16, #tpu.memory_space<vmem>>, vector<1x32x16xbf16>
    %183 = vector.shape_cast %182 : vector<1x32x16xbf16> to vector<32x16xbf16>
    %cst_146 = arith.constant dense<0.000000e+00> : vector<64x16xf32>
    %184 = tpu.matmul %181, %183, %cst_146 {dimension_numbers = #tpu.dot_dimension_numbers<[1], [0], [0], [1], [0, 0, 1, 1], [], []>} : vector<64x32xbf16>, vector<32x16xbf16>, vector<64x16xf32> -> vector<64x16xf32>
    %185 = arith.addf %180, %184 : vector<64x16xf32>
    %c0_147 = arith.constant 0 : index
    %c0_148 = arith.constant 0 : index
    %186 = vector.load %arg5[%c0_147, %c0_148] : memref<1x16xf32, #tpu.memory_space<vmem>>, vector<1x16xf32>
    %187 = vector.broadcast %186 : vector<1x16xf32> to vector<64x16xf32>
    %188 = arith.addf %185, %187 : vector<64x16xf32>
    %c0_149 = arith.constant 0 : index
    %c0_150 = arith.constant 0 : index
    %c0_151 = arith.constant 0 : index
    %189 = vector.load %arg6[%c0_149, %c0_150, %c0_151] : memref<1x64x16xf32, #tpu.memory_space<vmem>>, vector<1x64x16xf32>
    %190 = vector.shape_cast %189 : vector<1x64x16xf32> to vector<64x16xf32>
    %191 = vector.shape_cast %188 : vector<64x16xf32> to vector<1x64x16xf32>
    tpu.vector_store %arg6[%c0_149, %c0_150, %c0_151], %191 {strides = array<i32>} : memref<1x64x16xf32, #tpu.memory_space<vmem>>, vector<1x64x16xf32>,
    return
  }
  func.func @transform_0(%arg0: i32) -> (i32, i32, i32) {
    %c0_i32 = arith.constant 0 : i32
    %c0_i32_0 = arith.constant 0 : i32
    %c0_i32_1 = arith.constant 0 : i32
    return %arg0, %c0_i32, %c0_i32_0 : i32, i32, i32
  }
  func.func @transform_1(%arg0: i32) -> (i32, i32, i32) {
    %c0_i32 = arith.constant 0 : i32
    %c0_i32_0 = arith.constant 0 : i32
    %c0_i32_1 = arith.constant 0 : i32
    %c0_i32_2 = arith.constant 0 : i32
    return %c0_i32, %c0_i32_0, %c0_i32_1 : i32, i32, i32
  }
  func.func @transform_2(%arg0: i32) -> (i32, i32) {
    %c0_i32 = arith.constant 0 : i32
    %c0_i32_0 = arith.constant 0 : i32
    %c0_i32_1 = arith.constant 0 : i32
    return %c0_i32, %c0_i32_0 : i32, i32
  }
  func.func @transform_3(%arg0: i32) -> (i32, i32, i32) {
    %c0_i32 = arith.constant 0 : i32
    %c0_i32_0 = arith.constant 0 : i32
    %c0_i32_1 = arith.constant 0 : i32
    %c0_i32_2 = arith.constant 0 : i32
    return %c0_i32, %c0_i32_0, %c0_i32_1 : i32, i32, i32
  }
  func.func @transform_4(%arg0: i32) -> (i32, i32) {
    %c0_i32 = arith.constant 0 : i32
    %c0_i32_0 = arith.constant 0 : i32
    %c0_i32_1 = arith.constant 0 : i32
    return %c0_i32, %c0_i32_0 : i32, i32
  }
  func.func @transform_5(%arg0: i32) -> (i32, i32, i32) {
    %c0_i32 = arith.constant 0 : i32
    %c0_i32_0 = arith.constant 0 : i32
    %c0_i32_1 = arith.constant 0 : i32
    return %arg0, %c0_i32, %c0_i32_0 : i32, i32, i32
  }
}

module attributes {stable_mosaic.version = 11 : i64} {
  func.func @_inception_conv_gelu_conv_kernel(%arg0: i32, %arg1: memref<1x112x16xbf16, #tpu.memory_space<vmem>>, %arg2: memref<9x16x32xbf16, #tpu.memory_space<vmem>>, %arg3: memref<1x32xf32, #tpu.memory_space<vmem>>, %arg4: memref<9x32x16xbf16, #tpu.memory_space<vmem>>, %arg5: memref<1x16xf32, #tpu.memory_space<vmem>>, %arg6: memref<1x64x16xf32, #tpu.memory_space<vmem>>, %arg7: memref<3x96x16xbf16, #tpu.memory_space<vmem>>, %arg8: memref<112x32xbf16, #tpu.memory_space<vmem>>) attributes {dimension_semantics = [#tpu.dimension_semantics<parallel>], iteration_bounds = array<i64: 2>, scalar_prefetch = 0 : i64, scratch_operands = 2 : i64, tpu.core_type = #tpu.core_type<tc>, window_params = [{transform_indices = @transform_0, window_bounds = array<i64: 1, 112, 16>}, {pipeline_mode = #tpu.pipeline_mode<synchronous>, transform_indices = @transform_1, window_bounds = array<i64: 9, 16, 32>}, {pipeline_mode = #tpu.pipeline_mode<synchronous>, transform_indices = @transform_2, window_bounds = array<i64: 1, 32>}, {pipeline_mode = #tpu.pipeline_mode<synchronous>, transform_indices = @transform_3, window_bounds = array<i64: 9, 32, 16>}, {pipeline_mode = #tpu.pipeline_mode<synchronous>, transform_indices = @transform_4, window_bounds = array<i64: 1, 16>}, {transform_indices = @transform_5, window_bounds = array<i64: 1, 64, 16>}]} {
    %c0 = arith.constant 0 : index
    %c0_0 = arith.constant 0 : index
    %c0_1 = arith.constant 0 : index
    %0 = vector.load %arg1[%c0, %c0_0, %c0_1] : memref<1x112x16xbf16, #tpu.memory_space<vmem>>, vector<1x96x16xbf16>
    %1 = vector.shape_cast %0 : vector<1x96x16xbf16> to vector<96x16xbf16>
    %c0_2 = arith.constant 0 : index
    %c0_3 = arith.constant 0 : index
    %c0_4 = arith.constant 0 : index
    %2 = vector.load %arg7[%c0_2, %c0_3, %c0_4] : memref<3x96x16xbf16, #tpu.memory_space<vmem>>, vector<1x96x16xbf16>
    %3 = vector.shape_cast %2 : vector<1x96x16xbf16> to vector<96x16xbf16>
    %4 = vector.shape_cast %1 : vector<96x16xbf16> to vector<1x96x16xbf16>
    tpu.vector_store %arg7[%c0_2, %c0_3, %c0_4], %4 {strides = array<i32>} : memref<3x96x16xbf16, #tpu.memory_space<vmem>>, vector<1x96x16xbf16>,
    %c0_5 = arith.constant 0 : index
    %c1 = arith.constant 1 : index
    %c0_6 = arith.constant 0 : index
    %5 = vector.load %arg1[%c0_5, %c1, %c0_6] : memref<1x112x16xbf16, #tpu.memory_space<vmem>>, vector<1x96x16xbf16>
    %6 = vector.shape_cast %5 : vector<1x96x16xbf16> to vector<96x16xbf16>
    %c1_7 = arith.constant 1 : index
    %c0_8 = arith.constant 0 : index
    %c0_9 = arith.constant 0 : index
    %7 = vector.load %arg7[%c1_7, %c0_8, %c0_9] : memref<3x96x16xbf16, #tpu.memory_space<vmem>>, vector<1x96x16xbf16>
    %8 = vector.shape_cast %7 : vector<1x96x16xbf16> to vector<96x16xbf16>
    %9 = vector.shape_cast %6 : vector<96x16xbf16> to vector<1x96x16xbf16>
    tpu.vector_store %arg7[%c1_7, %c0_8, %c0_9], %9 {strides = array<i32>} : memref<3x96x16xbf16, #tpu.memory_space<vmem>>, vector<1x96x16xbf16>,
    %c0_10 = arith.constant 0 : index
    %c2 = arith.constant 2 : index
    %c0_11 = arith.constant 0 : index
    %10 = vector.load %arg1[%c0_10, %c2, %c0_11] : memref<1x112x16xbf16, #tpu.memory_space<vmem>>, vector<1x96x16xbf16>
    %11 = vector.shape_cast %10 : vector<1x96x16xbf16> to vector<96x16xbf16>
    %c2_12 = arith.constant 2 : index
    %c0_13 = arith.constant 0 : index
    %c0_14 = arith.constant 0 : index
    %12 = vector.load %arg7[%c2_12, %c0_13, %c0_14] : memref<3x96x16xbf16, #tpu.memory_space<vmem>>, vector<1x96x16xbf16>
    %13 = vector.shape_cast %12 : vector<1x96x16xbf16> to vector<96x16xbf16>
    %14 = vector.shape_cast %11 : vector<96x16xbf16> to vector<1x96x16xbf16>
    tpu.vector_store %arg7[%c2_12, %c0_13, %c0_14], %14 {strides = array<i32>} : memref<3x96x16xbf16, #tpu.memory_space<vmem>>, vector<1x96x16xbf16>,
    %c0_15 = arith.constant 0 : index
    %c0_16 = arith.constant 0 : index
    %c0_17 = arith.constant 0 : index
    %15 = vector.load %arg7[%c0_15, %c0_16, %c0_17] : memref<3x96x16xbf16, #tpu.memory_space<vmem>>, vector<1x64x16xbf16>
    %16 = vector.shape_cast %15 : vector<1x64x16xbf16> to vector<64x16xbf16>
    %c0_18 = arith.constant 0 : index
    %c0_19 = arith.constant 0 : index
    %c0_20 = arith.constant 0 : index
    %17 = vector.load %arg2[%c0_18, %c0_19, %c0_20] : memref<9x16x32xbf16, #tpu.memory_space<vmem>>, vector<1x16x32xbf16>
    %18 = vector.shape_cast %17 : vector<1x16x32xbf16> to vector<16x32xbf16>
    %cst = arith.constant dense<0.000000e+00> : vector<64x32xf32>
    %19 = tpu.matmul %16, %18, %cst {dimension_numbers = #tpu.dot_dimension_numbers<[1], [0], [0], [1], [0, 0, 1, 1], [], []>} : vector<64x16xbf16>, vector<16x32xbf16>, vector<64x32xf32> -> vector<64x32xf32>
    %c1_21 = arith.constant 1 : index
    %c0_22 = arith.constant 0 : index
    %c0_23 = arith.constant 0 : index
    %20 = vector.load %arg7[%c1_21, %c0_22, %c0_23] : memref<3x96x16xbf16, #tpu.memory_space<vmem>>, vector<1x64x16xbf16>
    %21 = vector.shape_cast %20 : vector<1x64x16xbf16> to vector<64x16xbf16>
    %c1_24 = arith.constant 1 : index
    %c0_25 = arith.constant 0 : index
    %c0_26 = arith.constant 0 : index
    %22 = vector.load %arg2[%c1_24, %c0_25, %c0_26] : memref<9x16x32xbf16, #tpu.memory_space<vmem>>, vector<1x16x32xbf16>
    %23 = vector.shape_cast %22 : vector<1x16x32xbf16> to vector<16x32xbf16>
    %cst_27 = arith.constant dense<0.000000e+00> : vector<64x32xf32>
    %24 = tpu.matmul %21, %23, %cst_27 {dimension_numbers = #tpu.dot_dimension_numbers<[1], [0], [0], [1], [0, 0, 1, 1], [], []>} : vector<64x16xbf16>, vector<16x32xbf16>, vector<64x32xf32> -> vector<64x32xf32>
    %25 = arith.addf %19, %24 : vector<64x32xf32>
    %c2_28 = arith.constant 2 : index
    %c0_29 = arith.constant 0 : index
    %c0_30 = arith.constant 0 : index
    %26 = vector.load %arg7[%c2_28, %c0_29, %c0_30] : memref<3x96x16xbf16, #tpu.memory_space<vmem>>, vector<1x64x16xbf16>
    %27 = vector.shape_cast %26 : vector<1x64x16xbf16> to vector<64x16xbf16>
    %c2_31 = arith.constant 2 : index
    %c0_32 = arith.constant 0 : index
    %c0_33 = arith.constant 0 : index
    %28 = vector.load %arg2[%c2_31, %c0_32, %c0_33] : memref<9x16x32xbf16, #tpu.memory_space<vmem>>, vector<1x16x32xbf16>
    %29 = vector.shape_cast %28 : vector<1x16x32xbf16> to vector<16x32xbf16>
    %cst_34 = arith.constant dense<0.000000e+00> : vector<64x32xf32>
    %30 = tpu.matmul %27, %29, %cst_34 {dimension_numbers = #tpu.dot_dimension_numbers<[1], [0], [0], [1], [0, 0, 1, 1], [], []>} : vector<64x16xbf16>, vector<16x32xbf16>, vector<64x32xf32> -> vector<64x32xf32>
    %31 = arith.addf %25, %30 : vector<64x32xf32>
    %c0_35 = arith.constant 0 : index
    %c16 = arith.constant 16 : index
    %c0_36 = arith.constant 0 : index
    %32 = vector.load %arg7[%c0_35, %c16, %c0_36] : memref<3x96x16xbf16, #tpu.memory_space<vmem>>, vector<1x64x16xbf16>
    %33 = vector.shape_cast %32 : vector<1x64x16xbf16> to vector<64x16xbf16>
    %c3 = arith.constant 3 : index
    %c0_37 = arith.constant 0 : index
    %c0_38 = arith.constant 0 : index
    %34 = vector.load %arg2[%c3, %c0_37, %c0_38] : memref<9x16x32xbf16, #tpu.memory_space<vmem>>, vector<1x16x32xbf16>
    %35 = vector.shape_cast %34 : vector<1x16x32xbf16> to vector<16x32xbf16>
    %cst_39 = arith.constant dense<0.000000e+00> : vector<64x32xf32>
    %36 = tpu.matmul %33, %35, %cst_39 {dimension_numbers = #tpu.dot_dimension_numbers<[1], [0], [0], [1], [0, 0, 1, 1], [], []>} : vector<64x16xbf16>, vector<16x32xbf16>, vector<64x32xf32> -> vector<64x32xf32>
    %37 = arith.addf %31, %36 : vector<64x32xf32>
    %c1_40 = arith.constant 1 : index
    %c16_41 = arith.constant 16 : index
    %c0_42 = arith.constant 0 : index
    %38 = vector.load %arg7[%c1_40, %c16_41, %c0_42] : memref<3x96x16xbf16, #tpu.memory_space<vmem>>, vector<1x64x16xbf16>
    %39 = vector.shape_cast %38 : vector<1x64x16xbf16> to vector<64x16xbf16>
    %c4 = arith.constant 4 : index
    %c0_43 = arith.constant 0 : index
    %c0_44 = arith.constant 0 : index
    %40 = vector.load %arg2[%c4, %c0_43, %c0_44] : memref<9x16x32xbf16, #tpu.memory_space<vmem>>, vector<1x16x32xbf16>
    %41 = vector.shape_cast %40 : vector<1x16x32xbf16> to vector<16x32xbf16>
    %cst_45 = arith.constant dense<0.000000e+00> : vector<64x32xf32>
    %42 = tpu.matmul %39, %41, %cst_45 {dimension_numbers = #tpu.dot_dimension_numbers<[1], [0], [0], [1], [0, 0, 1, 1], [], []>} : vector<64x16xbf16>, vector<16x32xbf16>, vector<64x32xf32> -> vector<64x32xf32>
    %43 = arith.addf %37, %42 : vector<64x32xf32>
    %c2_46 = arith.constant 2 : index
    %c16_47 = arith.constant 16 : index
    %c0_48 = arith.constant 0 : index
    %44 = vector.load %arg7[%c2_46, %c16_47, %c0_48] : memref<3x96x16xbf16, #tpu.memory_space<vmem>>, vector<1x64x16xbf16>
    %45 = vector.shape_cast %44 : vector<1x64x16xbf16> to vector<64x16xbf16>
    %c5 = arith.constant 5 : index
    %c0_49 = arith.constant 0 : index
    %c0_50 = arith.constant 0 : index
    %46 = vector.load %arg2[%c5, %c0_49, %c0_50] : memref<9x16x32xbf16, #tpu.memory_space<vmem>>, vector<1x16x32xbf16>
    %47 = vector.shape_cast %46 : vector<1x16x32xbf16> to vector<16x32xbf16>
    %cst_51 = arith.constant dense<0.000000e+00> : vector<64x32xf32>
    %48 = tpu.matmul %45, %47, %cst_51 {dimension_numbers = #tpu.dot_dimension_numbers<[1], [0], [0], [1], [0, 0, 1, 1], [], []>} : vector<64x16xbf16>, vector<16x32xbf16>, vector<64x32xf32> -> vector<64x32xf32>
    %49 = arith.addf %43, %48 : vector<64x32xf32>
    %c0_52 = arith.constant 0 : index
    %c32 = arith.constant 32 : index
    %c0_53 = arith.constant 0 : index
    %50 = vector.load %arg7[%c0_52, %c32, %c0_53] : memref<3x96x16xbf16, #tpu.memory_space<vmem>>, vector<1x64x16xbf16>
    %51 = vector.shape_cast %50 : vector<1x64x16xbf16> to vector<64x16xbf16>
    %c6 = arith.constant 6 : index
    %c0_54 = arith.constant 0 : index
    %c0_55 = arith.constant 0 : index
    %52 = vector.load %arg2[%c6, %c0_54, %c0_55] : memref<9x16x32xbf16, #tpu.memory_space<vmem>>, vector<1x16x32xbf16>
    %53 = vector.shape_cast %52 : vector<1x16x32xbf16> to vector<16x32xbf16>
    %cst_56 = arith.constant dense<0.000000e+00> : vector<64x32xf32>
    %54 = tpu.matmul %51, %53, %cst_56 {dimension_numbers = #tpu.dot_dimension_numbers<[1], [0], [0], [1], [0, 0, 1, 1], [], []>} : vector<64x16xbf16>, vector<16x32xbf16>, vector<64x32xf32> -> vector<64x32xf32>
    %55 = arith.addf %49, %54 : vector<64x32xf32>
    %c1_57 = arith.constant 1 : index
    %c32_58 = arith.constant 32 : index
    %c0_59 = arith.constant 0 : index
    %56 = vector.load %arg7[%c1_57, %c32_58, %c0_59] : memref<3x96x16xbf16, #tpu.memory_space<vmem>>, vector<1x64x16xbf16>
    %57 = vector.shape_cast %56 : vector<1x64x16xbf16> to vector<64x16xbf16>
    %c7 = arith.constant 7 : index
    %c0_60 = arith.constant 0 : index
    %c0_61 = arith.constant 0 : index
    %58 = vector.load %arg2[%c7, %c0_60, %c0_61] : memref<9x16x32xbf16, #tpu.memory_space<vmem>>, vector<1x16x32xbf16>
    %59 = vector.shape_cast %58 : vector<1x16x32xbf16> to vector<16x32xbf16>
    %cst_62 = arith.constant dense<0.000000e+00> : vector<64x32xf32>
    %60 = tpu.matmul %57, %59, %cst_62 {dimension_numbers = #tpu.dot_dimension_numbers<[1], [0], [0], [1], [0, 0, 1, 1], [], []>} : vector<64x16xbf16>, vector<16x32xbf16>, vector<64x32xf32> -> vector<64x32xf32>
    %61 = arith.addf %55, %60 : vector<64x32xf32>
    %c2_63 = arith.constant 2 : index
    %c32_64 = arith.constant 32 : index
    %c0_65 = arith.constant 0 : index
    %62 = vector.load %arg7[%c2_63, %c32_64, %c0_65] : memref<3x96x16xbf16, #tpu.memory_space<vmem>>, vector<1x64x16xbf16>
    %63 = vector.shape_cast %62 : vector<1x64x16xbf16> to vector<64x16xbf16>
    %c8 = arith.constant 8 : index
    %c0_66 = arith.constant 0 : index
    %c0_67 = arith.constant 0 : index
    %64 = vector.load %arg2[%c8, %c0_66, %c0_67] : memref<9x16x32xbf16, #tpu.memory_space<vmem>>, vector<1x16x32xbf16>
    %65 = vector.shape_cast %64 : vector<1x16x32xbf16> to vector<16x32xbf16>
    %cst_68 = arith.constant dense<0.000000e+00> : vector<64x32xf32>
    %66 = tpu.matmul %63, %65, %cst_68 {dimension_numbers = #tpu.dot_dimension_numbers<[1], [0], [0], [1], [0, 0, 1, 1], [], []>} : vector<64x16xbf16>, vector<16x32xbf16>, vector<64x32xf32> -> vector<64x32xf32>
    %67 = arith.addf %61, %66 : vector<64x32xf32>
    %68 = tpu.iota {dimensions = array<i32: 0>} : vector<64x1xi32>
    %c16_i32 = arith.constant 16 : i32
    %c0_i32 = arith.constant 0 : i32
    %69 = arith.cmpi eq, %c16_i32, %c0_i32 : i32
    %c1_i32 = arith.constant 1 : i32
    %70 = arith.select %69, %c1_i32, %c16_i32 : i32
    %71 = vector.broadcast %70 : i32 to vector<64x1xi32>
    %72 = arith.remsi %68, %71 : vector<64x1xi32>
    %c0_i32_69 = arith.constant 0 : i32
    %73 = vector.broadcast %c0_i32_69 : i32 to vector<64x1xi32>
    %74 = arith.cmpi ne, %72, %73 : vector<64x1xi32>
    %c0_i32_70 = arith.constant 0 : i32
    %75 = vector.broadcast %c0_i32_70 : i32 to vector<64x1xi32>
    %76 = arith.cmpi slt, %72, %75 : vector<64x1xi32>
    %c0_i32_71 = arith.constant 0 : i32
    %77 = arith.cmpi slt, %70, %c0_i32_71 : i32
    %78 = vector.broadcast %77 : i1 to vector<64x1xi1>
    %79 = vector.broadcast %78 : vector<64x1xi1> to vector<64x1xi1>
    %80 = arith.xori %76, %79 : vector<64x1xi1>
    %81 = arith.andi %80, %74 : vector<64x1xi1>
    %82 = vector.broadcast %70 : i32 to vector<64x1xi32>
    %83 = arith.addi %72, %82 : vector<64x1xi32>
    %84 = arith.select %81, %83, %72 : vector<64x1xi1>, vector<64x1xi32>
    %c1_i32_72 = arith.constant 1 : i32
    %85 = vector.broadcast %c1_i32_72 : i32 to vector<64x1xi32>
    %86 = arith.cmpi sge, %84, %85 : vector<64x1xi32>
    %c9_i32 = arith.constant 9 : i32
    %87 = vector.broadcast %c9_i32 : i32 to vector<64x1xi32>
    %88 = arith.cmpi slt, %84, %87 : vector<64x1xi32>
    %89 = arith.andi %86, %88 : vector<64x1xi1>
    %c0_73 = arith.constant 0 : index
    %c0_74 = arith.constant 0 : index
    %90 = vector.load %arg3[%c0_73, %c0_74] : memref<1x32xf32, #tpu.memory_space<vmem>>, vector<1x32xf32>
    %91 = vector.broadcast %90 : vector<1x32xf32> to vector<64x32xf32>
    %92 = arith.addf %67, %91 : vector<64x32xf32>
    %cst_75 = arith.constant 0.707106769 : f32
    %93 = vector.broadcast %cst_75 : f32 to vector<64x32xf32>
    %94 = arith.mulf %92, %93 : vector<64x32xf32>
    %95 = math.absf %94 : vector<64x32xf32>
    %cst_76 = arith.constant 0.327591091 : f32
    %96 = vector.broadcast %cst_76 : f32 to vector<64x32xf32>
    %97 = arith.mulf %96, %95 : vector<64x32xf32>
    %cst_77 = arith.constant 1.000000e+00 : f32
    %98 = vector.broadcast %cst_77 : f32 to vector<64x32xf32>
    %99 = arith.addf %98, %97 : vector<64x32xf32>
    %100 = tpu.reciprocal %99 {approx = true} : vector<64x32xf32> -> vector<64x32xf32>
    %cst_78 = arith.constant 1.06140542 : f32
    %101 = vector.broadcast %cst_78 : f32 to vector<64x32xf32>
    %102 = arith.mulf %101, %100 : vector<64x32xf32>
    %cst_79 = arith.constant -1.45315206 : f32
    %103 = vector.broadcast %cst_79 : f32 to vector<64x32xf32>
    %104 = arith.addf %102, %103 : vector<64x32xf32>
    %105 = arith.mulf %104, %100 : vector<64x32xf32>
    %cst_80 = arith.constant 1.42141378 : f32
    %106 = vector.broadcast %cst_80 : f32 to vector<64x32xf32>
    %107 = arith.addf %105, %106 : vector<64x32xf32>
    %108 = arith.mulf %107, %100 : vector<64x32xf32>
    %cst_81 = arith.constant -0.284496725 : f32
    %109 = vector.broadcast %cst_81 : f32 to vector<64x32xf32>
    %110 = arith.addf %108, %109 : vector<64x32xf32>
    %111 = arith.mulf %110, %100 : vector<64x32xf32>
    %cst_82 = arith.constant 0.254829586 : f32
    %112 = vector.broadcast %cst_82 : f32 to vector<64x32xf32>
    %113 = arith.addf %111, %112 : vector<64x32xf32>
    %114 = arith.mulf %113, %100 : vector<64x32xf32>
    %cst_83 = arith.constant 0.000000e+00 : f32
    %115 = vector.broadcast %cst_83 : f32 to vector<64x32xf32>
    %116 = arith.subf %115, %95 : vector<64x32xf32>
    %117 = arith.mulf %116, %95 : vector<64x32xf32>
    %118 = math.exp %117 : vector<64x32xf32>
    %119 = arith.mulf %114, %118 : vector<64x32xf32>
    %cst_84 = arith.constant 1.000000e+00 : f32
    %120 = vector.broadcast %cst_84 : f32 to vector<64x32xf32>
    %121 = arith.subf %120, %119 : vector<64x32xf32>
    %cst_85 = arith.constant 0.000000e+00 : f32
    %122 = vector.broadcast %cst_85 : f32 to vector<64x32xf32>
    %123 = arith.cmpf oge, %94, %122 : vector<64x32xf32>
    %cst_86 = arith.constant 0.000000e+00 : f32
    %124 = vector.broadcast %cst_86 : f32 to vector<64x32xf32>
    %125 = arith.subf %124, %121 : vector<64x32xf32>
    %126 = arith.select %123, %121, %125 : vector<64x32xi1>, vector<64x32xf32>
    %cst_87 = arith.constant 5.000000e-01 : f32
    %127 = vector.broadcast %cst_87 : f32 to vector<64x32xf32>
    %128 = arith.mulf %127, %92 : vector<64x32xf32>
    %cst_88 = arith.constant 1.000000e+00 : f32
    %129 = vector.broadcast %cst_88 : f32 to vector<64x32xf32>
    %130 = arith.addf %129, %126 : vector<64x32xf32>
    %131 = arith.mulf %128, %130 : vector<64x32xf32>
    %cst_89 = arith.constant 0.000000e+00 : f32
    %132 = vector.shape_cast %89 : vector<64x1xi1> to vector<64x1xi1>
    %133 = vector.broadcast %132 : vector<64x1xi1> to vector<64x32xi1>
    %134 = vector.broadcast %cst_89 : f32 to vector<64x32xf32>
    %135 = arith.select %133, %131, %134 : vector<64x32xi1>, vector<64x32xf32>
    %136 = arith.truncf %135 : vector<64x32xf32> to vector<64x32xbf16>
    %c16_90 = arith.constant 16 : index
    %c0_91 = arith.constant 0 : index
    %137 = vector.load %arg8[%c16_90, %c0_91] : memref<112x32xbf16, #tpu.memory_space<vmem>>, vector<64x32xbf16>
    tpu.vector_store %arg8[%c16_90, %c0_91], %136 {strides = array<i32>} : memref<112x32xbf16, #tpu.memory_space<vmem>>, vector<64x32xbf16>,
    %cst_92 = arith.constant 0.000000e+00 : bf16
    %138 = vector.broadcast %cst_92 : bf16 to vector<16x32xbf16>
    %c0_93 = arith.constant 0 : index
    %c0_94 = arith.constant 0 : index
    %139 = vector.load %arg8[%c0_93, %c0_94] : memref<112x32xbf16, #tpu.memory_space<vmem>>, vector<16x32xbf16>
    tpu.vector_store %arg8[%c0_93, %c0_94], %138 {strides = array<i32>} : memref<112x32xbf16, #tpu.memory_space<vmem>>, vector<16x32xbf16>,
    %cst_95 = arith.constant 0.000000e+00 : bf16
    %140 = vector.broadcast %cst_95 : bf16 to vector<32x32xbf16>
    %c80 = arith.constant 80 : index
    %c0_96 = arith.constant 0 : index
    %141 = vector.load %arg8[%c80, %c0_96] : memref<112x32xbf16, #tpu.memory_space<vmem>>, vector<32x32xbf16>
    tpu.vector_store %arg8[%c80, %c0_96], %140 {strides = array<i32>} : memref<112x32xbf16, #tpu.memory_space<vmem>>, vector<32x32xbf16>,
    %c0_97 = arith.constant 0 : index
    %c0_98 = arith.constant 0 : index
    %142 = vector.load %arg8[%c0_97, %c0_98] : memref<112x32xbf16, #tpu.memory_space<vmem>>, vector<64x32xbf16>
    %c0_99 = arith.constant 0 : index
    %c0_100 = arith.constant 0 : index
    %c0_101 = arith.constant 0 : index
    %143 = vector.load %arg4[%c0_99, %c0_100, %c0_101] : memref<9x32x16xbf16, #tpu.memory_space<vmem>>, vector<1x32x16xbf16>
    %144 = vector.shape_cast %143 : vector<1x32x16xbf16> to vector<32x16xbf16>
    %cst_102 = arith.constant dense<0.000000e+00> : vector<64x16xf32>
    %145 = tpu.matmul %142, %144, %cst_102 {dimension_numbers = #tpu.dot_dimension_numbers<[1], [0], [0], [1], [0, 0, 1, 1], [], []>} : vector<64x32xbf16>, vector<32x16xbf16>, vector<64x16xf32> -> vector<64x16xf32>
    %c1_103 = arith.constant 1 : index
    %c0_104 = arith.constant 0 : index
    %146 = vector.load %arg8[%c1_103, %c0_104] : memref<112x32xbf16, #tpu.memory_space<vmem>>, vector<64x32xbf16>
    %c1_105 = arith.constant 1 : index
    %c0_106 = arith.constant 0 : index
    %c0_107 = arith.constant 0 : index
    %147 = vector.load %arg4[%c1_105, %c0_106, %c0_107] : memref<9x32x16xbf16, #tpu.memory_space<vmem>>, vector<1x32x16xbf16>
    %148 = vector.shape_cast %147 : vector<1x32x16xbf16> to vector<32x16xbf16>
    %cst_108 = arith.constant dense<0.000000e+00> : vector<64x16xf32>
    %149 = tpu.matmul %146, %148, %cst_108 {dimension_numbers = #tpu.dot_dimension_numbers<[1], [0], [0], [1], [0, 0, 1, 1], [], []>} : vector<64x32xbf16>, vector<32x16xbf16>, vector<64x16xf32> -> vector<64x16xf32>
    %150 = arith.addf %145, %149 : vector<64x16xf32>
    %c2_109 = arith.constant 2 : index
    %c0_110 = arith.constant 0 : index
    %151 = vector.load %arg8[%c2_109, %c0_110] : memref<112x32xbf16, #tpu.memory_space<vmem>>, vector<64x32xbf16>
    %c2_111 = arith.constant 2 : index
    %c0_112 = arith.constant 0 : index
    %c0_113 = arith.constant 0 : index
    %152 = vector.load %arg4[%c2_111, %c0_112, %c0_113] : memref<9x32x16xbf16, #tpu.memory_space<vmem>>, vector<1x32x16xbf16>
    %153 = vector.shape_cast %152 : vector<1x32x16xbf16> to vector<32x16xbf16>
    %cst_114 = arith.constant dense<0.000000e+00> : vector<64x16xf32>
    %154 = tpu.matmul %151, %153, %cst_114 {dimension_numbers = #tpu.dot_dimension_numbers<[1], [0], [0], [1], [0, 0, 1, 1], [], []>} : vector<64x32xbf16>, vector<32x16xbf16>, vector<64x16xf32> -> vector<64x16xf32>
    %155 = arith.addf %150, %154 : vector<64x16xf32>
    %c16_115 = arith.constant 16 : index
    %c0_116 = arith.constant 0 : index
    %156 = vector.load %arg8[%c16_115, %c0_116] : memref<112x32xbf16, #tpu.memory_space<vmem>>, vector<64x32xbf16>
    %c3_117 = arith.constant 3 : index
    %c0_118 = arith.constant 0 : index
    %c0_119 = arith.constant 0 : index
    %157 = vector.load %arg4[%c3_117, %c0_118, %c0_119] : memref<9x32x16xbf16, #tpu.memory_space<vmem>>, vector<1x32x16xbf16>
    %158 = vector.shape_cast %157 : vector<1x32x16xbf16> to vector<32x16xbf16>
    %cst_120 = arith.constant dense<0.000000e+00> : vector<64x16xf32>
    %159 = tpu.matmul %156, %158, %cst_120 {dimension_numbers = #tpu.dot_dimension_numbers<[1], [0], [0], [1], [0, 0, 1, 1], [], []>} : vector<64x32xbf16>, vector<32x16xbf16>, vector<64x16xf32> -> vector<64x16xf32>
    %160 = arith.addf %155, %159 : vector<64x16xf32>
    %c17 = arith.constant 17 : index
    %c0_121 = arith.constant 0 : index
    %161 = vector.load %arg8[%c17, %c0_121] : memref<112x32xbf16, #tpu.memory_space<vmem>>, vector<64x32xbf16>
    %c4_122 = arith.constant 4 : index
    %c0_123 = arith.constant 0 : index
    %c0_124 = arith.constant 0 : index
    %162 = vector.load %arg4[%c4_122, %c0_123, %c0_124] : memref<9x32x16xbf16, #tpu.memory_space<vmem>>, vector<1x32x16xbf16>
    %163 = vector.shape_cast %162 : vector<1x32x16xbf16> to vector<32x16xbf16>
    %cst_125 = arith.constant dense<0.000000e+00> : vector<64x16xf32>
    %164 = tpu.matmul %161, %163, %cst_125 {dimension_numbers = #tpu.dot_dimension_numbers<[1], [0], [0], [1], [0, 0, 1, 1], [], []>} : vector<64x32xbf16>, vector<32x16xbf16>, vector<64x16xf32> -> vector<64x16xf32>
    %165 = arith.addf %160, %164 : vector<64x16xf32>
    %c18 = arith.constant 18 : index
    %c0_126 = arith.constant 0 : index
    %166 = vector.load %arg8[%c18, %c0_126] : memref<112x32xbf16, #tpu.memory_space<vmem>>, vector<64x32xbf16>
    %c5_127 = arith.constant 5 : index
    %c0_128 = arith.constant 0 : index
    %c0_129 = arith.constant 0 : index
    %167 = vector.load %arg4[%c5_127, %c0_128, %c0_129] : memref<9x32x16xbf16, #tpu.memory_space<vmem>>, vector<1x32x16xbf16>
    %168 = vector.shape_cast %167 : vector<1x32x16xbf16> to vector<32x16xbf16>
    %cst_130 = arith.constant dense<0.000000e+00> : vector<64x16xf32>
    %169 = tpu.matmul %166, %168, %cst_130 {dimension_numbers = #tpu.dot_dimension_numbers<[1], [0], [0], [1], [0, 0, 1, 1], [], []>} : vector<64x32xbf16>, vector<32x16xbf16>, vector<64x16xf32> -> vector<64x16xf32>
    %170 = arith.addf %165, %169 : vector<64x16xf32>
    %c32_131 = arith.constant 32 : index
    %c0_132 = arith.constant 0 : index
    %171 = vector.load %arg8[%c32_131, %c0_132] : memref<112x32xbf16, #tpu.memory_space<vmem>>, vector<64x32xbf16>
    %c6_133 = arith.constant 6 : index
    %c0_134 = arith.constant 0 : index
    %c0_135 = arith.constant 0 : index
    %172 = vector.load %arg4[%c6_133, %c0_134, %c0_135] : memref<9x32x16xbf16, #tpu.memory_space<vmem>>, vector<1x32x16xbf16>
    %173 = vector.shape_cast %172 : vector<1x32x16xbf16> to vector<32x16xbf16>
    %cst_136 = arith.constant dense<0.000000e+00> : vector<64x16xf32>
    %174 = tpu.matmul %171, %173, %cst_136 {dimension_numbers = #tpu.dot_dimension_numbers<[1], [0], [0], [1], [0, 0, 1, 1], [], []>} : vector<64x32xbf16>, vector<32x16xbf16>, vector<64x16xf32> -> vector<64x16xf32>
    %175 = arith.addf %170, %174 : vector<64x16xf32>
    %c33 = arith.constant 33 : index
    %c0_137 = arith.constant 0 : index
    %176 = vector.load %arg8[%c33, %c0_137] : memref<112x32xbf16, #tpu.memory_space<vmem>>, vector<64x32xbf16>
    %c7_138 = arith.constant 7 : index
    %c0_139 = arith.constant 0 : index
    %c0_140 = arith.constant 0 : index
    %177 = vector.load %arg4[%c7_138, %c0_139, %c0_140] : memref<9x32x16xbf16, #tpu.memory_space<vmem>>, vector<1x32x16xbf16>
    %178 = vector.shape_cast %177 : vector<1x32x16xbf16> to vector<32x16xbf16>
    %cst_141 = arith.constant dense<0.000000e+00> : vector<64x16xf32>
    %179 = tpu.matmul %176, %178, %cst_141 {dimension_numbers = #tpu.dot_dimension_numbers<[1], [0], [0], [1], [0, 0, 1, 1], [], []>} : vector<64x32xbf16>, vector<32x16xbf16>, vector<64x16xf32> -> vector<64x16xf32>
    %180 = arith.addf %175, %179 : vector<64x16xf32>
    %c34 = arith.constant 34 : index
    %c0_142 = arith.constant 0 : index
    %181 = vector.load %arg8[%c34, %c0_142] : memref<112x32xbf16, #tpu.memory_space<vmem>>, vector<64x32xbf16>
    %c8_143 = arith.constant 8 : index
    %c0_144 = arith.constant 0 : index
    %c0_145 = arith.constant 0 : index
    %182 = vector.load %arg4[%c8_143, %c0_144, %c0_145] : memref<9x32x16xbf16, #tpu.memory_space<vmem>>, vector<1x32x16xbf16>
    %183 = vector.shape_cast %182 : vector<1x32x16xbf16> to vector<32x16xbf16>
    %cst_146 = arith.constant dense<0.000000e+00> : vector<64x16xf32>
    %184 = tpu.matmul %181, %183, %cst_146 {dimension_numbers = #tpu.dot_dimension_numbers<[1], [0], [0], [1], [0, 0, 1, 1], [], []>} : vector<64x32xbf16>, vector<32x16xbf16>, vector<64x16xf32> -> vector<64x16xf32>
    %185 = arith.addf %180, %184 : vector<64x16xf32>
    %c0_147 = arith.constant 0 : index
    %c0_148 = arith.constant 0 : index
    %186 = vector.load %arg5[%c0_147, %c0_148] : memref<1x16xf32, #tpu.memory_space<vmem>>, vector<1x16xf32>
    %187 = vector.broadcast %186 : vector<1x16xf32> to vector<64x16xf32>
    %188 = arith.addf %185, %187 : vector<64x16xf32>
    %c0_149 = arith.constant 0 : index
    %c0_150 = arith.constant 0 : index
    %c0_151 = arith.constant 0 : index
    %189 = vector.load %arg6[%c0_149, %c0_150, %c0_151] : memref<1x64x16xf32, #tpu.memory_space<vmem>>, vector<1x64x16xf32>
    %190 = vector.shape_cast %189 : vector<1x64x16xf32> to vector<64x16xf32>
    %191 = vector.shape_cast %188 : vector<64x16xf32> to vector<1x64x16xf32>
    tpu.vector_store %arg6[%c0_149, %c0_150, %c0_151], %191 {strides = array<i32>} : memref<1x64x16xf32, #tpu.memory_space<vmem>>, vector<1x64x16xf32>,
    return
  }
  func.func @transform_0(%arg0: i32) -> (i32, i32, i32) {
    %c0_i32 = arith.constant 0 : i32
    %c0_i32_0 = arith.constant 0 : i32
    %c0_i32_1 = arith.constant 0 : i32
    return %arg0, %c0_i32, %c0_i32_0 : i32, i32, i32
  }
  func.func @transform_1(%arg0: i32) -> (i32, i32, i32) {
    %c0_i32 = arith.constant 0 : i32
    %c0_i32_0 = arith.constant 0 : i32
    %c0_i32_1 = arith.constant 0 : i32
    %c0_i32_2 = arith.constant 0 : i32
    return %c0_i32, %c0_i32_0, %c0_i32_1 : i32, i32, i32
  }
  func.func @transform_2(%arg0: i32) -> (i32, i32) {
    %c0_i32 = arith.constant 0 : i32
    %c0_i32_0 = arith.constant 0 : i32
    %c0_i32_1 = arith.constant 0 : i32
    return %c0_i32, %c0_i32_0 : i32, i32
  }
  func.func @transform_3(%arg0: i32) -> (i32, i32, i32) {
    %c0_i32 = arith.constant 0 : i32
    %c0_i32_0 = arith.constant 0 : i32
    %c0_i32_1 = arith.constant 0 : i32
    %c0_i32_2 = arith.constant 0 : i32
    return %c0_i32, %c0_i32_0, %c0_i32_1 : i32, i32, i32
  }
  func.func @transform_4(%arg0: i32) -> (i32, i32) {
    %c0_i32 = arith.constant 0 : i32
    %c0_i32_0 = arith.constant 0 : i32
    %c0_i32_1 = arith.constant 0 : i32
    return %c0_i32, %c0_i32_0 : i32, i32
  }
  func.func @transform_5(%arg0: i32) -> (i32, i32, i32) {
    %c0_i32 = arith.constant 0 : i32
    %c0_i32_0 = arith.constant 0 : i32
    %c0_i32_1 = arith.constant 0 : i32
    return %arg0, %c0_i32, %c0_i32_0 : i32, i32, i32
  }
}

</mosaic_0001>

<llo_original>
// kernel: tpu_custom_call.1
$region0: #{tpu_custom_call.1}
  #allocation0 [shape = 'u32[]', space=smem, size = 0x4, offset = 0x4, fixed_abs, tag = 'smem constant byte address 0x4 - core index']
  #allocation1 [shape = 'u32[72,128]{1,0:T(1,128)}', space=vmem, size = 0x9000, scoped, tag = 'internal scratch']
  #allocation2 [shape = 'bf16[3,96,16]{2,1,0:T(8,128)(2,1)}', space=vmem, size = 0x12000, scoped, tag = 'scratch operand']
  #allocation3 [shape = 'bf16[112,32]{1,0:T(8,128)(2,1)}', space=vmem, size = 0x7000, scoped, tag = 'scratch operand']
  %s0 = inlined_call_operand.vmem [shape: bf16[2,112,16], index: 0, kind: input, shape index: {}]
  %s1 = inlined_call_operand.vmem [shape: bf16[9,16,32], index: 1, kind: input, shape index: {}]
  %s2 = inlined_call_operand.vmem [shape: f32[1,32], index: 2, kind: input, shape index: {}]
  %s3 = inlined_call_operand.vmem [shape: bf16[9,32,16], index: 3, kind: input, shape index: {}]
  %s4 = inlined_call_operand.vmem [shape: f32[1,16], index: 4, kind: input, shape index: {}]
  %s5 = inlined_call_operand.vmem [shape: f32[2,64,16], index: 5, kind: output, shape index: {}]
  %s6 = sld [smem:[#allocation0]]
  $region53: #{tpu_custom_call.1} parent=0
    _
  %s8 = ssub.s32 1, %s6
  %s9 = scalar_select 0, %s8, %s6
  loop: start=0, step=1, limit=4
  $region2: #{tpu_custom_call.1} parent=0 // loop_pre_header
    _
  $region3: #{tpu_custom_call.1} parent=0 // loop_header
    %s11 = sphi 0, %s15
    %p12 = scmp.ge.s32.totalorder %s11, 4
    %s21 = sphi 0, %s23
    %s24 = sphi 0, %s21
    %s25 = sphi 0, %s24
    %s41 = sphi 0, %s25
    %s45 = sphi 0, %s45
    %s47 = sphi 0, %s45
    %s48 = sphi 0, %s47
    %s62 = sphi 0, %s48
    %s66 = sphi 0, %s66
    %s68 = sphi 0, %s66
    %s69 = sphi 0, %s68
    %s83 = sphi 0, %s69
    %s87 = sphi 0, %s87
    %s89 = sphi 0, %s87
    %s90 = sphi 0, %s89
    %s104 = sphi 0, %s90
    %s108 = sphi 0, %s108
    %s110 = sphi 0, %s108
    %s111 = sphi 0, %s110
    %s125 = sphi 0, %s111
    %s131 = sphi 0, %s133
    %s134 = sphi 0, %s131
    %s135 = sphi 0, %s134
    %s151 = sphi 0, %s135
  $region4: #{tpu_custom_call.1} parent=0 // loop_header_branch
    %14 = sbr.rel (%p12) target = $region8
  $region5: #{tpu_custom_call.1} parent=0 // loop_body
    %s16 = ssub.s32 %s11, 1
    %s17 = ssub.s32 %s11, 2
    %s18 = sadd.s32 %s11, 1
    %s19 = ssub.s32 %s11, %s18
    %p20 = scmp.eq.s32.totalorder %s19, 0
    %s22 = sadd.s32 %s21, 1
    %s23 = scalar_select %p20, %s21, %s22
    %p26 = pneg %p20
    %p27 = scmp.eq.s32.totalorder %s11, 1
    %p28 = por %p26, %p27
    %p29 = scmp.ne.s32.totalorder %s21, %s24
    %p30 = scmp.eq.s32.totalorder %s11, 0
    %p31 = por %p29, %p30
    %p32 = scmp.ne.s32.totalorder %s21, %s24
    %p33 = scmp.eq.s32.totalorder %s16, 1
    %p34 = por %p32, %p33
    %p35 = scmp.ne.s32.totalorder %s24, %s25
    %p36 = scmp.eq.s32.totalorder %s16, 0
    %p37 = por %p35, %p36
    %p38 = scmp.ne.s32.totalorder %s24, %s25
    %p39 = scmp.eq.s32.totalorder %s17, 1
    %p40 = por %p38, %p39
    %p42 = scmp.ne.s32.totalorder %s25, %s41
    %p43 = scmp.eq.s32.totalorder %s17, 0
    %p44 = por %p42, %p43
    %s46 = sadd.s32 %s45, 1
    %p49 = scmp.eq.s32.totalorder %s11, 1
    %p50 = scmp.ne.s32.totalorder %s45, %s47
    %p51 = scmp.eq.s32.totalorder %s11, 0
    %p52 = por %p50, %p51
    %p53 = scmp.ne.s32.totalorder %s45, %s47
    %p54 = scmp.eq.s32.totalorder %s16, 1
    %p55 = por %p53, %p54
    %p56 = scmp.ne.s32.totalorder %s47, %s48
    %p57 = scmp.eq.s32.totalorder %s16, 0
    %p58 = por %p56, %p57
    %p59 = scmp.ne.s32.totalorder %s47, %s48
    %p60 = scmp.eq.s32.totalorder %s17, 1
    %p61 = por %p59, %p60
    %p63 = scmp.ne.s32.totalorder %s48, %s62
    %p64 = scmp.eq.s32.totalorder %s17, 0
    %p65 = por %p63, %p64
    %s67 = sadd.s32 %s66, 1
    %p70 = scmp.eq.s32.totalorder %s11, 1
    %p71 = scmp.ne.s32.totalorder %s66, %s68
    %p72 = scmp.eq.s32.totalorder %s11, 0
    %p73 = por %p71, %p72
    %p74 = scmp.ne.s32.totalorder %s66, %s68
    %p75 = scmp.eq.s32.totalorder %s16, 1
    %p76 = por %p74, %p75
    %p77 = scmp.ne.s32.totalorder %s68, %s69
    %p78 = scmp.eq.s32.totalorder %s16, 0
    %p79 = por %p77, %p78
    %p80 = scmp.ne.s32.totalorder %s68, %s69
    %p81 = scmp.eq.s32.totalorder %s17, 1
    %p82 = por %p80, %p81
    %p84 = scmp.ne.s32.totalorder %s69, %s83
    %p85 = scmp.eq.s32.totalorder %s17, 0
    %p86 = por %p84, %p85
    %s88 = sadd.s32 %s87, 1
    %p91 = scmp.eq.s32.totalorder %s11, 1
    %p92 = scmp.ne.s32.totalorder %s87, %s89
    %p93 = scmp.eq.s32.totalorder %s11, 0
    %p94 = por %p92, %p93
    %p95 = scmp.ne.s32.totalorder %s87, %s89
    %p96 = scmp.eq.s32.totalorder %s16, 1
    %p97 = por %p95, %p96
    %p98 = scmp.ne.s32.totalorder %s89, %s90
    %p99 = scmp.eq.s32.totalorder %s16, 0
    %p100 = por %p98, %p99
    %p101 = scmp.ne.s32.totalorder %s89, %s90
    %p102 = scmp.eq.s32.totalorder %s17, 1
    %p103 = por %p101, %p102
    %p105 = scmp.ne.s32.totalorder %s90, %s104
    %p106 = scmp.eq.s32.totalorder %s17, 0
    %p107 = por %p105, %p106
    %s109 = sadd.s32 %s108, 1
    %p112 = scmp.eq.s32.totalorder %s11, 1
    %p113 = scmp.ne.s32.totalorder %s108, %s110
    %p114 = scmp.eq.s32.totalorder %s11, 0
    %p115 = por %p113, %p114
    %p116 = scmp.ne.s32.totalorder %s108, %s110
    %p117 = scmp.eq.s32.totalorder %s16, 1
    %p118 = por %p116, %p117
    %p119 = scmp.ne.s32.totalorder %s110, %s111
    %p120 = scmp.eq.s32.totalorder %s16, 0
    %p121 = por %p119, %p120
    %p122 = scmp.ne.s32.totalorder %s110, %s111
    %p123 = scmp.eq.s32.totalorder %s17, 1
    %p124 = por %p122, %p123
    %p126 = scmp.ne.s32.totalorder %s111, %s125
    %p127 = scmp.eq.s32.totalorder %s17, 0
    %p128 = por %p126, %p127
    %s129 = ssub.s32 %s11, %s18
    %p130 = scmp.eq.s32.totalorder %s129, 0
    %s132 = sadd.s32 %s131, 1
    %s133 = scalar_select %p130, %s131, %s132
    %p136 = pneg %p130
    %p137 = scmp.eq.s32.totalorder %s11, 1
    %p138 = por %p136, %p137
    %p139 = scmp.ne.s32.totalorder %s131, %s134
    %p140 = scmp.eq.s32.totalorder %s11, 0
    %p141 = por %p139, %p140
    %p142 = scmp.ne.s32.totalorder %s131, %s134
    %p143 = scmp.eq.s32.totalorder %s16, 1
    %p144 = por %p142, %p143
    %p145 = scmp.ne.s32.totalorder %s134, %s135
    %p146 = scmp.eq.s32.totalorder %s16, 0
    %p147 = por %p145, %p146
    %p148 = scmp.ne.s32.totalorder %s134, %s135
    %p149 = scmp.eq.s32.totalorder %s17, 1
    %p150 = por %p148, %p149
    %p152 = scmp.ne.s32.totalorder %s135, %s151
    %p153 = scmp.eq.s32.totalorder %s17, 0
    %p154 = por %p152, %p153
    %p155 = scmp.le.s32.totalorder 1, %s11
    %p156 = scmp.lt.s32.totalorder %s11, 3
    %p157 = pnand %p155, %p156
    %p158 = pneg %p157
    // Predicated region
    $region9: #{tpu_custom_call.1} parent=5 // pred_check
      _
    $region10: #{tpu_custom_call.1} parent=5 // pred_check_branch
      %160 = sbr.rel (%p157) target = $region12
    $region11: #{tpu_custom_call.1} parent=5 // pred_region
      %s161 = ssub.s32 %s11, 1
      // Predicated region
      $region13: #{tpu_custom_call.1} parent=11 // pred_check
        %p162 = pneg %p58
      $region14: #{tpu_custom_call.1} parent=11 // pred_check_branch
        %164 = sbr.rel (%p162) target = $region16
      $region15: #{tpu_custom_call.1} parent=11 // pred_region
        _
      $region16: #{tpu_custom_call.1} parent=11 // pred_fallthru
        _
      // Predicated region
      $region17: #{tpu_custom_call.1} parent=11 // pred_check
        %p165 = pneg %p79
      $region18: #{tpu_custom_call.1} parent=11 // pred_check_branch
        %167 = sbr.rel (%p165) target = $region20
      $region19: #{tpu_custom_call.1} parent=11 // pred_region
        _
      $region20: #{tpu_custom_call.1} parent=11 // pred_fallthru
        _
      // Predicated region
      $region21: #{tpu_custom_call.1} parent=11 // pred_check
        %p168 = pneg %p100
      $region22: #{tpu_custom_call.1} parent=11 // pred_check_branch
        %170 = sbr.rel (%p168) target = $region24
      $region23: #{tpu_custom_call.1} parent=11 // pred_region
        _
      $region24: #{tpu_custom_call.1} parent=11 // pred_fallthru
        _
      // Predicated region
      $region25: #{tpu_custom_call.1} parent=11 // pred_check
        %p171 = pneg %p121
      $region26: #{tpu_custom_call.1} parent=11 // pred_check_branch
        %173 = sbr.rel (%p171) target = $region28
      $region27: #{tpu_custom_call.1} parent=11 // pred_region
        _
      $region28: #{tpu_custom_call.1} parent=11 // pred_fallthru
        _
    $region12: #{tpu_custom_call.1} parent=5 // pred_fallthru
      _
    %p174 = scmp.lt.s32.totalorder %s11, 2
    // Predicated region
    $region29: #{tpu_custom_call.1} parent=5 // pred_check
      %p175 = pneg %p174
    $region30: #{tpu_custom_call.1} parent=5 // pred_check_branch
      %177 = sbr.rel (%p175) target = $region32
    $region31: #{tpu_custom_call.1} parent=5 // pred_region
      // Predicated region
      $region33: #{tpu_custom_call.1} parent=31 // pred_check
        %p178 = pneg %p31
      $region34: #{tpu_custom_call.1} parent=31 // pred_check_branch
        %180 = sbr.rel (%p178) target = $region36
      $region35: #{tpu_custom_call.1} parent=31 // pred_region
        %p181 = scmp.lt.s32.totalorder %s11, 1
        %s182 = scalar_select %p181, %s11, 1
        %s183 = smul.addr %s182, 14
        %s184 = smul.addr %s183, 4
        %s185 = scalar_lea.vmem %s0, %s184
      $region36: #{tpu_custom_call.1} parent=31 // pred_fallthru
        _
    $region32: #{tpu_custom_call.1} parent=5 // pred_fallthru
      _
    %p186 = scmp.le.s32.totalorder 1, %s11
    %p187 = scmp.lt.s32.totalorder %s11, 3
    %p188 = pnand %p186, %p187
    %p189 = pneg %p188
    // Predicated region
    $region37: #{tpu_custom_call.1} parent=5 // pred_check
      _
    $region38: #{tpu_custom_call.1} parent=5 // pred_check_branch
      %191 = sbr.rel (%p188) target = $region40
    $region39: #{tpu_custom_call.1} parent=5 // pred_region
      %s192 = ssub.s32 %s11, 1
      %p193 = scmp.lt.s32.totalorder %s16, 1
      %s194 = scalar_select %p193, %s16, 1
      %s195 = smul.addr %s194, 14
      %s196 = smul.addr %s195, 4
      %s197 = scalar_lea.vmem %s0, %s196
      %p198 = pneg %p37
      %p199 = pneg %p34
      %p200 = pneg %p58
      %p201 = pneg %p55
      %p202 = pneg %p79
      %p203 = pneg %p76
      %p204 = pneg %p100
      %p205 = pneg %p97
      %p206 = pneg %p121
      %p207 = pneg %p118
      %p208 = pneg %p147
      %p209 = pneg %p144
      %p210 = scmp.lt.s32.totalorder %s16, 1
      %s211 = scalar_select %p210, %s16, 1
      %s212 = smul.addr %s211, 8
      %s213 = smul.addr %s212, 8
      %s214 = scalar_lea.vmem %s5, %s213
      %p215 = scmp.lt.s32.totalorder %s16, 1
      %s216 = scalar_select %p215, %s16, 1
      %s217 = smul.addr %s216, 14
      %s218 = smul.addr %s217, 4
      %s219 = scalar_lea.vmem %s0, %s218
      %p220 = scmp.lt.s32.totalorder %s16, 1
      %s221 = scalar_select %p220, %s16, 1
      %s222 = smul.addr %s221, 8
      %s223 = smul.addr %s222, 8
      %s224 = scalar_lea.vmem %s5, %s223
      %v226 = vld [vmem:[%s219] sm:$0xf]
      %v227 = vld [vmem:[%s219 + $0x4] sm:$0xf]
      %v228 = vld [vmem:[%s219 + $0x8] sm:$0xf]
      %v229 = vld [vmem:[%s219 + $0xc] sm:$0xf]
      %v230 = vld [vmem:[%s219 + $0x10] sm:$0xf]
      %v231 = vld [vmem:[%s219 + $0x14] sm:$0xf]
      %v232 = vld [vmem:[%s219 + $0x18] sm:$0xf]
      %v233 = vld [vmem:[%s219 + $0x1c] sm:$0xf]
      %v234 = vld [vmem:[%s219 + $0x20] sm:$0xf]
      %v235 = vld [vmem:[%s219 + $0x24] sm:$0xf]
      %v236 = vld [vmem:[%s219 + $0x28] sm:$0xf]
      %v237 = vld [vmem:[%s219 + $0x2c] sm:$0xf]
      %vm238 = vcmask 125952
      %239 = vst.msk [vmem:[#allocation2] sm:$0xf] %vm238, %v226
      %240 = vst.msk [vmem:[#allocation2 + $0x4] sm:$0xf] %vm238, %v227
      %241 = vst.msk [vmem:[#allocation2 + $0x8] sm:$0xf] %vm238, %v228
      %242 = vst.msk [vmem:[#allocation2 + $0xc] sm:$0xf] %vm238, %v229
      %243 = vst.msk [vmem:[#allocation2 + $0x10] sm:$0xf] %vm238, %v230
      %244 = vst.msk [vmem:[#allocation2 + $0x14] sm:$0xf] %vm238, %v231
      %245 = vst.msk [vmem:[#allocation2 + $0x18] sm:$0xf] %vm238, %v232
      %246 = vst.msk [vmem:[#allocation2 + $0x1c] sm:$0xf] %vm238, %v233
      %247 = vst.msk [vmem:[#allocation2 + $0x20] sm:$0xf] %vm238, %v234
      %248 = vst.msk [vmem:[#allocation2 + $0x24] sm:$0xf] %vm238, %v235
      %249 = vst.msk [vmem:[#allocation2 + $0x28] sm:$0xf] %vm238, %v236
      %250 = vst.msk [vmem:[#allocation2 + $0x2c] sm:$0xf] %vm238, %v237
      %v251 = vld [vmem:[%s219] sm:$0xf]
      %v252 = vld [vmem:[%s219 + $0x4] sm:$0xf]
      %v253 = vld [vmem:[%s219 + $0x8] sm:$0xf]
      %v254 = vld [vmem:[%s219 + $0xc] sm:$0xf]
      %v255 = vld [vmem:[%s219 + $0x10] sm:$0xf]
      %v256 = vld [vmem:[%s219 + $0x14] sm:$0xf]
      %v257 = vld [vmem:[%s219 + $0x18] sm:$0xf]
      %v258 = vld [vmem:[%s219 + $0x1c] sm:$0xf]
      %v259 = vld [vmem:[%s219 + $0x20] sm:$0xf]
      %v260 = vld [vmem:[%s219 + $0x24] sm:$0xf]
      %v261 = vld [vmem:[%s219 + $0x28] sm:$0xf]
      %v262 = vld [vmem:[%s219 + $0x2c] sm:$0xf]
      %v263 = vld [vmem:[%s219 + $0x30] sm:$0x1]
      %vm264 = vsmask.f32 3328
      %vm265 = vsmask.f32 7440
      %vm266 = vmor %vm264, %vm265
      %v268 = vshrl.u32 %v251, 16
      %v270 = vrot.slane %v268, 4
      %v271 = vshll.u32 %v251, 16
      %v273 = vrot.slane %v271, 5
      %v274 = vor.u32 %v270, %v273
      %v275 = vrot.slane %v274, 4
      %v277 = vshll.u32 %v252, 16
      %v279 = vrot.slane %v277, 5
      %v280 = vsel %vm266, %v275, %v279
      %v281 = vshrl.u32 %v252, 16
      %v283 = vrot.slane %v281, 4
      %v284 = vor.u32 %v283, %v279
      %v285 = vrot.slane %v284, 4
      %v287 = vshll.u32 %v253, 16
      %v289 = vrot.slane %v287, 5
      %v290 = vsel %vm266, %v285, %v289
      %v291 = vshrl.u32 %v253, 16
      %v293 = vrot.slane %v291, 4
      %v294 = vor.u32 %v293, %v289
      %v295 = vrot.slane %v294, 4
      %v297 = vshll.u32 %v254, 16
      %v299 = vrot.slane %v297, 5
      %v300 = vsel %vm266, %v295, %v299
      %v301 = vshrl.u32 %v254, 16
      %v303 = vrot.slane %v301, 4
      %v304 = vor.u32 %v303, %v299
      %v305 = vrot.slane %v304, 4
      %v307 = vshll.u32 %v255, 16
      %v309 = vrot.slane %v307, 5
      %v310 = vsel %vm266, %v305, %v309
      %v311 = vshrl.u32 %v255, 16
      %v313 = vrot.slane %v311, 4
      %v314 = vor.u32 %v313, %v309
      %v315 = vrot.slane %v314, 4
      %v317 = vshll.u32 %v256, 16
      %v319 = vrot.slane %v317, 5
      %v320 = vsel %vm266, %v315, %v319
      %v321 = vshrl.u32 %v256, 16
      %v323 = vrot.slane %v321, 4
      %v324 = vor.u32 %v323, %v319
      %v325 = vrot.slane %v324, 4
      %v327 = vshll.u32 %v257, 16
      %v329 = vrot.slane %v327, 5
      %v330 = vsel %vm266, %v325, %v329
      %v331 = vshrl.u32 %v257, 16
      %v333 = vrot.slane %v331, 4
      %v334 = vor.u32 %v333, %v329
      %v335 = vrot.slane %v334, 4
      %v337 = vshll.u32 %v258, 16
      %v339 = vrot.slane %v337, 5
      %v340 = vsel %vm266, %v335, %v339
      %v341 = vshrl.u32 %v258, 16
      %v343 = vrot.slane %v341, 4
      %v344 = vor.u32 %v343, %v339
      %v345 = vrot.slane %v344, 4
      %v347 = vshll.u32 %v259, 16
      %v349 = vrot.slane %v347, 5
      %v350 = vsel %vm266, %v345, %v349
      %v351 = vshrl.u32 %v259, 16
      %v353 = vrot.slane %v351, 4
      %v354 = vor.u32 %v353, %v349
      %v355 = vrot.slane %v354, 4
      %v357 = vshll.u32 %v260, 16
      %v359 = vrot.slane %v357, 5
      %v360 = vsel %vm266, %v355, %v359
      %v361 = vshrl.u32 %v260, 16
      %v363 = vrot.slane %v361, 4
      %v364 = vor.u32 %v363, %v359
      %v365 = vrot.slane %v364, 4
      %v367 = vshll.u32 %v261, 16
      %v369 = vrot.slane %v367, 5
      %v370 = vsel %vm266, %v365, %v369
      %v371 = vshrl.u32 %v261, 16
      %v373 = vrot.slane %v371, 4
      %v374 = vor.u32 %v373, %v369
      %v375 = vrot.slane %v374, 4
      %v377 = vshll.u32 %v262, 16
      %v379 = vrot.slane %v377, 5
      %v380 = vsel %vm266, %v375, %v379
      %v381 = vshrl.u32 %v262, 16
      %v383 = vrot.slane %v381, 4
      %v384 = vor.u32 %v383, %v379
      %v385 = vrot.slane %v384, 4
      %v387 = vshll.u32 %v263, 16
      %v389 = vrot.slane %v387, 5
      %v390 = vsel %vm266, %v385, %v389
      %s403 = scalar_lea.vmem [#allocation2], 48
      %404 = vst.msk [vmem:[%s403] sm:$0xf] %vm238, %v280
      %405 = vst.msk [vmem:[%s403 + $0x4] sm:$0xf] %vm238, %v290
      %406 = vst.msk [vmem:[%s403 + $0x8] sm:$0xf] %vm238, %v300
      %407 = vst.msk [vmem:[%s403 + $0xc] sm:$0xf] %vm238, %v310
      %408 = vst.msk [vmem:[%s403 + $0x10] sm:$0xf] %vm238, %v320
      %409 = vst.msk [vmem:[%s403 + $0x14] sm:$0xf] %vm238, %v330
      %410 = vst.msk [vmem:[%s403 + $0x18] sm:$0xf] %vm238, %v340
      %411 = vst.msk [vmem:[%s403 + $0x1c] sm:$0xf] %vm238, %v350
      %412 = vst.msk [vmem:[%s403 + $0x20] sm:$0xf] %vm238, %v360
      %413 = vst.msk [vmem:[%s403 + $0x24] sm:$0xf] %vm238, %v370
      %414 = vst.msk [vmem:[%s403 + $0x28] sm:$0xf] %vm238, %v380
      %415 = vst.msk [vmem:[%s403 + $0x2c] sm:$0xf] %vm238, %v390
      %v416 = vld [vmem:[%s219] sm:$0xe]
      %v417 = vld [vmem:[%s219 + $0x4] sm:$0xf]
      %v418 = vld [vmem:[%s219 + $0x8] sm:$0xf]
      %v419 = vld [vmem:[%s219 + $0xc] sm:$0xf]
      %v420 = vld [vmem:[%s219 + $0x10] sm:$0xf]
      %v421 = vld [vmem:[%s219 + $0x14] sm:$0xf]
      %v422 = vld [vmem:[%s219 + $0x18] sm:$0xf]
      %v423 = vld [vmem:[%s219 + $0x1c] sm:$0xf]
      %v424 = vld [vmem:[%s219 + $0x20] sm:$0xf]
      %v425 = vld [vmem:[%s219 + $0x24] sm:$0xf]
      %v426 = vld [vmem:[%s219 + $0x28] sm:$0xf]
      %v427 = vld [vmem:[%s219 + $0x2c] sm:$0xf]
      %v428 = vld [vmem:[%s219 + $0x30] sm:$0x1]
      %vm442 = vcmask 1042432
      %vm443 = vcmask 1046532
      %vm444 = vmor %vm442, %vm443
      %v445 = vrot.slane %v416, 5
      %v446 = vrot.slane %v445, 4
      %v447 = vrot.slane %v417, 5
      %v448 = vsel %vm444, %v446, %v447
      %v449 = vrot.slane %v447, 4
      %v450 = vrot.slane %v418, 5
      %v451 = vsel %vm444, %v449, %v450
      %v452 = vrot.slane %v450, 4
      %v453 = vrot.slane %v419, 5
      %v454 = vsel %vm444, %v452, %v453
      %v455 = vrot.slane %v453, 4
      %v456 = vrot.slane %v420, 5
      %v457 = vsel %vm444, %v455, %v456
      %v458 = vrot.slane %v456, 4
      %v459 = vrot.slane %v421, 5
      %v460 = vsel %vm444, %v458, %v459
      %v461 = vrot.slane %v459, 4
      %v462 = vrot.slane %v422, 5
      %v463 = vsel %vm444, %v461, %v462
      %v464 = vrot.slane %v462, 4
      %v465 = vrot.slane %v423, 5
      %v466 = vsel %vm444, %v464, %v465
      %v467 = vrot.slane %v465, 4
      %v468 = vrot.slane %v424, 5
      %v469 = vsel %vm444, %v467, %v468
      %v470 = vrot.slane %v468, 4
      %v471 = vrot.slane %v425, 5
      %v472 = vsel %vm444, %v470, %v471
      %v473 = vrot.slane %v471, 4
      %v474 = vrot.slane %v426, 5
      %v475 = vsel %vm444, %v473, %v474
      %v476 = vrot.slane %v474, 4
      %v477 = vrot.slane %v427, 5
      %v478 = vsel %vm444, %v476, %v477
      %v479 = vrot.slane %v477, 4
      %v480 = vrot.slane %v428, 5
      %v481 = vsel %vm444, %v479, %v480
      %s494 = scalar_lea.vmem [#allocation2], 96
      %495 = vst.msk [vmem:[%s494] sm:$0xf] %vm238, %v448
      %496 = vst.msk [vmem:[%s494 + $0x4] sm:$0xf] %vm238, %v451
      %497 = vst.msk [vmem:[%s494 + $0x8] sm:$0xf] %vm238, %v454
      %498 = vst.msk [vmem:[%s494 + $0xc] sm:$0xf] %vm238, %v457
      %499 = vst.msk [vmem:[%s494 + $0x10] sm:$0xf] %vm238, %v460
      %500 = vst.msk [vmem:[%s494 + $0x14] sm:$0xf] %vm238, %v463
      %501 = vst.msk [vmem:[%s494 + $0x18] sm:$0xf] %vm238, %v466
      %502 = vst.msk [vmem:[%s494 + $0x1c] sm:$0xf] %vm238, %v469
      %503 = vst.msk [vmem:[%s494 + $0x20] sm:$0xf] %vm238, %v472
      %504 = vst.msk [vmem:[%s494 + $0x24] sm:$0xf] %vm238, %v475
      %505 = vst.msk [vmem:[%s494 + $0x28] sm:$0xf] %vm238, %v478
      %506 = vst.msk [vmem:[%s494 + $0x2c] sm:$0xf] %vm238, %v481
      %v507 = vld [vmem:[#allocation2] sm:$0xf]
      %v508 = vld [vmem:[#allocation2 + $0x4] sm:$0xf]
      %v509 = vld [vmem:[#allocation2 + $0x8] sm:$0xf]
      %v510 = vld [vmem:[#allocation2 + $0xc] sm:$0xf]
      %v511 = vld [vmem:[#allocation2 + $0x10] sm:$0xf]
      %v512 = vld [vmem:[#allocation2 + $0x14] sm:$0xf]
      %v513 = vld [vmem:[#allocation2 + $0x18] sm:$0xf]
      %v514 = vld [vmem:[#allocation2 + $0x1c] sm:$0xf]
      %v515 = vld [vmem:[%s1] sm:$0xf]
      %v516 = vld [vmem:[%s1 + $0x4] sm:$0xf]
      %v517 = vld [vmem:[%s403] sm:$0xf]
      %v518 = vld [vmem:[%s403 + $0x4] sm:$0xf]
      %v519 = vld [vmem:[%s403 + $0x8] sm:$0xf]
      %v520 = vld [vmem:[%s403 + $0xc] sm:$0xf]
      %v521 = vld [vmem:[%s403 + $0x10] sm:$0xf]
      %v522 = vld [vmem:[%s403 + $0x14] sm:$0xf]
      %v523 = vld [vmem:[%s403 + $0x18] sm:$0xf]
      %v524 = vld [vmem:[%s403 + $0x1c] sm:$0xf]
      %s525 = scalar_lea.vmem %s1, 8
      %v526 = vld [vmem:[%s525] sm:$0xf]
      %v527 = vld [vmem:[%s525 + $0x4] sm:$0xf]
      %v536 = vunpack.c.l.b16 %v517
      %v537 = vunpack.c.l.b16 %v518
      %v538 = vunpack.c.l.b16 %v519
      %v539 = vunpack.c.l.b16 %v520
      %v540 = vunpack.c.l.b16 %v521
      %v541 = vunpack.c.l.b16 %v522
      %v542 = vunpack.c.l.b16 %v523
      %v543 = vunpack.c.l.b16 %v524
      %v544 = vpack.c.b16 %v537, %v536
      %v545 = vpack.c.b16 %v539, %v538
      %v546 = vpack.c.b16 %v541, %v540
      %v547 = vpack.c.b16 %v543, %v542
      %v550 = vunpack.c.l.b16 %v526
      %v551 = vunpack.c.l.b16 %v527
      %v552 = vpack.c.b16 %v551, %v550
      %vm554 = vcmask 130048
      %v556 = vsel %vm554, %v544, 0
      %v559 = vsel %vm554, %v545, 0
      %v562 = vsel %vm554, %v546, 0
      %v565 = vsel %vm554, %v547, 0
      %567 = vmatpush.bf16.msra.mxu0 0
      %568 = vmatpush.bf16.msra.mxu0 0
      %569 = vmatpush.bf16.msra.mxu0 0
      %570 = vmatpush.bf16.msra.mxu0 0
      %571 = vmatpush.bf16.msra.mxu0 0
      %572 = vmatpush.bf16.msra.mxu0 0
      %573 = vmatpush.bf16.msra.mxu0 0
      %574 = vmatpush.bf16.msra.mxu0 %v552
      %575 = vmatmul.bf16.gmra.mxu0 %v556
      %v576 = vpop.f32.mrf.mxu0
      %v577 = vadd.f32 0.0, %v576
      %v578 = vpop.f32.mrf.mxu0
      %v579 = vadd.f32 0.0, %v578
      %580 = vmatmul.bf16.gmra.mxu0 %v559
      %v581 = vpop.f32.mrf.mxu0
      %v582 = vadd.f32 0.0, %v581
      %v583 = vpop.f32.mrf.mxu0
      %v584 = vadd.f32 0.0, %v583
      %585 = vmatmul.bf16.gmra.mxu0 %v562
      %v586 = vpop.f32.mrf.mxu0
      %v587 = vadd.f32 0.0, %v586
      %v588 = vpop.f32.mrf.mxu0
      %v589 = vadd.f32 0.0, %v588
      %590 = vmatmul.bf16.gmra.mxu0 %v565
      %v591 = vpop.f32.mrf.mxu0
      %v592 = vadd.f32 0.0, %v591
      %v593 = vpop.f32.mrf.mxu0
      %v594 = vadd.f32 0.0, %v593
      %595 = vdwg.mxu0
      %v604 = vunpack.c.l.b16 %v507
      %v605 = vunpack.c.l.b16 %v508
      %v606 = vunpack.c.l.b16 %v509
      %v607 = vunpack.c.l.b16 %v510
      %v608 = vunpack.c.l.b16 %v511
      %v609 = vunpack.c.l.b16 %v512
      %v610 = vunpack.c.l.b16 %v513
      %v611 = vunpack.c.l.b16 %v514
      %v612 = vpack.c.b16 %v605, %v604
      %v613 = vpack.c.b16 %v607, %v606
      %v614 = vpack.c.b16 %v609, %v608
      %v615 = vpack.c.b16 %v611, %v610
      %v618 = vunpack.c.l.b16 %v515
      %v619 = vunpack.c.l.b16 %v516
      %v620 = vpack.c.b16 %v619, %v618
      %v623 = vsel %vm554, %v612, 0
      %v626 = vsel %vm554, %v613, 0
      %v629 = vsel %vm554, %v614, 0
      %v632 = vsel %vm554, %v615, 0
      %634 = vmatpush.bf16.msra.mxu0 0
      %635 = vmatpush.bf16.msra.mxu0 0
      %636 = vmatpush.bf16.msra.mxu0 0
      %637 = vmatpush.bf16.msra.mxu0 0
      %638 = vmatpush.bf16.msra.mxu0 0
      %639 = vmatpush.bf16.msra.mxu0 0
      %640 = vmatpush.bf16.msra.mxu0 0
      %641 = vmatpush.bf16.msra.mxu0 %v620
      %642 = vmatmul.bf16.gmra.mxu0 %v623
      %v643 = vpop.f32.mrf.mxu0
      %v644 = vadd.f32 %v577, %v643
      %v645 = vpop.f32.mrf.mxu0
      %v646 = vadd.f32 %v579, %v645
      %647 = vmatmul.bf16.gmra.mxu0 %v626
      %v648 = vpop.f32.mrf.mxu0
      %v649 = vadd.f32 %v582, %v648
      %v650 = vpop.f32.mrf.mxu0
      %v651 = vadd.f32 %v584, %v650
      %652 = vmatmul.bf16.gmra.mxu0 %v629
      %v653 = vpop.f32.mrf.mxu0
      %v654 = vadd.f32 %v587, %v653
      %v655 = vpop.f32.mrf.mxu0
      %v656 = vadd.f32 %v589, %v655
      %657 = vmatmul.bf16.gmra.mxu0 %v632
      %v658 = vpop.f32.mrf.mxu0
      %v659 = vadd.f32 %v592, %v658
      %v660 = vpop.f32.mrf.mxu0
      %v661 = vadd.f32 %v594, %v660
      %662 = vdwg.mxu0
      %v663 = vld [vmem:[%s494] sm:$0xf]
      %v664 = vld [vmem:[%s494 + $0x4] sm:$0xf]
      %v665 = vld [vmem:[%s494 + $0x8] sm:$0xf]
      %v666 = vld [vmem:[%s494 + $0xc] sm:$0xf]
      %v667 = vld [vmem:[%s494 + $0x10] sm:$0xf]
      %v668 = vld [vmem:[%s494 + $0x14] sm:$0xf]
      %v669 = vld [vmem:[%s494 + $0x18] sm:$0xf]
      %v670 = vld [vmem:[%s494 + $0x1c] sm:$0xf]
      %s671 = scalar_lea.vmem %s1, 16
      %v672 = vld [vmem:[%s671] sm:$0xf]
      %v673 = vld [vmem:[%s671 + $0x4] sm:$0xf]
      %v682 = vunpack.c.l.b16 %v663
      %v683 = vunpack.c.l.b16 %v664
      %v684 = vunpack.c.l.b16 %v665
      %v685 = vunpack.c.l.b16 %v666
      %v686 = vunpack.c.l.b16 %v667
      %v687 = vunpack.c.l.b16 %v668
      %v688 = vunpack.c.l.b16 %v669
      %v689 = vunpack.c.l.b16 %v670
      %v690 = vpack.c.b16 %v683, %v682
      %v691 = vpack.c.b16 %v685, %v684
      %v692 = vpack.c.b16 %v687, %v686
      %v693 = vpack.c.b16 %v689, %v688
      %v696 = vunpack.c.l.b16 %v672
      %v697 = vunpack.c.l.b16 %v673
      %v698 = vpack.c.b16 %v697, %v696
      %v701 = vsel %vm554, %v690, 0
      %v704 = vsel %vm554, %v691, 0
      %v707 = vsel %vm554, %v692, 0
      %v710 = vsel %vm554, %v693, 0
      %712 = vmatpush.bf16.msra.mxu0 0
      %713 = vmatpush.bf16.msra.mxu0 0
      %714 = vmatpush.bf16.msra.mxu0 0
      %715 = vmatpush.bf16.msra.mxu0 0
      %716 = vmatpush.bf16.msra.mxu0 0
      %717 = vmatpush.bf16.msra.mxu0 0
      %718 = vmatpush.bf16.msra.mxu0 0
      %719 = vmatpush.bf16.msra.mxu0 %v698
      %720 = vmatmul.bf16.gmra.mxu0 %v701
      %v721 = vpop.f32.mrf.mxu0
      %v722 = vadd.f32 0.0, %v721
      %v723 = vpop.f32.mrf.mxu0
      %v724 = vadd.f32 0.0, %v723
      %725 = vmatmul.bf16.gmra.mxu0 %v704
      %v726 = vpop.f32.mrf.mxu0
      %v727 = vadd.f32 0.0, %v726
      %v728 = vpop.f32.mrf.mxu0
      %v729 = vadd.f32 0.0, %v728
      %730 = vmatmul.bf16.gmra.mxu0 %v707
      %v731 = vpop.f32.mrf.mxu0
      %v732 = vadd.f32 0.0, %v731
      %v733 = vpop.f32.mrf.mxu0
      %v734 = vadd.f32 0.0, %v733
      %735 = vmatmul.bf16.gmra.mxu0 %v710
      %v736 = vpop.f32.mrf.mxu0
      %v737 = vadd.f32 0.0, %v736
      %v738 = vpop.f32.mrf.mxu0
      %v739 = vadd.f32 0.0, %v738
      %740 = vdwg.mxu0
      %v741 = vadd.f32 %v644, %v722
      %v742 = vadd.f32 %v646, %v724
      %v743 = vadd.f32 %v649, %v727
      %v744 = vadd.f32 %v651, %v729
      %v745 = vadd.f32 %v654, %v732
      %v746 = vadd.f32 %v656, %v734
      %v747 = vadd.f32 %v659, %v737
      %v748 = vadd.f32 %v661, %v739
      %v749 = vld [vmem:[#allocation2 + $0x8] sm:$0xf]
      %v750 = vld [vmem:[#allocation2 + $0xc] sm:$0xf]
      %v751 = vld [vmem:[#allocation2 + $0x10] sm:$0xf]
      %v752 = vld [vmem:[#allocation2 + $0x14] sm:$0xf]
      %v753 = vld [vmem:[#allocation2 + $0x18] sm:$0xf]
      %v754 = vld [vmem:[#allocation2 + $0x1c] sm:$0xf]
      %v755 = vld [vmem:[#allocation2 + $0x20] sm:$0xf]
      %v756 = vld [vmem:[#allocation2 + $0x24] sm:$0xf]
      %s757 = scalar_lea.vmem %s1, 24
      %v758 = vld [vmem:[%s757] sm:$0xf]
      %v759 = vld [vmem:[%s757 + $0x4] sm:$0xf]
      %v768 = vunpack.c.l.b16 %v749
      %v769 = vunpack.c.l.b16 %v750
      %v770 = vunpack.c.l.b16 %v751
      %v771 = vunpack.c.l.b16 %v752
      %v772 = vunpack.c.l.b16 %v753
      %v773 = vunpack.c.l.b16 %v754
      %v774 = vunpack.c.l.b16 %v755
      %v775 = vunpack.c.l.b16 %v756
      %v776 = vpack.c.b16 %v769, %v768
      %v777 = vpack.c.b16 %v771, %v770
      %v778 = vpack.c.b16 %v773, %v772
      %v779 = vpack.c.b16 %v775, %v774
      %v782 = vunpack.c.l.b16 %v758
      %v783 = vunpack.c.l.b16 %v759
      %v784 = vpack.c.b16 %v783, %v782
      %v787 = vsel %vm554, %v776, 0
      %v790 = vsel %vm554, %v777, 0
      %v793 = vsel %vm554, %v778, 0
      %v796 = vsel %vm554, %v779, 0
      %798 = vmatpush.bf16.msra.mxu0 0
      %799 = vmatpush.bf16.msra.mxu0 0
      %800 = vmatpush.bf16.msra.mxu0 0
      %801 = vmatpush.bf16.msra.mxu0 0
      %802 = vmatpush.bf16.msra.mxu0 0
      %803 = vmatpush.bf16.msra.mxu0 0
      %804 = vmatpush.bf16.msra.mxu0 0
      %805 = vmatpush.bf16.msra.mxu0 %v784
      %806 = vmatmul.bf16.gmra.mxu0 %v787
      %v807 = vpop.f32.mrf.mxu0
      %v808 = vadd.f32 0.0, %v807
      %v809 = vpop.f32.mrf.mxu0
      %v810 = vadd.f32 0.0, %v809
      %811 = vmatmul.bf16.gmra.mxu0 %v790
      %v812 = vpop.f32.mrf.mxu0
      %v813 = vadd.f32 0.0, %v812
      %v814 = vpop.f32.mrf.mxu0
      %v815 = vadd.f32 0.0, %v814
      %816 = vmatmul.bf16.gmra.mxu0 %v793
      %v817 = vpop.f32.mrf.mxu0
      %v818 = vadd.f32 0.0, %v817
      %v819 = vpop.f32.mrf.mxu0
      %v820 = vadd.f32 0.0, %v819
      %821 = vmatmul.bf16.gmra.mxu0 %v796
      %v822 = vpop.f32.mrf.mxu0
      %v823 = vadd.f32 0.0, %v822
      %v824 = vpop.f32.mrf.mxu0
      %v825 = vadd.f32 0.0, %v824
      %826 = vdwg.mxu0
      %v827 = vadd.f32 %v741, %v808
      %v828 = vadd.f32 %v742, %v810
      %v829 = vadd.f32 %v743, %v813
      %v830 = vadd.f32 %v744, %v815
      %v831 = vadd.f32 %v745, %v818
      %v832 = vadd.f32 %v746, %v820
      %v833 = vadd.f32 %v747, %v823
      %v834 = vadd.f32 %v748, %v825
      %v835 = vld [vmem:[%s403 + $0x8] sm:$0xf]
      %v836 = vld [vmem:[%s403 + $0xc] sm:$0xf]
      %v837 = vld [vmem:[%s403 + $0x10] sm:$0xf]
      %v838 = vld [vmem:[%s403 + $0x14] sm:$0xf]
      %v839 = vld [vmem:[%s403 + $0x18] sm:$0xf]
      %v840 = vld [vmem:[%s403 + $0x1c] sm:$0xf]
      %v841 = vld [vmem:[%s403 + $0x20] sm:$0xf]
      %v842 = vld [vmem:[%s403 + $0x24] sm:$0xf]
      %s843 = scalar_lea.vmem %s1, 32
      %v844 = vld [vmem:[%s843] sm:$0xf]
      %v845 = vld [vmem:[%s843 + $0x4] sm:$0xf]
      %v854 = vunpack.c.l.b16 %v835
      %v855 = vunpack.c.l.b16 %v836
      %v856 = vunpack.c.l.b16 %v837
      %v857 = vunpack.c.l.b16 %v838
      %v858 = vunpack.c.l.b16 %v839
      %v859 = vunpack.c.l.b16 %v840
      %v860 = vunpack.c.l.b16 %v841
      %v861 = vunpack.c.l.b16 %v842
      %v862 = vpack.c.b16 %v855, %v854
      %v863 = vpack.c.b16 %v857, %v856
      %v864 = vpack.c.b16 %v859, %v858
      %v865 = vpack.c.b16 %v861, %v860
      %v868 = vunpack.c.l.b16 %v844
      %v869 = vunpack.c.l.b16 %v845
      %v870 = vpack.c.b16 %v869, %v868
      %v873 = vsel %vm554, %v862, 0
      %v876 = vsel %vm554, %v863, 0
      %v879 = vsel %vm554, %v864, 0
      %v882 = vsel %vm554, %v865, 0
      %884 = vmatpush.bf16.msra.mxu0 0
      %885 = vmatpush.bf16.msra.mxu0 0
      %886 = vmatpush.bf16.msra.mxu0 0
      %887 = vmatpush.bf16.msra.mxu0 0
      %888 = vmatpush.bf16.msra.mxu0 0
      %889 = vmatpush.bf16.msra.mxu0 0
      %890 = vmatpush.bf16.msra.mxu0 0
      %891 = vmatpush.bf16.msra.mxu0 %v870
      %892 = vmatmul.bf16.gmra.mxu0 %v873
      %v893 = vpop.f32.mrf.mxu0
      %v894 = vadd.f32 0.0, %v893
      %v895 = vpop.f32.mrf.mxu0
      %v896 = vadd.f32 0.0, %v895
      %897 = vmatmul.bf16.gmra.mxu0 %v876
      %v898 = vpop.f32.mrf.mxu0
      %v899 = vadd.f32 0.0, %v898
      %v900 = vpop.f32.mrf.mxu0
      %v901 = vadd.f32 0.0, %v900
      %902 = vmatmul.bf16.gmra.mxu0 %v879
      %v903 = vpop.f32.mrf.mxu0
      %v904 = vadd.f32 0.0, %v903
      %v905 = vpop.f32.mrf.mxu0
      %v906 = vadd.f32 0.0, %v905
      %907 = vmatmul.bf16.gmra.mxu0 %v882
      %v908 = vpop.f32.mrf.mxu0
      %v909 = vadd.f32 0.0, %v908
      %v910 = vpop.f32.mrf.mxu0
      %v911 = vadd.f32 0.0, %v910
      %912 = vdwg.mxu0
      %v913 = vadd.f32 %v827, %v894
      %v914 = vadd.f32 %v828, %v896
      %v915 = vadd.f32 %v829, %v899
      %v916 = vadd.f32 %v830, %v901
      %v917 = vadd.f32 %v831, %v904
      %v918 = vadd.f32 %v832, %v906
      %v919 = vadd.f32 %v833, %v909
      %v920 = vadd.f32 %v834, %v911
      %v921 = vld [vmem:[%s494 + $0x8] sm:$0xf]
      %v922 = vld [vmem:[%s494 + $0xc] sm:$0xf]
      %v923 = vld [vmem:[%s494 + $0x10] sm:$0xf]
      %v924 = vld [vmem:[%s494 + $0x14] sm:$0xf]
      %v925 = vld [vmem:[%s494 + $0x18] sm:$0xf]
      %v926 = vld [vmem:[%s494 + $0x1c] sm:$0xf]
      %v927 = vld [vmem:[%s494 + $0x20] sm:$0xf]
      %v928 = vld [vmem:[%s494 + $0x24] sm:$0xf]
      %s929 = scalar_lea.vmem %s1, 40
      %v930 = vld [vmem:[%s929] sm:$0xf]
      %v931 = vld [vmem:[%s929 + $0x4] sm:$0xf]
      %v940 = vunpack.c.l.b16 %v921
      %v941 = vunpack.c.l.b16 %v922
      %v942 = vunpack.c.l.b16 %v923
      %v943 = vunpack.c.l.b16 %v924
      %v944 = vunpack.c.l.b16 %v925
      %v945 = vunpack.c.l.b16 %v926
      %v946 = vunpack.c.l.b16 %v927
      %v947 = vunpack.c.l.b16 %v928
      %v948 = vpack.c.b16 %v941, %v940
      %v949 = vpack.c.b16 %v943, %v942
      %v950 = vpack.c.b16 %v945, %v944
      %v951 = vpack.c.b16 %v947, %v946
      %v954 = vunpack.c.l.b16 %v930
      %v955 = vunpack.c.l.b16 %v931
      %v956 = vpack.c.b16 %v955, %v954
      %v959 = vsel %vm554, %v948, 0
      %v962 = vsel %vm554, %v949, 0
      %v965 = vsel %vm554, %v950, 0
      %v968 = vsel %vm554, %v951, 0
      %970 = vmatpush.bf16.msra.mxu0 0
      %971 = vmatpush.bf16.msra.mxu0 0
      %972 = vmatpush.bf16.msra.mxu0 0
      %973 = vmatpush.bf16.msra.mxu0 0
      %974 = vmatpush.bf16.msra.mxu0 0
      %975 = vmatpush.bf16.msra.mxu0 0
      %976 = vmatpush.bf16.msra.mxu0 0
      %977 = vmatpush.bf16.msra.mxu0 %v956
      %978 = vmatmul.bf16.gmra.mxu0 %v959
      %v979 = vpop.f32.mrf.mxu0
      %v980 = vadd.f32 0.0, %v979
      %v981 = vpop.f32.mrf.mxu0
      %v982 = vadd.f32 0.0, %v981
      %983 = vmatmul.bf16.gmra.mxu0 %v962
      %v984 = vpop.f32.mrf.mxu0
      %v985 = vadd.f32 0.0, %v984
      %v986 = vpop.f32.mrf.mxu0
      %v987 = vadd.f32 0.0, %v986
      %988 = vmatmul.bf16.gmra.mxu0 %v965
      %v989 = vpop.f32.mrf.mxu0
      %v990 = vadd.f32 0.0, %v989
      %v991 = vpop.f32.mrf.mxu0
      %v992 = vadd.f32 0.0, %v991
      %993 = vmatmul.bf16.gmra.mxu0 %v968
      %v994 = vpop.f32.mrf.mxu0
      %v995 = vadd.f32 0.0, %v994
      %v996 = vpop.f32.mrf.mxu0
      %v997 = vadd.f32 0.0, %v996
      %998 = vdwg.mxu0
      %v999 = vadd.f32 %v913, %v980
      %v1000 = vadd.f32 %v914, %v982
      %v1001 = vadd.f32 %v915, %v985
      %v1002 = vadd.f32 %v916, %v987
      %v1003 = vadd.f32 %v917, %v990
      %v1004 = vadd.f32 %v918, %v992
      %v1005 = vadd.f32 %v919, %v995
      %v1006 = vadd.f32 %v920, %v997
      %v1007 = vld [vmem:[#allocation2 + $0x10] sm:$0xf]
      %v1008 = vld [vmem:[#allocation2 + $0x14] sm:$0xf]
      %v1009 = vld [vmem:[#allocation2 + $0x18] sm:$0xf]
      %v1010 = vld [vmem:[#allocation2 + $0x1c] sm:$0xf]
      %v1011 = vld [vmem:[#allocation2 + $0x20] sm:$0xf]
      %v1012 = vld [vmem:[#allocation2 + $0x24] sm:$0xf]
      %v1013 = vld [vmem:[#allocation2 + $0x28] sm:$0xf]
      %v1014 = vld [vmem:[#allocation2 + $0x2c] sm:$0xf]
      %s1015 = scalar_lea.vmem %s1, 48
      %v1016 = vld [vmem:[%s1015] sm:$0xf]
      %v1017 = vld [vmem:[%s1015 + $0x4] sm:$0xf]
      %v1026 = vunpack.c.l.b16 %v1007
      %v1027 = vunpack.c.l.b16 %v1008
      %v1028 = vunpack.c.l.b16 %v1009
      %v1029 = vunpack.c.l.b16 %v1010
      %v1030 = vunpack.c.l.b16 %v1011
      %v1031 = vunpack.c.l.b16 %v1012
      %v1032 = vunpack.c.l.b16 %v1013
      %v1033 = vunpack.c.l.b16 %v1014
      %v1034 = vpack.c.b16 %v1027, %v1026
      %v1035 = vpack.c.b16 %v1029, %v1028
      %v1036 = vpack.c.b16 %v1031, %v1030
      %v1037 = vpack.c.b16 %v1033, %v1032
      %v1040 = vunpack.c.l.b16 %v1016
      %v1041 = vunpack.c.l.b16 %v1017
      %v1042 = vpack.c.b16 %v1041, %v1040
      %v1045 = vsel %vm554, %v1034, 0
      %v1048 = vsel %vm554, %v1035, 0
      %v1051 = vsel %vm554, %v1036, 0
      %v1054 = vsel %vm554, %v1037, 0
      %1056 = vmatpush.bf16.msra.mxu0 0
      %1057 = vmatpush.bf16.msra.mxu0 0
      %1058 = vmatpush.bf16.msra.mxu0 0
      %1059 = vmatpush.bf16.msra.mxu0 0
      %1060 = vmatpush.bf16.msra.mxu0 0
      %1061 = vmatpush.bf16.msra.mxu0 0
      %1062 = vmatpush.bf16.msra.mxu0 0
      %1063 = vmatpush.bf16.msra.mxu0 %v1042
      %1064 = vmatmul.bf16.gmra.mxu0 %v1045
      %v1065 = vpop.f32.mrf.mxu0
      %v1066 = vadd.f32 0.0, %v1065
      %v1067 = vpop.f32.mrf.mxu0
      %v1068 = vadd.f32 0.0, %v1067
      %1069 = vmatmul.bf16.gmra.mxu0 %v1048
      %v1070 = vpop.f32.mrf.mxu0
      %v1071 = vadd.f32 0.0, %v1070
      %v1072 = vpop.f32.mrf.mxu0
      %v1073 = vadd.f32 0.0, %v1072
      %1074 = vmatmul.bf16.gmra.mxu0 %v1051
      %v1075 = vpop.f32.mrf.mxu0
      %v1076 = vadd.f32 0.0, %v1075
      %v1077 = vpop.f32.mrf.mxu0
      %v1078 = vadd.f32 0.0, %v1077
      %1079 = vmatmul.bf16.gmra.mxu0 %v1054
      %v1080 = vpop.f32.mrf.mxu0
      %v1081 = vadd.f32 0.0, %v1080
      %v1082 = vpop.f32.mrf.mxu0
      %v1083 = vadd.f32 0.0, %v1082
      %1084 = vdwg.mxu0
      %v1085 = vadd.f32 %v999, %v1066
      %v1086 = vadd.f32 %v1000, %v1068
      %v1087 = vadd.f32 %v1001, %v1071
      %v1088 = vadd.f32 %v1002, %v1073
      %v1089 = vadd.f32 %v1003, %v1076
      %v1090 = vadd.f32 %v1004, %v1078
      %v1091 = vadd.f32 %v1005, %v1081
      %v1092 = vadd.f32 %v1006, %v1083
      %v1093 = vld [vmem:[%s403 + $0x10] sm:$0xf]
      %v1094 = vld [vmem:[%s403 + $0x14] sm:$0xf]
      %v1095 = vld [vmem:[%s403 + $0x18] sm:$0xf]
      %v1096 = vld [vmem:[%s403 + $0x1c] sm:$0xf]
      %v1097 = vld [vmem:[%s403 + $0x20] sm:$0xf]
      %v1098 = vld [vmem:[%s403 + $0x24] sm:$0xf]
      %v1099 = vld [vmem:[%s403 + $0x28] sm:$0xf]
      %v1100 = vld [vmem:[%s403 + $0x2c] sm:$0xf]
      %s1101 = scalar_lea.vmem %s1, 56
      %v1102 = vld [vmem:[%s1101] sm:$0xf]
      %v1103 = vld [vmem:[%s1101 + $0x4] sm:$0xf]
      %v1112 = vunpack.c.l.b16 %v1093
      %v1113 = vunpack.c.l.b16 %v1094
      %v1114 = vunpack.c.l.b16 %v1095
      %v1115 = vunpack.c.l.b16 %v1096
      %v1116 = vunpack.c.l.b16 %v1097
      %v1117 = vunpack.c.l.b16 %v1098
      %v1118 = vunpack.c.l.b16 %v1099
      %v1119 = vunpack.c.l.b16 %v1100
      %v1120 = vpack.c.b16 %v1113, %v1112
      %v1121 = vpack.c.b16 %v1115, %v1114
      %v1122 = vpack.c.b16 %v1117, %v1116
      %v1123 = vpack.c.b16 %v1119, %v1118
      %v1126 = vunpack.c.l.b16 %v1102
      %v1127 = vunpack.c.l.b16 %v1103
      %v1128 = vpack.c.b16 %v1127, %v1126
      %v1131 = vsel %vm554, %v1120, 0
      %v1134 = vsel %vm554, %v1121, 0
      %v1137 = vsel %vm554, %v1122, 0
      %v1140 = vsel %vm554, %v1123, 0
      %1142 = vmatpush.bf16.msra.mxu0 0
      %1143 = vmatpush.bf16.msra.mxu0 0
      %1144 = vmatpush.bf16.msra.mxu0 0
      %1145 = vmatpush.bf16.msra.mxu0 0
      %1146 = vmatpush.bf16.msra.mxu0 0
      %1147 = vmatpush.bf16.msra.mxu0 0
      %1148 = vmatpush.bf16.msra.mxu0 0
      %1149 = vmatpush.bf16.msra.mxu0 %v1128
      %1150 = vmatmul.bf16.gmra.mxu0 %v1131
      %v1151 = vpop.f32.mrf.mxu0
      %v1152 = vadd.f32 0.0, %v1151
      %v1153 = vpop.f32.mrf.mxu0
      %v1154 = vadd.f32 0.0, %v1153
      %1155 = vmatmul.bf16.gmra.mxu0 %v1134
      %v1156 = vpop.f32.mrf.mxu0
      %v1157 = vadd.f32 0.0, %v1156
      %v1158 = vpop.f32.mrf.mxu0
      %v1159 = vadd.f32 0.0, %v1158
      %1160 = vmatmul.bf16.gmra.mxu0 %v1137
      %v1161 = vpop.f32.mrf.mxu0
      %v1162 = vadd.f32 0.0, %v1161
      %v1163 = vpop.f32.mrf.mxu0
      %v1164 = vadd.f32 0.0, %v1163
      %1165 = vmatmul.bf16.gmra.mxu0 %v1140
      %v1166 = vpop.f32.mrf.mxu0
      %v1167 = vadd.f32 0.0, %v1166
      %v1168 = vpop.f32.mrf.mxu0
      %v1169 = vadd.f32 0.0, %v1168
      %1170 = vdwg.mxu0
      %v1171 = vadd.f32 %v1085, %v1152
      %v1172 = vadd.f32 %v1086, %v1154
      %v1173 = vadd.f32 %v1087, %v1157
      %v1174 = vadd.f32 %v1088, %v1159
      %v1175 = vadd.f32 %v1089, %v1162
      %v1176 = vadd.f32 %v1090, %v1164
      %v1177 = vadd.f32 %v1091, %v1167
      %v1178 = vadd.f32 %v1092, %v1169
      %v1179 = vld [vmem:[%s494 + $0x10] sm:$0xf]
      %v1180 = vld [vmem:[%s494 + $0x14] sm:$0xf]
      %v1181 = vld [vmem:[%s494 + $0x18] sm:$0xf]
      %v1182 = vld [vmem:[%s494 + $0x1c] sm:$0xf]
      %v1183 = vld [vmem:[%s494 + $0x20] sm:$0xf]
      %v1184 = vld [vmem:[%s494 + $0x24] sm:$0xf]
      %v1185 = vld [vmem:[%s494 + $0x28] sm:$0xf]
      %v1186 = vld [vmem:[%s494 + $0x2c] sm:$0xf]
      %s1187 = scalar_lea.vmem %s1, 64
      %v1188 = vld [vmem:[%s1187] sm:$0xf]
      %v1189 = vld [vmem:[%s1187 + $0x4] sm:$0xf]
      %v1198 = vunpack.c.l.b16 %v1179
      %v1199 = vunpack.c.l.b16 %v1180
      %v1200 = vunpack.c.l.b16 %v1181
      %v1201 = vunpack.c.l.b16 %v1182
      %v1202 = vunpack.c.l.b16 %v1183
      %v1203 = vunpack.c.l.b16 %v1184
      %v1204 = vunpack.c.l.b16 %v1185
      %v1205 = vunpack.c.l.b16 %v1186
      %v1206 = vpack.c.b16 %v1199, %v1198
      %v1207 = vpack.c.b16 %v1201, %v1200
      %v1208 = vpack.c.b16 %v1203, %v1202
      %v1209 = vpack.c.b16 %v1205, %v1204
      %v1212 = vunpack.c.l.b16 %v1188
      %v1213 = vunpack.c.l.b16 %v1189
      %v1214 = vpack.c.b16 %v1213, %v1212
      %v1217 = vsel %vm554, %v1206, 0
      %v1220 = vsel %vm554, %v1207, 0
      %v1223 = vsel %vm554, %v1208, 0
      %v1226 = vsel %vm554, %v1209, 0
      %1228 = vmatpush.bf16.msra.mxu0 0
      %1229 = vmatpush.bf16.msra.mxu0 0
      %1230 = vmatpush.bf16.msra.mxu0 0
      %1231 = vmatpush.bf16.msra.mxu0 0
      %1232 = vmatpush.bf16.msra.mxu0 0
      %1233 = vmatpush.bf16.msra.mxu0 0
      %1234 = vmatpush.bf16.msra.mxu0 0
      %1235 = vmatpush.bf16.msra.mxu0 %v1214
      %1236 = vmatmul.bf16.gmra.mxu0 %v1217
      %v1237 = vpop.f32.mrf.mxu0
      %v1238 = vadd.f32 0.0, %v1237
      %v1239 = vpop.f32.mrf.mxu0
      %v1240 = vadd.f32 0.0, %v1239
      %1241 = vmatmul.bf16.gmra.mxu0 %v1220
      %v1242 = vpop.f32.mrf.mxu0
      %v1243 = vadd.f32 0.0, %v1242
      %v1244 = vpop.f32.mrf.mxu0
      %v1245 = vadd.f32 0.0, %v1244
      %1246 = vmatmul.bf16.gmra.mxu0 %v1223
      %v1247 = vpop.f32.mrf.mxu0
      %v1248 = vadd.f32 0.0, %v1247
      %v1249 = vpop.f32.mrf.mxu0
      %v1250 = vadd.f32 0.0, %v1249
      %1251 = vmatmul.bf16.gmra.mxu0 %v1226
      %v1252 = vpop.f32.mrf.mxu0
      %v1253 = vadd.f32 0.0, %v1252
      %v1254 = vpop.f32.mrf.mxu0
      %v1255 = vadd.f32 0.0, %v1254
      %1256 = vdwg.mxu0
      %v1257 = vadd.f32 %v1171, %v1238
      %v1258 = vadd.f32 %v1172, %v1240
      %v1259 = vadd.f32 %v1173, %v1243
      %v1260 = vadd.f32 %v1174, %v1245
      %v1261 = vadd.f32 %v1175, %v1248
      %v1262 = vadd.f32 %v1176, %v1250
      %v1263 = vadd.f32 %v1177, %v1253
      %v1264 = vadd.f32 %v1178, %v1255
      %v1265 = vlaneseq
      %v1266 = vshrl.u32 %v1265, 7
      %v1267 = vadd.s32 %v1266, 8
      %v1268 = vadd.s32 %v1266, 16
      %v1269 = vadd.s32 %v1266, 24
      %v1270 = vadd.s32 %v1266, 32
      %v1271 = vadd.s32 %v1266, 40
      %v1272 = vadd.s32 %v1266, 48
      %v1273 = vadd.s32 %v1266, 56
      %vm1274 = vcmp.lt.s32.totalorder %v1266, 0
      %v1275 = vsub.s32 0, %v1266
      %v1276 = vsel %vm1274, %v1275, %v1266
      %v1277 = vshrl.u32 %v1276, 4
      %v1278 = vand.u32 %v1276, 15
      %v1279 = vsub.s32 0, %v1278
      %v1280 = vsel %vm1274, %v1279, %v1278
      %vm1281 = vcmp.lt.s32.totalorder %v1267, 0
      %v1282 = vsub.s32 0, %v1267
      %v1283 = vsel %vm1281, %v1282, %v1267
      %v1284 = vshrl.u32 %v1283, 4
      %v1285 = vand.u32 %v1283, 15
      %v1286 = vsub.s32 0, %v1285
      %v1287 = vsel %vm1281, %v1286, %v1285
      %vm1288 = vcmp.lt.s32.totalorder %v1268, 0
      %v1289 = vsub.s32 0, %v1268
      %v1290 = vsel %vm1288, %v1289, %v1268
      %v1291 = vshrl.u32 %v1290, 4
      %v1292 = vand.u32 %v1290, 15
      %v1293 = vsub.s32 0, %v1292
      %v1294 = vsel %vm1288, %v1293, %v1292
      %vm1295 = vcmp.lt.s32.totalorder %v1269, 0
      %v1296 = vsub.s32 0, %v1269
      %v1297 = vsel %vm1295, %v1296, %v1269
      %v1298 = vshrl.u32 %v1297, 4
      %v1299 = vand.u32 %v1297, 15
      %v1300 = vsub.s32 0, %v1299
      %v1301 = vsel %vm1295, %v1300, %v1299
      %vm1302 = vcmp.lt.s32.totalorder %v1270, 0
      %v1303 = vsub.s32 0, %v1270
      %v1304 = vsel %vm1302, %v1303, %v1270
      %v1305 = vshrl.u32 %v1304, 4
      %v1306 = vand.u32 %v1304, 15
      %v1307 = vsub.s32 0, %v1306
      %v1308 = vsel %vm1302, %v1307, %v1306
      %vm1309 = vcmp.lt.s32.totalorder %v1271, 0
      %v1310 = vsub.s32 0, %v1271
      %v1311 = vsel %vm1309, %v1310, %v1271
      %v1312 = vshrl.u32 %v1311, 4
      %v1313 = vand.u32 %v1311, 15
      %v1314 = vsub.s32 0, %v1313
      %v1315 = vsel %vm1309, %v1314, %v1313
      %vm1316 = vcmp.lt.s32.totalorder %v1272, 0
      %v1317 = vsub.s32 0, %v1272
      %v1318 = vsel %vm1316, %v1317, %v1272
      %v1319 = vshrl.u32 %v1318, 4
      %v1320 = vand.u32 %v1318, 15
      %v1321 = vsub.s32 0, %v1320
      %v1322 = vsel %vm1316, %v1321, %v1320
      %vm1323 = vcmp.lt.s32.totalorder %v1273, 0
      %v1324 = vsub.s32 0, %v1273
      %v1325 = vsel %vm1323, %v1324, %v1273
      %v1326 = vshrl.u32 %v1325, 4
      %v1327 = vand.u32 %v1325, 15
      %v1328 = vsub.s32 0, %v1327
      %v1329 = vsel %vm1323, %v1328, %v1327
      %vm1330 = vcmp.ne.s32.totalorder %v1280, 0
      %vm1331 = vcmp.ne.s32.totalorder %v1287, 0
      %vm1332 = vcmp.ne.s32.totalorder %v1294, 0
      %vm1333 = vcmp.ne.s32.totalorder %v1301, 0
      %vm1334 = vcmp.ne.s32.totalorder %v1308, 0
      %vm1335 = vcmp.ne.s32.totalorder %v1315, 0
      %vm1336 = vcmp.ne.s32.totalorder %v1322, 0
      %vm1337 = vcmp.ne.s32.totalorder %v1329, 0
      %vm1338 = vcmp.lt.s32.totalorder %v1280, 0
      %vm1339 = vcmp.lt.s32.totalorder %v1287, 0
      %vm1340 = vcmp.lt.s32.totalorder %v1294, 0
      %vm1341 = vcmp.lt.s32.totalorder %v1301, 0
      %vm1342 = vcmp.lt.s32.totalorder %v1308, 0
      %vm1343 = vcmp.lt.s32.totalorder %v1315, 0
      %vm1344 = vcmp.lt.s32.totalorder %v1322, 0
      %vm1345 = vcmp.lt.s32.totalorder %v1329, 0
      %vm1346 = vmand %vm1338, %vm1330
      %vm1347 = vmand %vm1339, %vm1331
      %vm1348 = vmand %vm1340, %vm1332
      %vm1349 = vmand %vm1341, %vm1333
      %vm1350 = vmand %vm1342, %vm1334
      %vm1351 = vmand %vm1343, %vm1335
      %vm1352 = vmand %vm1344, %vm1336
      %vm1353 = vmand %vm1345, %vm1337
      %v1354 = vadd.s32 %v1280, 16
      %v1355 = vadd.s32 %v1287, 16
      %v1356 = vadd.s32 %v1294, 16
      %v1357 = vadd.s32 %v1301, 16
      %v1358 = vadd.s32 %v1308, 16
      %v1359 = vadd.s32 %v1315, 16
      %v1360 = vadd.s32 %v1322, 16
      %v1361 = vadd.s32 %v1329, 16
      %v1362 = vsel %vm1346, %v1354, %v1280
      %v1363 = vsel %vm1347, %v1355, %v1287
      %v1364 = vsel %vm1348, %v1356, %v1294
      %v1365 = vsel %vm1349, %v1357, %v1301
      %v1366 = vsel %vm1350, %v1358, %v1308
      %v1367 = vsel %vm1351, %v1359, %v1315
      %v1368 = vsel %vm1352, %v1360, %v1322
      %v1369 = vsel %vm1353, %v1361, %v1329
      %vm1370 = vcmp.ge.s32.totalorder %v1362, 1
      %vm1371 = vcmp.ge.s32.totalorder %v1363, 1
      %vm1372 = vcmp.ge.s32.totalorder %v1364, 1
      %vm1373 = vcmp.ge.s32.totalorder %v1365, 1
      %vm1374 = vcmp.ge.s32.totalorder %v1366, 1
      %vm1375 = vcmp.ge.s32.totalorder %v1367, 1
      %vm1376 = vcmp.ge.s32.totalorder %v1368, 1
      %vm1377 = vcmp.ge.s32.totalorder %v1369, 1
      %vm1378 = vcmp.lt.s32.totalorder %v1362, 9
      %vm1379 = vcmp.lt.s32.totalorder %v1363, 9
      %vm1380 = vcmp.lt.s32.totalorder %v1364, 9
      %vm1381 = vcmp.lt.s32.totalorder %v1365, 9
      %vm1382 = vcmp.lt.s32.totalorder %v1366, 9
      %vm1383 = vcmp.lt.s32.totalorder %v1367, 9
      %vm1384 = vcmp.lt.s32.totalorder %v1368, 9
      %vm1385 = vcmp.lt.s32.totalorder %v1369, 9
      %vm1386 = vmand %vm1370, %vm1378
      %vm1387 = vmand %vm1371, %vm1379
      %vm1388 = vmand %vm1372, %vm1380
      %vm1389 = vmand %vm1373, %vm1381
      %vm1390 = vmand %vm1374, %vm1382
      %vm1391 = vmand %vm1375, %vm1383
      %vm1392 = vmand %vm1376, %vm1384
      %vm1393 = vmand %vm1377, %vm1385
      %v1394 = vld [vmem:[%s2] sm:$0x1]
      %v1396 = vperm.slane %v1394, 0
      %v1398 = vadd.f32 %v1257, %v1396
      %v1399 = vadd.f32 %v1258, %v1396
      %v1400 = vadd.f32 %v1259, %v1396
      %v1401 = vadd.f32 %v1260, %v1396
      %v1402 = vadd.f32 %v1261, %v1396
      %v1403 = vadd.f32 %v1262, %v1396
      %v1404 = vadd.f32 %v1263, %v1396
      %v1405 = vadd.f32 %v1264, %v1396
      %v1406 = vmul.f32 %v1398, 0.70710677
      %v1407 = vmul.f32 %v1399, 0.70710677
      %v1408 = vmul.f32 %v1400, 0.70710677
      %v1409 = vmul.f32 %v1401, 0.70710677
      %v1410 = vmul.f32 %v1402, 0.70710677
      %v1411 = vmul.f32 %v1403, 0.70710677
      %v1412 = vmul.f32 %v1404, 0.70710677
      %v1413 = vmul.f32 %v1405, 0.70710677
      %v1414 = vand.u32 2147483647, %v1406
      %v1415 = vand.u32 2147483647, %v1407
      %v1416 = vand.u32 2147483647, %v1408
      %v1417 = vand.u32 2147483647, %v1409
      %v1418 = vand.u32 2147483647, %v1410
      %v1419 = vand.u32 2147483647, %v1411
      %v1420 = vand.u32 2147483647, %v1412
      %v1421 = vand.u32 2147483647, %v1413
      %v1422 = vmul.f32 %v1414, 0.3275911
      %v1423 = vmul.f32 %v1415, 0.3275911
      %v1424 = vmul.f32 %v1416, 0.3275911
      %v1425 = vmul.f32 %v1417, 0.3275911
      %v1426 = vmul.f32 %v1418, 0.3275911
      %v1427 = vmul.f32 %v1419, 0.3275911
      %v1428 = vmul.f32 %v1420, 0.3275911
      %v1429 = vmul.f32 %v1421, 0.3275911
      %v1430 = vadd.f32 %v1422, 1.0
      %v1431 = vadd.f32 %v1423, 1.0
      %v1432 = vadd.f32 %v1424, 1.0
      %v1433 = vadd.f32 %v1425, 1.0
      %v1434 = vadd.f32 %v1426, 1.0
      %v1435 = vadd.f32 %v1427, 1.0
      %v1436 = vadd.f32 %v1428, 1.0
      %v1437 = vadd.f32 %v1429, 1.0
      %v1438 = vrcp.pop %v1430
      %v1439 = vrcp.pop %v1431
      %v1440 = vrcp.pop %v1432
      %v1441 = vrcp.pop %v1433
      %v1442 = vrcp.pop %v1434
      %v1443 = vrcp.pop %v1435
      %v1444 = vrcp.pop %v1436
      %v1445 = vrcp.pop %v1437
      %v1446 = vmul.f32 %v1438, 1.0614054
      %v1447 = vmul.f32 %v1439, 1.0614054
      %v1448 = vmul.f32 %v1440, 1.0614054
      %v1449 = vmul.f32 %v1441, 1.0614054
      %v1450 = vmul.f32 %v1442, 1.0614054
      %v1451 = vmul.f32 %v1443, 1.0614054
      %v1452 = vmul.f32 %v1444, 1.0614054
      %v1453 = vmul.f32 %v1445, 1.0614054
      %v1454 = vadd.f32 %v1446, -1.4531521
      %v1455 = vadd.f32 %v1447, -1.4531521
      %v1456 = vadd.f32 %v1448, -1.4531521
      %v1457 = vadd.f32 %v1449, -1.4531521
      %v1458 = vadd.f32 %v1450, -1.4531521
      %v1459 = vadd.f32 %v1451, -1.4531521
      %v1460 = vadd.f32 %v1452, -1.4531521
      %v1461 = vadd.f32 %v1453, -1.4531521
      %v1462 = vmul.f32 %v1454, %v1438
      %v1463 = vmul.f32 %v1455, %v1439
      %v1464 = vmul.f32 %v1456, %v1440
      %v1465 = vmul.f32 %v1457, %v1441
      %v1466 = vmul.f32 %v1458, %v1442
      %v1467 = vmul.f32 %v1459, %v1443
      %v1468 = vmul.f32 %v1460, %v1444
      %v1469 = vmul.f32 %v1461, %v1445
      %v1470 = vadd.f32 %v1462, 1.4214138
      %v1471 = vadd.f32 %v1463, 1.4214138
      %v1472 = vadd.f32 %v1464, 1.4214138
      %v1473 = vadd.f32 %v1465, 1.4214138
      %v1474 = vadd.f32 %v1466, 1.4214138
      %v1475 = vadd.f32 %v1467, 1.4214138
      %v1476 = vadd.f32 %v1468, 1.4214138
      %v1477 = vadd.f32 %v1469, 1.4214138
      %v1478 = vmul.f32 %v1470, %v1438
      %v1479 = vmul.f32 %v1471, %v1439
      %v1480 = vmul.f32 %v1472, %v1440
      %v1481 = vmul.f32 %v1473, %v1441
      %v1482 = vmul.f32 %v1474, %v1442
      %v1483 = vmul.f32 %v1475, %v1443
      %v1484 = vmul.f32 %v1476, %v1444
      %v1485 = vmul.f32 %v1477, %v1445
      %v1486 = vadd.f32 %v1478, -0.28449672
      %v1487 = vadd.f32 %v1479, -0.28449672
      %v1488 = vadd.f32 %v1480, -0.28449672
      %v1489 = vadd.f32 %v1481, -0.28449672
      %v1490 = vadd.f32 %v1482, -0.28449672
      %v1491 = vadd.f32 %v1483, -0.28449672
      %v1492 = vadd.f32 %v1484, -0.28449672
      %v1493 = vadd.f32 %v1485, -0.28449672
      %v1494 = vmul.f32 %v1486, %v1438
      %v1495 = vmul.f32 %v1487, %v1439
      %v1496 = vmul.f32 %v1488, %v1440
      %v1497 = vmul.f32 %v1489, %v1441
      %v1498 = vmul.f32 %v1490, %v1442
      %v1499 = vmul.f32 %v1491, %v1443
      %v1500 = vmul.f32 %v1492, %v1444
      %v1501 = vmul.f32 %v1493, %v1445
      %v1502 = vadd.f32 %v1494, 0.2548296
      %v1503 = vadd.f32 %v1495, 0.2548296
      %v1504 = vadd.f32 %v1496, 0.2548296
      %v1505 = vadd.f32 %v1497, 0.2548296
      %v1506 = vadd.f32 %v1498, 0.2548296
      %v1507 = vadd.f32 %v1499, 0.2548296
      %v1508 = vadd.f32 %v1500, 0.2548296
      %v1509 = vadd.f32 %v1501, 0.2548296
      %v1510 = vmul.f32 %v1502, %v1438
      %v1511 = vmul.f32 %v1503, %v1439
      %v1512 = vmul.f32 %v1504, %v1440
      %v1513 = vmul.f32 %v1505, %v1441
      %v1514 = vmul.f32 %v1506, %v1442
      %v1515 = vmul.f32 %v1507, %v1443
      %v1516 = vmul.f32 %v1508, %v1444
      %v1517 = vmul.f32 %v1509, %v1445
      %v1518 = vsub.f32 0.0, %v1414
      %v1519 = vsub.f32 0.0, %v1415
      %v1520 = vsub.f32 0.0, %v1416
      %v1521 = vsub.f32 0.0, %v1417
      %v1522 = vsub.f32 0.0, %v1418
      %v1523 = vsub.f32 0.0, %v1419
      %v1524 = vsub.f32 0.0, %v1420
      %v1525 = vsub.f32 0.0, %v1421
      %v1526 = vmul.f32 %v1518, %v1414
      %v1527 = vmul.f32 %v1519, %v1415
      %v1528 = vmul.f32 %v1520, %v1416
      %v1529 = vmul.f32 %v1521, %v1417
      %v1530 = vmul.f32 %v1522, %v1418
      %v1531 = vmul.f32 %v1523, %v1419
      %v1532 = vmul.f32 %v1524, %v1420
      %v1533 = vmul.f32 %v1525, %v1421
      %v1534 = vmul.f32 %v1526, 1.442695
      %v1535 = vpow.pop %v1534
      %v1536 = vmul.f32 %v1527, 1.442695
      %v1537 = vpow.pop %v1536
      %v1538 = vmul.f32 %v1528, 1.442695
      %v1539 = vpow.pop %v1538
      %v1540 = vmul.f32 %v1529, 1.442695
      %v1541 = vpow.pop %v1540
      %v1542 = vmul.f32 %v1530, 1.442695
      %v1543 = vpow.pop %v1542
      %v1544 = vmul.f32 %v1531, 1.442695
      %v1545 = vpow.pop %v1544
      %v1546 = vmul.f32 %v1532, 1.442695
      %v1547 = vpow.pop %v1546
      %v1548 = vmul.f32 %v1533, 1.442695
      %v1549 = vpow.pop %v1548
      %v1550 = vmul.f32 %v1510, %v1535
      %v1551 = vmul.f32 %v1511, %v1537
      %v1552 = vmul.f32 %v1512, %v1539
      %v1553 = vmul.f32 %v1513, %v1541
      %v1554 = vmul.f32 %v1514, %v1543
      %v1555 = vmul.f32 %v1515, %v1545
      %v1556 = vmul.f32 %v1516, %v1547
      %v1557 = vmul.f32 %v1517, %v1549
      %v1558 = vsub.f32 1.0, %v1550
      %v1559 = vsub.f32 1.0, %v1551
      %v1560 = vsub.f32 1.0, %v1552
      %v1561 = vsub.f32 1.0, %v1553
      %v1562 = vsub.f32 1.0, %v1554
      %v1563 = vsub.f32 1.0, %v1555
      %v1564 = vsub.f32 1.0, %v1556
      %v1565 = vsub.f32 1.0, %v1557
      %vm1566 = vcmp.ge.f32.partialorder %v1406, 0.0
      %vm1567 = vcmp.ge.f32.partialorder %v1407, 0.0
      %vm1568 = vcmp.ge.f32.partialorder %v1408, 0.0
      %vm1569 = vcmp.ge.f32.partialorder %v1409, 0.0
      %vm1570 = vcmp.ge.f32.partialorder %v1410, 0.0
      %vm1571 = vcmp.ge.f32.partialorder %v1411, 0.0
      %vm1572 = vcmp.ge.f32.partialorder %v1412, 0.0
      %vm1573 = vcmp.ge.f32.partialorder %v1413, 0.0
      %v1574 = vsub.f32 0.0, %v1558
      %v1575 = vsub.f32 0.0, %v1559
      %v1576 = vsub.f32 0.0, %v1560
      %v1577 = vsub.f32 0.0, %v1561
      %v1578 = vsub.f32 0.0, %v1562
      %v1579 = vsub.f32 0.0, %v1563
      %v1580 = vsub.f32 0.0, %v1564
      %v1581 = vsub.f32 0.0, %v1565
      %v1582 = vsel %vm1566, %v1558, %v1574
      %v1583 = vsel %vm1567, %v1559, %v1575
      %v1584 = vsel %vm1568, %v1560, %v1576
      %v1585 = vsel %vm1569, %v1561, %v1577
      %v1586 = vsel %vm1570, %v1562, %v1578
      %v1587 = vsel %vm1571, %v1563, %v1579
      %v1588 = vsel %vm1572, %v1564, %v1580
      %v1589 = vsel %vm1573, %v1565, %v1581
      %v1590 = vmul.f32 %v1398, 0.5
      %v1591 = vmul.f32 %v1399, 0.5
      %v1592 = vmul.f32 %v1400, 0.5
      %v1593 = vmul.f32 %v1401, 0.5
      %v1594 = vmul.f32 %v1402, 0.5
      %v1595 = vmul.f32 %v1403, 0.5
      %v1596 = vmul.f32 %v1404, 0.5
      %v1597 = vmul.f32 %v1405, 0.5
      %v1598 = vadd.f32 %v1582, 1.0
      %v1599 = vadd.f32 %v1583, 1.0
      %v1600 = vadd.f32 %v1584, 1.0
      %v1601 = vadd.f32 %v1585, 1.0
      %v1602 = vadd.f32 %v1586, 1.0
      %v1603 = vadd.f32 %v1587, 1.0
      %v1604 = vadd.f32 %v1588, 1.0
      %v1605 = vadd.f32 %v1589, 1.0
      %v1606 = vmul.f32 %v1590, %v1598
      %v1607 = vmul.f32 %v1591, %v1599
      %v1608 = vmul.f32 %v1592, %v1600
      %v1609 = vmul.f32 %v1593, %v1601
      %v1610 = vmul.f32 %v1594, %v1602
      %v1611 = vmul.f32 %v1595, %v1603
      %v1612 = vmul.f32 %v1596, %v1604
      %v1613 = vmul.f32 %v1597, %v1605
      %v1614 = vsel %vm1386, 1, 0
      %v1615 = vsel %vm1387, 1, 0
      %v1616 = vsel %vm1388, 1, 0
      %v1617 = vsel %vm1389, 1, 0
      %v1618 = vsel %vm1390, 1, 0
      %v1619 = vsel %vm1391, 1, 0
      %v1620 = vsel %vm1392, 1, 0
      %v1621 = vsel %vm1393, 1, 0
      %vm1622 = vcmp.eq.s32.totalorder %v1614, 1
      %vm1623 = vcmp.eq.s32.totalorder %v1615, 1
      %vm1624 = vcmp.eq.s32.totalorder %v1616, 1
      %vm1625 = vcmp.eq.s32.totalorder %v1617, 1
      %vm1626 = vcmp.eq.s32.totalorder %v1618, 1
      %vm1627 = vcmp.eq.s32.totalorder %v1619, 1
      %vm1628 = vcmp.eq.s32.totalorder %v1620, 1
      %vm1629 = vcmp.eq.s32.totalorder %v1621, 1
      %v1630 = vsel %vm1622, %v1606, 0.0
      %v1631 = vsel %vm1623, %v1607, 0.0
      %v1632 = vsel %vm1624, %v1608, 0.0
      %v1633 = vsel %vm1625, %v1609, 0.0
      %v1634 = vsel %vm1626, %v1610, 0.0
      %v1635 = vsel %vm1627, %v1611, 0.0
      %v1636 = vsel %vm1628, %v1612, 0.0
      %v1637 = vsel %vm1629, %v1613, 0.0
      %v1638 = vpack.c.bf16 %v1630, %v1630
      %v1639 = vpack.c.bf16 %v1631, %v1631
      %v1640 = vpack.c.bf16 %v1632, %v1632
      %v1641 = vpack.c.bf16 %v1633, %v1633
      %v1642 = vpack.c.bf16 %v1634, %v1634
      %v1643 = vpack.c.bf16 %v1635, %v1635
      %v1644 = vpack.c.bf16 %v1636, %v1636
      %v1645 = vpack.c.bf16 %v1637, %v1637
      %vm1646 = vcmask 257024
      %1647 = vst.msk [vmem:[#allocation3 + $0x8] sm:$0xf] %vm1646, %v1638
      %1648 = vst.msk [vmem:[#allocation3 + $0xc] sm:$0xf] %vm1646, %v1639
      %1649 = vst.msk [vmem:[#allocation3 + $0x10] sm:$0xf] %vm1646, %v1640
      %1650 = vst.msk [vmem:[#allocation3 + $0x14] sm:$0xf] %vm1646, %v1641
      %1651 = vst.msk [vmem:[#allocation3 + $0x18] sm:$0xf] %vm1646, %v1642
      %1652 = vst.msk [vmem:[#allocation3 + $0x1c] sm:$0xf] %vm1646, %v1643
      %1653 = vst.msk [vmem:[#allocation3 + $0x20] sm:$0xf] %vm1646, %v1644
      %1654 = vst.msk [vmem:[#allocation3 + $0x24] sm:$0xf] %vm1646, %v1645
      %1655 = vst.msk [vmem:[#allocation3] sm:$0xf] %vm1646, 0
      %1656 = vst.msk [vmem:[#allocation3 + $0x4] sm:$0xf] %vm1646, 0
      %1657 = vst.msk [vmem:[#allocation3 + $0x28] sm:$0xf] %vm1646, 0
      %1658 = vst.msk [vmem:[#allocation3 + $0x2c] sm:$0xf] %vm1646, 0
      %1659 = vst.msk [vmem:[#allocation3 + $0x30] sm:$0xf] %vm1646, 0
      %1660 = vst.msk [vmem:[#allocation3 + $0x34] sm:$0xf] %vm1646, 0
      %v1661 = vld [vmem:[#allocation3] sm:$0xf]
      %v1662 = vld [vmem:[#allocation3 + $0x4] sm:$0xf]
      %v1663 = vld [vmem:[#allocation3 + $0x8] sm:$0xf]
      %v1664 = vld [vmem:[#allocation3 + $0xc] sm:$0xf]
      %v1665 = vld [vmem:[#allocation3 + $0x10] sm:$0xf]
      %v1666 = vld [vmem:[#allocation3 + $0x14] sm:$0xf]
      %v1667 = vld [vmem:[#allocation3 + $0x18] sm:$0xf]
      %v1668 = vld [vmem:[#allocation3 + $0x1c] sm:$0xf]
      %v1669 = vld [vmem:[%s3] sm:$0xf]
      %v1670 = vld [vmem:[%s3 + $0x4] sm:$0xf]
      %v1671 = vld [vmem:[%s3 + $0x8] sm:$0xf]
      %v1672 = vld [vmem:[%s3 + $0xc] sm:$0xf]
      %v1673 = vld [vmem:[#allocation3 + $0x20] sm:$0x1]
      %s1674 = scalar_lea.vmem %s3, 16
      %v1675 = vld [vmem:[%s1674] sm:$0xf]
      %v1676 = vld [vmem:[%s1674 + $0x4] sm:$0xf]
      %v1677 = vld [vmem:[%s1674 + $0x8] sm:$0xf]
      %v1678 = vld [vmem:[%s1674 + $0xc] sm:$0xf]
      %v1688 = vunpack.c.l.b16 %v1661
      %v1689 = vunpack.c.l.b16 %v1662
      %v1690 = vunpack.c.l.b16 %v1663
      %v1691 = vunpack.c.l.b16 %v1664
      %v1692 = vunpack.c.l.b16 %v1665
      %v1693 = vunpack.c.l.b16 %v1666
      %v1694 = vunpack.c.l.b16 %v1667
      %v1695 = vunpack.c.l.b16 %v1668
      %v1696 = vunpack.c.l.b16 %v1673
      %v1697 = vpack.c.b16 %v1689, %v1688
      %v1698 = vpack.c.b16 %v1691, %v1690
      %v1699 = vpack.c.b16 %v1693, %v1692
      %v1700 = vpack.c.b16 %v1695, %v1694
      %v1701 = vpack.c.b16 %v1696, %v1696
      %vm1702 = vsmask.f32 7424
      %v1704 = vshrl.u32 %v1697, 16
      %v1706 = vshll.u32 %v1697, 16
      %v1708 = vrot.slane %v1706, 1
      %v1709 = vor.u32 %v1704, %v1708
      %v1711 = vshll.u32 %v1698, 16
      %v1713 = vrot.slane %v1711, 1
      %v1714 = vsel %vm1702, %v1709, %v1713
      %v1715 = vshrl.u32 %v1698, 16
      %v1717 = vor.u32 %v1715, %v1713
      %v1719 = vshll.u32 %v1699, 16
      %v1721 = vrot.slane %v1719, 1
      %v1722 = vsel %vm1702, %v1717, %v1721
      %v1723 = vshrl.u32 %v1699, 16
      %v1725 = vor.u32 %v1723, %v1721
      %v1727 = vshll.u32 %v1700, 16
      %v1729 = vrot.slane %v1727, 1
      %v1730 = vsel %vm1702, %v1725, %v1729
      %v1731 = vshrl.u32 %v1700, 16
      %v1733 = vor.u32 %v1731, %v1729
      %v1735 = vshll.u32 %v1701, 16
      %v1737 = vrot.slane %v1735, 1
      %v1738 = vsel %vm1702, %v1733, %v1737
      %v1743 = vunpack.c.l.b16 %v1675
      %v1744 = vunpack.c.l.b16 %v1676
      %v1745 = vunpack.c.l.b16 %v1677
      %v1746 = vunpack.c.l.b16 %v1678
      %v1747 = vpack.c.b16 %v1744, %v1743
      %v1748 = vpack.c.b16 %v1746, %v1745
      %vm1751 = vcmask 261120
      %v1753 = vsel %vm1751, %v1714, 0
      %v1756 = vsel %vm1751, %v1722, 0
      %v1759 = vsel %vm1751, %v1730, 0
      %v1762 = vsel %vm1751, %v1738, 0
      %1764 = vmatpush.bf16.msra.mxu0 0
      %1765 = vmatpush.bf16.msra.mxu0 0
      %1766 = vmatpush.bf16.msra.mxu0 0
      %1767 = vmatpush.bf16.msra.mxu0 0
      %1768 = vmatpush.bf16.msra.mxu0 0
      %1769 = vmatpush.bf16.msra.mxu0 0
      %1770 = vmatpush.bf16.msra.mxu0 %v1748
      %1771 = vmatpush.bf16.msra.mxu0 %v1747
      %1772 = vmatmul.bf16.gmra.mxu0 %v1753
      %v1773 = vpop.f32.mrf.mxu0
      %v1774 = vadd.f32 0.0, %v1773
      %v1775 = vpop.f32.mrf.mxu0
      %v1776 = vadd.f32 0.0, %v1775
      %1777 = vmatmul.bf16.gmra.mxu0 %v1756
      %v1778 = vpop.f32.mrf.mxu0
      %v1779 = vadd.f32 0.0, %v1778
      %v1780 = vpop.f32.mrf.mxu0
      %v1781 = vadd.f32 0.0, %v1780
      %1782 = vmatmul.bf16.gmra.mxu0 %v1759
      %v1783 = vpop.f32.mrf.mxu0
      %v1784 = vadd.f32 0.0, %v1783
      %v1785 = vpop.f32.mrf.mxu0
      %v1786 = vadd.f32 0.0, %v1785
      %1787 = vmatmul.bf16.gmra.mxu0 %v1762
      %v1788 = vpop.f32.mrf.mxu0
      %v1789 = vadd.f32 0.0, %v1788
      %v1790 = vpop.f32.mrf.mxu0
      %v1791 = vadd.f32 0.0, %v1790
      %1792 = vdwg.mxu0
      %v1797 = vunpack.c.l.b16 %v1669
      %v1798 = vunpack.c.l.b16 %v1670
      %v1799 = vunpack.c.l.b16 %v1671
      %v1800 = vunpack.c.l.b16 %v1672
      %v1801 = vpack.c.b16 %v1798, %v1797
      %v1802 = vpack.c.b16 %v1800, %v1799
      %v1805 = vsel %vm1751, %v1697, 0
      %v1807 = vsel %vm1751, %v1698, 0
      %v1809 = vsel %vm1751, %v1699, 0
      %v1811 = vsel %vm1751, %v1700, 0
      %1813 = vmatpush.bf16.msra.mxu0 0
      %1814 = vmatpush.bf16.msra.mxu0 0
      %1815 = vmatpush.bf16.msra.mxu0 0
      %1816 = vmatpush.bf16.msra.mxu0 0
      %1817 = vmatpush.bf16.msra.mxu0 0
      %1818 = vmatpush.bf16.msra.mxu0 0
      %1819 = vmatpush.bf16.msra.mxu0 %v1802
      %1820 = vmatpush.bf16.msra.mxu0 %v1801
      %1821 = vmatmul.bf16.gmra.mxu0 %v1805
      %v1822 = vpop.f32.mrf.mxu0
      %v1823 = vadd.f32 %v1774, %v1822
      %v1824 = vpop.f32.mrf.mxu0
      %v1825 = vadd.f32 %v1776, %v1824
      %1826 = vmatmul.bf16.gmra.mxu0 %v1807
      %v1827 = vpop.f32.mrf.mxu0
      %v1828 = vadd.f32 %v1779, %v1827
      %v1829 = vpop.f32.mrf.mxu0
      %v1830 = vadd.f32 %v1781, %v1829
      %1831 = vmatmul.bf16.gmra.mxu0 %v1809
      %v1832 = vpop.f32.mrf.mxu0
      %v1833 = vadd.f32 %v1784, %v1832
      %v1834 = vpop.f32.mrf.mxu0
      %v1835 = vadd.f32 %v1786, %v1834
      %1836 = vmatmul.bf16.gmra.mxu0 %v1811
      %v1837 = vpop.f32.mrf.mxu0
      %v1838 = vadd.f32 %v1789, %v1837
      %v1839 = vpop.f32.mrf.mxu0
      %v1840 = vadd.f32 %v1791, %v1839
      %1841 = vdwg.mxu0
      %v1842 = vld [vmem:[#allocation3] sm:$0xe]
      %s1843 = scalar_lea.vmem %s3, 32
      %v1844 = vld [vmem:[%s1843] sm:$0xf]
      %v1845 = vld [vmem:[%s1843 + $0x4] sm:$0xf]
      %v1846 = vld [vmem:[%s1843 + $0x8] sm:$0xf]
      %v1847 = vld [vmem:[%s1843 + $0xc] sm:$0xf]
      %v1849 = vunpack.c.l.b16 %v1842
      %v1850 = vpack.c.b16 %v1689, %v1849
      %vm1851 = vcmask 1046528
      %v1852 = vrot.slane %v1850, 1
      %v1853 = vrot.slane %v1698, 1
      %v1854 = vsel %vm1851, %v1852, %v1853
      %v1855 = vrot.slane %v1699, 1
      %v1856 = vsel %vm1851, %v1853, %v1855
      %v1857 = vrot.slane %v1700, 1
      %v1858 = vsel %vm1851, %v1855, %v1857
      %v1859 = vrot.slane %v1701, 1
      %v1860 = vsel %vm1851, %v1857, %v1859
      %v1865 = vunpack.c.l.b16 %v1844
      %v1866 = vunpack.c.l.b16 %v1845
      %v1867 = vunpack.c.l.b16 %v1846
      %v1868 = vunpack.c.l.b16 %v1847
      %v1869 = vpack.c.b16 %v1866, %v1865
      %v1870 = vpack.c.b16 %v1868, %v1867
      %v1874 = vsel %vm1751, %v1854, 0
      %v1877 = vsel %vm1751, %v1856, 0
      %v1880 = vsel %vm1751, %v1858, 0
      %v1883 = vsel %vm1751, %v1860, 0
      %1885 = vmatpush.bf16.msra.mxu0 0
      %1886 = vmatpush.bf16.msra.mxu0 0
      %1887 = vmatpush.bf16.msra.mxu0 0
      %1888 = vmatpush.bf16.msra.mxu0 0
      %1889 = vmatpush.bf16.msra.mxu0 0
      %1890 = vmatpush.bf16.msra.mxu0 0
      %1891 = vmatpush.bf16.msra.mxu0 %v1870
      %1892 = vmatpush.bf16.msra.mxu0 %v1869
      %1893 = vmatmul.bf16.gmra.mxu0 %v1874
      %v1894 = vpop.f32.mrf.mxu0
      %v1895 = vadd.f32 0.0, %v1894
      %v1896 = vpop.f32.mrf.mxu0
      %v1897 = vadd.f32 0.0, %v1896
      %1898 = vmatmul.bf16.gmra.mxu0 %v1877
      %v1899 = vpop.f32.mrf.mxu0
      %v1900 = vadd.f32 0.0, %v1899
      %v1901 = vpop.f32.mrf.mxu0
      %v1902 = vadd.f32 0.0, %v1901
      %1903 = vmatmul.bf16.gmra.mxu0 %v1880
      %v1904 = vpop.f32.mrf.mxu0
      %v1905 = vadd.f32 0.0, %v1904
      %v1906 = vpop.f32.mrf.mxu0
      %v1907 = vadd.f32 0.0, %v1906
      %1908 = vmatmul.bf16.gmra.mxu0 %v1883
      %v1909 = vpop.f32.mrf.mxu0
      %v1910 = vadd.f32 0.0, %v1909
      %v1911 = vpop.f32.mrf.mxu0
      %v1912 = vadd.f32 0.0, %v1911
      %1913 = vdwg.mxu0
      %v1914 = vadd.f32 %v1823, %v1895
      %v1915 = vadd.f32 %v1825, %v1897
      %v1916 = vadd.f32 %v1828, %v1900
      %v1917 = vadd.f32 %v1830, %v1902
      %v1918 = vadd.f32 %v1833, %v1905
      %v1919 = vadd.f32 %v1835, %v1907
      %v1920 = vadd.f32 %v1838, %v1910
      %v1921 = vadd.f32 %v1840, %v1912
      %v1922 = vld [vmem:[#allocation3 + $0x8] sm:$0xf]
      %v1923 = vld [vmem:[#allocation3 + $0xc] sm:$0xf]
      %v1924 = vld [vmem:[#allocation3 + $0x10] sm:$0xf]
      %v1925 = vld [vmem:[#allocation3 + $0x14] sm:$0xf]
      %v1926 = vld [vmem:[#allocation3 + $0x18] sm:$0xf]
      %v1927 = vld [vmem:[#allocation3 + $0x1c] sm:$0xf]
      %v1928 = vld [vmem:[#allocation3 + $0x20] sm:$0xf]
      %v1929 = vld [vmem:[#allocation3 + $0x24] sm:$0xf]
      %s1930 = scalar_lea.vmem %s3, 48
      %v1931 = vld [vmem:[%s1930] sm:$0xf]
      %v1932 = vld [vmem:[%s1930 + $0x4] sm:$0xf]
      %v1933 = vld [vmem:[%s1930 + $0x8] sm:$0xf]
      %v1934 = vld [vmem:[%s1930 + $0xc] sm:$0xf]
      %v1943 = vunpack.c.l.b16 %v1922
      %v1944 = vunpack.c.l.b16 %v1923
      %v1945 = vunpack.c.l.b16 %v1924
      %v1946 = vunpack.c.l.b16 %v1925
      %v1947 = vunpack.c.l.b16 %v1926
      %v1948 = vunpack.c.l.b16 %v1927
      %v1949 = vunpack.c.l.b16 %v1928
      %v1950 = vunpack.c.l.b16 %v1929
      %v1951 = vpack.c.b16 %v1944, %v1943
      %v1952 = vpack.c.b16 %v1946, %v1945
      %v1953 = vpack.c.b16 %v1948, %v1947
      %v1954 = vpack.c.b16 %v1950, %v1949
      %v1959 = vunpack.c.l.b16 %v1931
      %v1960 = vunpack.c.l.b16 %v1932
      %v1961 = vunpack.c.l.b16 %v1933
      %v1962 = vunpack.c.l.b16 %v1934
      %v1963 = vpack.c.b16 %v1960, %v1959
      %v1964 = vpack.c.b16 %v1962, %v1961
      %v1968 = vsel %vm1751, %v1951, 0
      %v1971 = vsel %vm1751, %v1952, 0
      %v1974 = vsel %vm1751, %v1953, 0
      %v1977 = vsel %vm1751, %v1954, 0
      %1979 = vmatpush.bf16.msra.mxu0 0
      %1980 = vmatpush.bf16.msra.mxu0 0
      %1981 = vmatpush.bf16.msra.mxu0 0
      %1982 = vmatpush.bf16.msra.mxu0 0
      %1983 = vmatpush.bf16.msra.mxu0 0
      %1984 = vmatpush.bf16.msra.mxu0 0
      %1985 = vmatpush.bf16.msra.mxu0 %v1964
      %1986 = vmatpush.bf16.msra.mxu0 %v1963
      %1987 = vmatmul.bf16.gmra.mxu0 %v1968
      %v1988 = vpop.f32.mrf.mxu0
      %v1989 = vadd.f32 0.0, %v1988
      %v1990 = vpop.f32.mrf.mxu0
      %v1991 = vadd.f32 0.0, %v1990
      %1992 = vmatmul.bf16.gmra.mxu0 %v1971
      %v1993 = vpop.f32.mrf.mxu0
      %v1994 = vadd.f32 0.0, %v1993
      %v1995 = vpop.f32.mrf.mxu0
      %v1996 = vadd.f32 0.0, %v1995
      %1997 = vmatmul.bf16.gmra.mxu0 %v1974
      %v1998 = vpop.f32.mrf.mxu0
      %v1999 = vadd.f32 0.0, %v1998
      %v2000 = vpop.f32.mrf.mxu0
      %v2001 = vadd.f32 0.0, %v2000
      %2002 = vmatmul.bf16.gmra.mxu0 %v1977
      %v2003 = vpop.f32.mrf.mxu0
      %v2004 = vadd.f32 0.0, %v2003
      %v2005 = vpop.f32.mrf.mxu0
      %v2006 = vadd.f32 0.0, %v2005
      %2007 = vdwg.mxu0
      %v2008 = vadd.f32 %v1914, %v1989
      %v2009 = vadd.f32 %v1915, %v1991
      %v2010 = vadd.f32 %v1916, %v1994
      %v2011 = vadd.f32 %v1917, %v1996
      %v2012 = vadd.f32 %v1918, %v1999
      %v2013 = vadd.f32 %v1919, %v2001
      %v2014 = vadd.f32 %v1920, %v2004
      %v2015 = vadd.f32 %v1921, %v2006
      %v2016 = vld [vmem:[#allocation3 + $0x8] sm:$0xf]
      %v2017 = vld [vmem:[#allocation3 + $0xc] sm:$0xf]
      %v2018 = vld [vmem:[#allocation3 + $0x10] sm:$0xf]
      %v2019 = vld [vmem:[#allocation3 + $0x14] sm:$0xf]
      %v2020 = vld [vmem:[#allocation3 + $0x18] sm:$0xf]
      %v2021 = vld [vmem:[#allocation3 + $0x1c] sm:$0xf]
      %v2022 = vld [vmem:[#allocation3 + $0x20] sm:$0xf]
      %v2023 = vld [vmem:[#allocation3 + $0x24] sm:$0xf]
      %v2024 = vld [vmem:[#allocation3 + $0x28] sm:$0x1]
      %s2025 = scalar_lea.vmem %s3, 64
      %v2026 = vld [vmem:[%s2025] sm:$0xf]
      %v2027 = vld [vmem:[%s2025 + $0x4] sm:$0xf]
      %v2028 = vld [vmem:[%s2025 + $0x8] sm:$0xf]
      %v2029 = vld [vmem:[%s2025 + $0xc] sm:$0xf]
      %v2039 = vunpack.c.l.b16 %v2016
      %v2040 = vunpack.c.l.b16 %v2017
      %v2041 = vunpack.c.l.b16 %v2018
      %v2042 = vunpack.c.l.b16 %v2019
      %v2043 = vunpack.c.l.b16 %v2020
      %v2044 = vunpack.c.l.b16 %v2021
      %v2045 = vunpack.c.l.b16 %v2022
      %v2046 = vunpack.c.l.b16 %v2023
      %v2047 = vunpack.c.l.b16 %v2024
      %v2048 = vpack.c.b16 %v2040, %v2039
      %v2049 = vpack.c.b16 %v2042, %v2041
      %v2050 = vpack.c.b16 %v2044, %v2043
      %v2051 = vpack.c.b16 %v2046, %v2045
      %v2052 = vpack.c.b16 %v2047, %v2047
      %v2054 = vshrl.u32 %v2048, 16
      %v2056 = vshll.u32 %v2048, 16
      %v2058 = vrot.slane %v2056, 1
      %v2059 = vor.u32 %v2054, %v2058
      %v2061 = vshll.u32 %v2049, 16
      %v2063 = vrot.slane %v2061, 1
      %v2064 = vsel %vm1702, %v2059, %v2063
      %v2065 = vshrl.u32 %v2049, 16
      %v2067 = vor.u32 %v2065, %v2063
      %v2069 = vshll.u32 %v2050, 16
      %v2071 = vrot.slane %v2069, 1
      %v2072 = vsel %vm1702, %v2067, %v2071
      %v2073 = vshrl.u32 %v2050, 16
      %v2075 = vor.u32 %v2073, %v2071
      %v2077 = vshll.u32 %v2051, 16
      %v2079 = vrot.slane %v2077, 1
      %v2080 = vsel %vm1702, %v2075, %v2079
      %v2081 = vshrl.u32 %v2051, 16
      %v2083 = vor.u32 %v2081, %v2079
      %v2085 = vshll.u32 %v2052, 16
      %v2087 = vrot.slane %v2085, 1
      %v2088 = vsel %vm1702, %v2083, %v2087
      %v2093 = vunpack.c.l.b16 %v2026
      %v2094 = vunpack.c.l.b16 %v2027
      %v2095 = vunpack.c.l.b16 %v2028
      %v2096 = vunpack.c.l.b16 %v2029
      %v2097 = vpack.c.b16 %v2094, %v2093
      %v2098 = vpack.c.b16 %v2096, %v2095
      %v2102 = vsel %vm1751, %v2064, 0
      %v2105 = vsel %vm1751, %v2072, 0
      %v2108 = vsel %vm1751, %v2080, 0
      %v2111 = vsel %vm1751, %v2088, 0
      %2113 = vmatpush.bf16.msra.mxu0 0
      %2114 = vmatpush.bf16.msra.mxu0 0
      %2115 = vmatpush.bf16.msra.mxu0 0
      %2116 = vmatpush.bf16.msra.mxu0 0
      %2117 = vmatpush.bf16.msra.mxu0 0
      %2118 = vmatpush.bf16.msra.mxu0 0
      %2119 = vmatpush.bf16.msra.mxu0 %v2098
      %2120 = vmatpush.bf16.msra.mxu0 %v2097
      %2121 = vmatmul.bf16.gmra.mxu0 %v2102
      %v2122 = vpop.f32.mrf.mxu0
      %v2123 = vadd.f32 0.0, %v2122
      %v2124 = vpop.f32.mrf.mxu0
      %v2125 = vadd.f32 0.0, %v2124
      %2126 = vmatmul.bf16.gmra.mxu0 %v2105
      %v2127 = vpop.f32.mrf.mxu0
      %v2128 = vadd.f32 0.0, %v2127
      %v2129 = vpop.f32.mrf.mxu0
      %v2130 = vadd.f32 0.0, %v2129
      %2131 = vmatmul.bf16.gmra.mxu0 %v2108
      %v2132 = vpop.f32.mrf.mxu0
      %v2133 = vadd.f32 0.0, %v2132
      %v2134 = vpop.f32.mrf.mxu0
      %v2135 = vadd.f32 0.0, %v2134
      %2136 = vmatmul.bf16.gmra.mxu0 %v2111
      %v2137 = vpop.f32.mrf.mxu0
      %v2138 = vadd.f32 0.0, %v2137
      %v2139 = vpop.f32.mrf.mxu0
      %v2140 = vadd.f32 0.0, %v2139
      %2141 = vdwg.mxu0
      %v2142 = vadd.f32 %v2008, %v2123
      %v2143 = vadd.f32 %v2009, %v2125
      %v2144 = vadd.f32 %v2010, %v2128
      %v2145 = vadd.f32 %v2011, %v2130
      %v2146 = vadd.f32 %v2012, %v2133
      %v2147 = vadd.f32 %v2013, %v2135
      %v2148 = vadd.f32 %v2014, %v2138
      %v2149 = vadd.f32 %v2015, %v2140
      %v2150 = vld [vmem:[#allocation3 + $0x8] sm:$0xe]
      %s2151 = scalar_lea.vmem %s3, 80
      %v2152 = vld [vmem:[%s2151] sm:$0xf]
      %v2153 = vld [vmem:[%s2151 + $0x4] sm:$0xf]
      %v2154 = vld [vmem:[%s2151 + $0x8] sm:$0xf]
      %v2155 = vld [vmem:[%s2151 + $0xc] sm:$0xf]
      %v2157 = vunpack.c.l.b16 %v2150
      %v2158 = vpack.c.b16 %v2040, %v2157
      %v2159 = vrot.slane %v2158, 1
      %v2160 = vrot.slane %v2049, 1
      %v2161 = vsel %vm1851, %v2159, %v2160
      %v2162 = vrot.slane %v2050, 1
      %v2163 = vsel %vm1851, %v2160, %v2162
      %v2164 = vrot.slane %v2051, 1
      %v2165 = vsel %vm1851, %v2162, %v2164
      %v2166 = vrot.slane %v2052, 1
      %v2167 = vsel %vm1851, %v2164, %v2166
      %v2172 = vunpack.c.l.b16 %v2152
      %v2173 = vunpack.c.l.b16 %v2153
      %v2174 = vunpack.c.l.b16 %v2154
      %v2175 = vunpack.c.l.b16 %v2155
      %v2176 = vpack.c.b16 %v2173, %v2172
      %v2177 = vpack.c.b16 %v2175, %v2174
      %v2181 = vsel %vm1751, %v2161, 0
      %v2184 = vsel %vm1751, %v2163, 0
      %v2187 = vsel %vm1751, %v2165, 0
      %v2190 = vsel %vm1751, %v2167, 0
      %2192 = vmatpush.bf16.msra.mxu0 0
      %2193 = vmatpush.bf16.msra.mxu0 0
      %2194 = vmatpush.bf16.msra.mxu0 0
      %2195 = vmatpush.bf16.msra.mxu0 0
      %2196 = vmatpush.bf16.msra.mxu0 0
      %2197 = vmatpush.bf16.msra.mxu0 0
      %2198 = vmatpush.bf16.msra.mxu0 %v2177
      %2199 = vmatpush.bf16.msra.mxu0 %v2176
      %2200 = vmatmul.bf16.gmra.mxu0 %v2181
      %v2201 = vpop.f32.mrf.mxu0
      %v2202 = vadd.f32 0.0, %v2201
      %v2203 = vpop.f32.mrf.mxu0
      %v2204 = vadd.f32 0.0, %v2203
      %2205 = vmatmul.bf16.gmra.mxu0 %v2184
      %v2206 = vpop.f32.mrf.mxu0
      %v2207 = vadd.f32 0.0, %v2206
      %v2208 = vpop.f32.mrf.mxu0
      %v2209 = vadd.f32 0.0, %v2208
      %2210 = vmatmul.bf16.gmra.mxu0 %v2187
      %v2211 = vpop.f32.mrf.mxu0
      %v2212 = vadd.f32 0.0, %v2211
      %v2213 = vpop.f32.mrf.mxu0
      %v2214 = vadd.f32 0.0, %v2213
      %2215 = vmatmul.bf16.gmra.mxu0 %v2190
      %v2216 = vpop.f32.mrf.mxu0
      %v2217 = vadd.f32 0.0, %v2216
      %v2218 = vpop.f32.mrf.mxu0
      %v2219 = vadd.f32 0.0, %v2218
      %2220 = vdwg.mxu0
      %v2221 = vadd.f32 %v2142, %v2202
      %v2222 = vadd.f32 %v2143, %v2204
      %v2223 = vadd.f32 %v2144, %v2207
      %v2224 = vadd.f32 %v2145, %v2209
      %v2225 = vadd.f32 %v2146, %v2212
      %v2226 = vadd.f32 %v2147, %v2214
      %v2227 = vadd.f32 %v2148, %v2217
      %v2228 = vadd.f32 %v2149, %v2219
      %v2229 = vld [vmem:[#allocation3 + $0x10] sm:$0xf]
      %v2230 = vld [vmem:[#allocation3 + $0x14] sm:$0xf]
      %v2231 = vld [vmem:[#allocation3 + $0x18] sm:$0xf]
      %v2232 = vld [vmem:[#allocation3 + $0x1c] sm:$0xf]
      %v2233 = vld [vmem:[#allocation3 + $0x20] sm:$0xf]
      %v2234 = vld [vmem:[#allocation3 + $0x24] sm:$0xf]
      %v2235 = vld [vmem:[#allocation3 + $0x28] sm:$0xf]
      %v2236 = vld [vmem:[#allocation3 + $0x2c] sm:$0xf]
      %s2237 = scalar_lea.vmem %s3, 96
      %v2238 = vld [vmem:[%s2237] sm:$0xf]
      %v2239 = vld [vmem:[%s2237 + $0x4] sm:$0xf]
      %v2240 = vld [vmem:[%s2237 + $0x8] sm:$0xf]
      %v2241 = vld [vmem:[%s2237 + $0xc] sm:$0xf]
      %v2250 = vunpack.c.l.b16 %v2229
      %v2251 = vunpack.c.l.b16 %v2230
      %v2252 = vunpack.c.l.b16 %v2231
      %v2253 = vunpack.c.l.b16 %v2232
      %v2254 = vunpack.c.l.b16 %v2233
      %v2255 = vunpack.c.l.b16 %v2234
      %v2256 = vunpack.c.l.b16 %v2235
      %v2257 = vunpack.c.l.b16 %v2236
      %v2258 = vpack.c.b16 %v2251, %v2250
      %v2259 = vpack.c.b16 %v2253, %v2252
      %v2260 = vpack.c.b16 %v2255, %v2254
      %v2261 = vpack.c.b16 %v2257, %v2256
      %v2266 = vunpack.c.l.b16 %v2238
      %v2267 = vunpack.c.l.b16 %v2239
      %v2268 = vunpack.c.l.b16 %v2240
      %v2269 = vunpack.c.l.b16 %v2241
      %v2270 = vpack.c.b16 %v2267, %v2266
      %v2271 = vpack.c.b16 %v2269, %v2268
      %v2275 = vsel %vm1751, %v2258, 0
      %v2278 = vsel %vm1751, %v2259, 0
      %v2281 = vsel %vm1751, %v2260, 0
      %v2284 = vsel %vm1751, %v2261, 0
      %2286 = vmatpush.bf16.msra.mxu0 0
      %2287 = vmatpush.bf16.msra.mxu0 0
      %2288 = vmatpush.bf16.msra.mxu0 0
      %2289 = vmatpush.bf16.msra.mxu0 0
      %2290 = vmatpush.bf16.msra.mxu0 0
      %2291 = vmatpush.bf16.msra.mxu0 0
      %2292 = vmatpush.bf16.msra.mxu0 %v2271
      %2293 = vmatpush.bf16.msra.mxu0 %v2270
      %2294 = vmatmul.bf16.gmra.mxu0 %v2275
      %v2295 = vpop.f32.mrf.mxu0
      %v2296 = vadd.f32 0.0, %v2295
      %v2297 = vpop.f32.mrf.mxu0
      %v2298 = vadd.f32 0.0, %v2297
      %2299 = vmatmul.bf16.gmra.mxu0 %v2278
      %v2300 = vpop.f32.mrf.mxu0
      %v2301 = vadd.f32 0.0, %v2300
      %v2302 = vpop.f32.mrf.mxu0
      %v2303 = vadd.f32 0.0, %v2302
      %2304 = vmatmul.bf16.gmra.mxu0 %v2281
      %v2305 = vpop.f32.mrf.mxu0
      %v2306 = vadd.f32 0.0, %v2305
      %v2307 = vpop.f32.mrf.mxu0
      %v2308 = vadd.f32 0.0, %v2307
      %2309 = vmatmul.bf16.gmra.mxu0 %v2284
      %v2310 = vpop.f32.mrf.mxu0
      %v2311 = vadd.f32 0.0, %v2310
      %v2312 = vpop.f32.mrf.mxu0
      %v2313 = vadd.f32 0.0, %v2312
      %2314 = vdwg.mxu0
      %v2315 = vadd.f32 %v2221, %v2296
      %v2316 = vadd.f32 %v2222, %v2298
      %v2317 = vadd.f32 %v2223, %v2301
      %v2318 = vadd.f32 %v2224, %v2303
      %v2319 = vadd.f32 %v2225, %v2306
      %v2320 = vadd.f32 %v2226, %v2308
      %v2321 = vadd.f32 %v2227, %v2311
      %v2322 = vadd.f32 %v2228, %v2313
      %v2323 = vld [vmem:[#allocation3 + $0x10] sm:$0xf]
      %v2324 = vld [vmem:[#allocation3 + $0x14] sm:$0xf]
      %v2325 = vld [vmem:[#allocation3 + $0x18] sm:$0xf]
      %v2326 = vld [vmem:[#allocation3 + $0x1c] sm:$0xf]
      %v2327 = vld [vmem:[#allocation3 + $0x20] sm:$0xf]
      %v2328 = vld [vmem:[#allocation3 + $0x24] sm:$0xf]
      %v2329 = vld [vmem:[#allocation3 + $0x28] sm:$0xf]
      %v2330 = vld [vmem:[#allocation3 + $0x2c] sm:$0xf]
      %v2331 = vld [vmem:[#allocation3 + $0x30] sm:$0x1]
      %s2332 = scalar_lea.vmem %s3, 112
      %v2333 = vld [vmem:[%s2332] sm:$0xf]
      %v2334 = vld [vmem:[%s2332 + $0x4] sm:$0xf]
      %v2335 = vld [vmem:[%s2332 + $0x8] sm:$0xf]
      %v2336 = vld [vmem:[%s2332 + $0xc] sm:$0xf]
      %v2346 = vunpack.c.l.b16 %v2323
      %v2347 = vunpack.c.l.b16 %v2324
      %v2348 = vunpack.c.l.b16 %v2325
      %v2349 = vunpack.c.l.b16 %v2326
      %v2350 = vunpack.c.l.b16 %v2327
      %v2351 = vunpack.c.l.b16 %v2328
      %v2352 = vunpack.c.l.b16 %v2329
      %v2353 = vunpack.c.l.b16 %v2330
      %v2354 = vunpack.c.l.b16 %v2331
      %v2355 = vpack.c.b16 %v2347, %v2346
      %v2356 = vpack.c.b16 %v2349, %v2348
      %v2357 = vpack.c.b16 %v2351, %v2350
      %v2358 = vpack.c.b16 %v2353, %v2352
      %v2359 = vpack.c.b16 %v2354, %v2354
      %v2361 = vshrl.u32 %v2355, 16
      %v2363 = vshll.u32 %v2355, 16
      %v2365 = vrot.slane %v2363, 1
      %v2366 = vor.u32 %v2361, %v2365
      %v2368 = vshll.u32 %v2356, 16
      %v2370 = vrot.slane %v2368, 1
      %v2371 = vsel %vm1702, %v2366, %v2370
      %v2372 = vshrl.u32 %v2356, 16
      %v2374 = vor.u32 %v2372, %v2370
      %v2376 = vshll.u32 %v2357, 16
      %v2378 = vrot.slane %v2376, 1
      %v2379 = vsel %vm1702, %v2374, %v2378
      %v2380 = vshrl.u32 %v2357, 16
      %v2382 = vor.u32 %v2380, %v2378
      %v2384 = vshll.u32 %v2358, 16
      %v2386 = vrot.slane %v2384, 1
      %v2387 = vsel %vm1702, %v2382, %v2386
      %v2388 = vshrl.u32 %v2358, 16
      %v2390 = vor.u32 %v2388, %v2386
      %v2392 = vshll.u32 %v2359, 16
      %v2394 = vrot.slane %v2392, 1
      %v2395 = vsel %vm1702, %v2390, %v2394
      %v2400 = vunpack.c.l.b16 %v2333
      %v2401 = vunpack.c.l.b16 %v2334
      %v2402 = vunpack.c.l.b16 %v2335
      %v2403 = vunpack.c.l.b16 %v2336
      %v2404 = vpack.c.b16 %v2401, %v2400
      %v2405 = vpack.c.b16 %v2403, %v2402
      %v2409 = vsel %vm1751, %v2371, 0
      %v2412 = vsel %vm1751, %v2379, 0
      %v2415 = vsel %vm1751, %v2387, 0
      %v2418 = vsel %vm1751, %v2395, 0
      %2420 = vmatpush.bf16.msra.mxu0 0
      %2421 = vmatpush.bf16.msra.mxu0 0
      %2422 = vmatpush.bf16.msra.mxu0 0
      %2423 = vmatpush.bf16.msra.mxu0 0
      %2424 = vmatpush.bf16.msra.mxu0 0
      %2425 = vmatpush.bf16.msra.mxu0 0
      %2426 = vmatpush.bf16.msra.mxu0 %v2405
      %2427 = vmatpush.bf16.msra.mxu0 %v2404
      %2428 = vmatmul.bf16.gmra.mxu0 %v2409
      %v2429 = vpop.f32.mrf.mxu0
      %v2430 = vadd.f32 0.0, %v2429
      %v2431 = vpop.f32.mrf.mxu0
      %v2432 = vadd.f32 0.0, %v2431
      %2433 = vmatmul.bf16.gmra.mxu0 %v2412
      %v2434 = vpop.f32.mrf.mxu0
      %v2435 = vadd.f32 0.0, %v2434
      %v2436 = vpop.f32.mrf.mxu0
      %v2437 = vadd.f32 0.0, %v2436
      %2438 = vmatmul.bf16.gmra.mxu0 %v2415
      %v2439 = vpop.f32.mrf.mxu0
      %v2440 = vadd.f32 0.0, %v2439
      %v2441 = vpop.f32.mrf.mxu0
      %v2442 = vadd.f32 0.0, %v2441
      %2443 = vmatmul.bf16.gmra.mxu0 %v2418
      %v2444 = vpop.f32.mrf.mxu0
      %v2445 = vadd.f32 0.0, %v2444
      %v2446 = vpop.f32.mrf.mxu0
      %v2447 = vadd.f32 0.0, %v2446
      %2448 = vdwg.mxu0
      %v2449 = vadd.f32 %v2315, %v2430
      %v2450 = vadd.f32 %v2316, %v2432
      %v2451 = vadd.f32 %v2317, %v2435
      %v2452 = vadd.f32 %v2318, %v2437
      %v2453 = vadd.f32 %v2319, %v2440
      %v2454 = vadd.f32 %v2320, %v2442
      %v2455 = vadd.f32 %v2321, %v2445
      %v2456 = vadd.f32 %v2322, %v2447
      %v2457 = vld [vmem:[#allocation3 + $0x10] sm:$0xe]
      %s2458 = scalar_lea.vmem %s3, 128
      %v2459 = vld [vmem:[%s2458] sm:$0xf]
      %v2460 = vld [vmem:[%s2458 + $0x4] sm:$0xf]
      %v2461 = vld [vmem:[%s2458 + $0x8] sm:$0xf]
      %v2462 = vld [vmem:[%s2458 + $0xc] sm:$0xf]
      %v2464 = vunpack.c.l.b16 %v2457
      %v2465 = vpack.c.b16 %v2347, %v2464
      %v2466 = vrot.slane %v2465, 1
      %v2467 = vrot.slane %v2356, 1
      %v2468 = vsel %vm1851, %v2466, %v2467
      %v2469 = vrot.slane %v2357, 1
      %v2470 = vsel %vm1851, %v2467, %v2469
      %v2471 = vrot.slane %v2358, 1
      %v2472 = vsel %vm1851, %v2469, %v2471
      %v2473 = vrot.slane %v2359, 1
      %v2474 = vsel %vm1851, %v2471, %v2473
      %v2479 = vunpack.c.l.b16 %v2459
      %v2480 = vunpack.c.l.b16 %v2460
      %v2481 = vunpack.c.l.b16 %v2461
      %v2482 = vunpack.c.l.b16 %v2462
      %v2483 = vpack.c.b16 %v2480, %v2479
      %v2484 = vpack.c.b16 %v2482, %v2481
      %v2488 = vsel %vm1751, %v2468, 0
      %v2491 = vsel %vm1751, %v2470, 0
      %v2494 = vsel %vm1751, %v2472, 0
      %v2497 = vsel %vm1751, %v2474, 0
      %2499 = vmatpush.bf16.msra.mxu0 0
      %2500 = vmatpush.bf16.msra.mxu0 0
      %2501 = vmatpush.bf16.msra.mxu0 0
      %2502 = vmatpush.bf16.msra.mxu0 0
      %2503 = vmatpush.bf16.msra.mxu0 0
      %2504 = vmatpush.bf16.msra.mxu0 0
      %2505 = vmatpush.bf16.msra.mxu0 %v2484
      %2506 = vmatpush.bf16.msra.mxu0 %v2483
      %2507 = vmatmul.bf16.gmra.mxu0 %v2488
      %v2508 = vpop.f32.mrf.mxu0
      %v2509 = vadd.f32 0.0, %v2508
      %v2510 = vpop.f32.mrf.mxu0
      %v2511 = vadd.f32 0.0, %v2510
      %2512 = vmatmul.bf16.gmra.mxu0 %v2491
      %v2513 = vpop.f32.mrf.mxu0
      %v2514 = vadd.f32 0.0, %v2513
      %v2515 = vpop.f32.mrf.mxu0
      %v2516 = vadd.f32 0.0, %v2515
      %2517 = vmatmul.bf16.gmra.mxu0 %v2494
      %v2518 = vpop.f32.mrf.mxu0
      %v2519 = vadd.f32 0.0, %v2518
      %v2520 = vpop.f32.mrf.mxu0
      %v2521 = vadd.f32 0.0, %v2520
      %2522 = vmatmul.bf16.gmra.mxu0 %v2497
      %v2523 = vpop.f32.mrf.mxu0
      %v2524 = vadd.f32 0.0, %v2523
      %v2525 = vpop.f32.mrf.mxu0
      %v2526 = vadd.f32 0.0, %v2525
      %2527 = vdwg.mxu0
      %v2528 = vadd.f32 %v2449, %v2509
      %v2529 = vadd.f32 %v2450, %v2511
      %v2530 = vadd.f32 %v2451, %v2514
      %v2531 = vadd.f32 %v2452, %v2516
      %v2532 = vadd.f32 %v2453, %v2519
      %v2533 = vadd.f32 %v2454, %v2521
      %v2534 = vadd.f32 %v2455, %v2524
      %v2535 = vadd.f32 %v2456, %v2526
      %v2536 = vld [vmem:[%s4] sm:$0x1]
      %v2538 = vperm.slane %v2536, 0
      %v2540 = vadd.f32 %v2528, %v2538
      %v2541 = vadd.f32 %v2529, %v2538
      %v2542 = vadd.f32 %v2530, %v2538
      %v2543 = vadd.f32 %v2531, %v2538
      %v2544 = vadd.f32 %v2532, %v2538
      %v2545 = vadd.f32 %v2533, %v2538
      %v2546 = vadd.f32 %v2534, %v2538
      %v2547 = vadd.f32 %v2535, %v2538
      %2548 = vst.msk [vmem:[%s224] sm:$0xff] %vm554, %v2540
      %2549 = vst.msk [vmem:[%s224 + $0x8] sm:$0xff] %vm554, %v2541
      %2550 = vst.msk [vmem:[%s224 + $0x10] sm:$0xff] %vm554, %v2542
      %2551 = vst.msk [vmem:[%s224 + $0x18] sm:$0xff] %vm554, %v2543
      %2552 = vst.msk [vmem:[%s224 + $0x20] sm:$0xff] %vm554, %v2544
      %2553 = vst.msk [vmem:[%s224 + $0x28] sm:$0xff] %vm554, %v2545
      %2554 = vst.msk [vmem:[%s224 + $0x30] sm:$0xff] %vm554, %v2546
      %2555 = vst.msk [vmem:[%s224 + $0x38] sm:$0xff] %vm554, %v2547
      %p2556 = scmp.lt.s32.totalorder %s16, 1
      %s2557 = scalar_select %p2556, %s16, 1
      %s2558 = smul.addr %s2557, 8
      %s2559 = smul.addr %s2558, 8
      %s2560 = scalar_lea.vmem %s5, %s2559
      // Predicated region
      $region41: #{tpu_custom_call.1} parent=39 // pred_check
        %p2561 = pneg %p144
      $region42: #{tpu_custom_call.1} parent=39 // pred_check_branch
        %2563 = sbr.rel (%p2561) target = $region44
      $region43: #{tpu_custom_call.1} parent=39 // pred_region
        _
      $region44: #{tpu_custom_call.1} parent=39 // pred_fallthru
        _
    $region40: #{tpu_custom_call.1} parent=5 // pred_fallthru
      _
    %p2564 = scmp.le.s32.totalorder 2, %s11
    // Predicated region
    $region45: #{tpu_custom_call.1} parent=5 // pred_check
      %p2565 = pneg %p2564
    $region46: #{tpu_custom_call.1} parent=5 // pred_check_branch
      %2567 = sbr.rel (%p2565) target = $region48
    $region47: #{tpu_custom_call.1} parent=5 // pred_region
      %s2568 = ssub.s32 %s11, 2
      // Predicated region
      $region49: #{tpu_custom_call.1} parent=47 // pred_check
        %p2569 = pneg %p150
      $region50: #{tpu_custom_call.1} parent=47 // pred_check_branch
        %2571 = sbr.rel (%p2569) target = $region52
      $region51: #{tpu_custom_call.1} parent=47 // pred_region
        %p2572 = scmp.lt.s32.totalorder %s17, 1
        %s2573 = scalar_select %p2572, %s17, 1
        %s2574 = smul.addr %s2573, 8
        %s2575 = smul.addr %s2574, 8
        %s2576 = scalar_lea.vmem %s5, %s2575
      $region52: #{tpu_custom_call.1} parent=47 // pred_fallthru
        _
    $region48: #{tpu_custom_call.1} parent=5 // pred_fallthru
      _
  $region6: #{tpu_custom_call.1} parent=0 // loop_footer
    %s15 = sadd.s32 1, %s11
  $region7: #{tpu_custom_call.1} parent=0 // loop_footer_branch
    %10 = sbr.rel target = $region3
  $region8: #{tpu_custom_call.1} parent=0 // loop_exit
    _

// kernel: tpu_custom_call.1
$region0: #{tpu_custom_call.1}
  #allocation0 [shape = 'u32[]', space=smem, size = 0x4, offset = 0x4, fixed_abs, tag = 'smem constant byte address 0x4 - core index']
  #allocation1 [shape = 'u32[72,128]{1,0:T(1,128)}', space=vmem, size = 0x9000, scoped, tag = 'internal scratch']
  #allocation2 [shape = 'bf16[3,96,16]{2,1,0:T(8,128)(2,1)}', space=vmem, size = 0x12000, scoped, tag = 'scratch operand']
  #allocation3 [shape = 'bf16[112,32]{1,0:T(8,128)(2,1)}', space=vmem, size = 0x7000, scoped, tag = 'scratch operand']
  %s0 = inlined_call_operand.vmem [shape: bf16[2,112,16], index: 0, kind: input, shape index: {}]
  %s1 = inlined_call_operand.vmem [shape: bf16[9,16,32], index: 1, kind: input, shape index: {}]
  %s2 = inlined_call_operand.vmem [shape: f32[1,32], index: 2, kind: input, shape index: {}]
  %s3 = inlined_call_operand.vmem [shape: bf16[9,32,16], index: 3, kind: input, shape index: {}]
  %s4 = inlined_call_operand.vmem [shape: f32[1,16], index: 4, kind: input, shape index: {}]
  %s5 = inlined_call_operand.vmem [shape: f32[2,64,16], index: 5, kind: output, shape index: {}]
  %s6 = sld [smem:[#allocation0]]
  $region53: #{tpu_custom_call.1} parent=0
    _
  %s8 = ssub.s32 1, %s6
  %s9 = scalar_select 0, %s8, %s6
  loop: start=0, step=1, limit=4
  $region2: #{tpu_custom_call.1} parent=0 // loop_pre_header
    _
  $region3: #{tpu_custom_call.1} parent=0 // loop_header
    %s11 = sphi 0, %s15
    %p12 = scmp.ge.s32.totalorder %s11, 4
    %s21 = sphi 0, %s23
    %s24 = sphi 0, %s21
    %s25 = sphi 0, %s24
    %s41 = sphi 0, %s25
    %s45 = sphi 0, %s45
    %s47 = sphi 0, %s45
    %s48 = sphi 0, %s47
    %s62 = sphi 0, %s48
    %s66 = sphi 0, %s66
    %s68 = sphi 0, %s66
    %s69 = sphi 0, %s68
    %s83 = sphi 0, %s69
    %s87 = sphi 0, %s87
    %s89 = sphi 0, %s87
    %s90 = sphi 0, %s89
    %s104 = sphi 0, %s90
    %s108 = sphi 0, %s108
    %s110 = sphi 0, %s108
    %s111 = sphi 0, %s110
    %s125 = sphi 0, %s111
    %s131 = sphi 0, %s133
    %s134 = sphi 0, %s131
    %s135 = sphi 0, %s134
    %s151 = sphi 0, %s135
  $region4: #{tpu_custom_call.1} parent=0 // loop_header_branch
    %14 = sbr.rel (%p12) target = $region8
  $region5: #{tpu_custom_call.1} parent=0 // loop_body
    %s16 = ssub.s32 %s11, 1
    %s17 = ssub.s32 %s11, 2
    %s18 = sadd.s32 %s11, 1
    %s19 = ssub.s32 %s11, %s18
    %p20 = scmp.eq.s32.totalorder %s19, 0
    %s22 = sadd.s32 %s21, 1
    %s23 = scalar_select %p20, %s21, %s22
    %p26 = pneg %p20
    %p27 = scmp.eq.s32.totalorder %s11, 1
    %p28 = por %p26, %p27
    %p29 = scmp.ne.s32.totalorder %s21, %s24
    %p30 = scmp.eq.s32.totalorder %s11, 0
    %p31 = por %p29, %p30
    %p32 = scmp.ne.s32.totalorder %s21, %s24
    %p33 = scmp.eq.s32.totalorder %s16, 1
    %p34 = por %p32, %p33
    %p35 = scmp.ne.s32.totalorder %s24, %s25
    %p36 = scmp.eq.s32.totalorder %s16, 0
    %p37 = por %p35, %p36
    %p38 = scmp.ne.s32.totalorder %s24, %s25
    %p39 = scmp.eq.s32.totalorder %s17, 1
    %p40 = por %p38, %p39
    %p42 = scmp.ne.s32.totalorder %s25, %s41
    %p43 = scmp.eq.s32.totalorder %s17, 0
    %p44 = por %p42, %p43
    %s46 = sadd.s32 %s45, 1
    %p49 = scmp.eq.s32.totalorder %s11, 1
    %p50 = scmp.ne.s32.totalorder %s45, %s47
    %p51 = scmp.eq.s32.totalorder %s11, 0
    %p52 = por %p50, %p51
    %p53 = scmp.ne.s32.totalorder %s45, %s47
    %p54 = scmp.eq.s32.totalorder %s16, 1
    %p55 = por %p53, %p54
    %p56 = scmp.ne.s32.totalorder %s47, %s48
    %p57 = scmp.eq.s32.totalorder %s16, 0
    %p58 = por %p56, %p57
    %p59 = scmp.ne.s32.totalorder %s47, %s48
    %p60 = scmp.eq.s32.totalorder %s17, 1
    %p61 = por %p59, %p60
    %p63 = scmp.ne.s32.totalorder %s48, %s62
    %p64 = scmp.eq.s32.totalorder %s17, 0
    %p65 = por %p63, %p64
    %s67 = sadd.s32 %s66, 1
    %p70 = scmp.eq.s32.totalorder %s11, 1
    %p71 = scmp.ne.s32.totalorder %s66, %s68
    %p72 = scmp.eq.s32.totalorder %s11, 0
    %p73 = por %p71, %p72
    %p74 = scmp.ne.s32.totalorder %s66, %s68
    %p75 = scmp.eq.s32.totalorder %s16, 1
    %p76 = por %p74, %p75
    %p77 = scmp.ne.s32.totalorder %s68, %s69
    %p78 = scmp.eq.s32.totalorder %s16, 0
    %p79 = por %p77, %p78
    %p80 = scmp.ne.s32.totalorder %s68, %s69
    %p81 = scmp.eq.s32.totalorder %s17, 1
    %p82 = por %p80, %p81
    %p84 = scmp.ne.s32.totalorder %s69, %s83
    %p85 = scmp.eq.s32.totalorder %s17, 0
    %p86 = por %p84, %p85
    %s88 = sadd.s32 %s87, 1
    %p91 = scmp.eq.s32.totalorder %s11, 1
    %p92 = scmp.ne.s32.totalorder %s87, %s89
    %p93 = scmp.eq.s32.totalorder %s11, 0
    %p94 = por %p92, %p93
    %p95 = scmp.ne.s32.totalorder %s87, %s89
    %p96 = scmp.eq.s32.totalorder %s16, 1
    %p97 = por %p95, %p96
    %p98 = scmp.ne.s32.totalorder %s89, %s90
    %p99 = scmp.eq.s32.totalorder %s16, 0
    %p100 = por %p98, %p99
    %p101 = scmp.ne.s32.totalorder %s89, %s90
    %p102 = scmp.eq.s32.totalorder %s17, 1
    %p103 = por %p101, %p102
    %p105 = scmp.ne.s32.totalorder %s90, %s104
    %p106 = scmp.eq.s32.totalorder %s17, 0
    %p107 = por %p105, %p106
    %s109 = sadd.s32 %s108, 1
    %p112 = scmp.eq.s32.totalorder %s11, 1
    %p113 = scmp.ne.s32.totalorder %s108, %s110
    %p114 = scmp.eq.s32.totalorder %s11, 0
    %p115 = por %p113, %p114
    %p116 = scmp.ne.s32.totalorder %s108, %s110
    %p117 = scmp.eq.s32.totalorder %s16, 1
    %p118 = por %p116, %p117
    %p119 = scmp.ne.s32.totalorder %s110, %s111
    %p120 = scmp.eq.s32.totalorder %s16, 0
    %p121 = por %p119, %p120
    %p122 = scmp.ne.s32.totalorder %s110, %s111
    %p123 = scmp.eq.s32.totalorder %s17, 1
    %p124 = por %p122, %p123
    %p126 = scmp.ne.s32.totalorder %s111, %s125
    %p127 = scmp.eq.s32.totalorder %s17, 0
    %p128 = por %p126, %p127
    %s129 = ssub.s32 %s11, %s18
    %p130 = scmp.eq.s32.totalorder %s129, 0
    %s132 = sadd.s32 %s131, 1
    %s133 = scalar_select %p130, %s131, %s132
    %p136 = pneg %p130
    %p137 = scmp.eq.s32.totalorder %s11, 1
    %p138 = por %p136, %p137
    %p139 = scmp.ne.s32.totalorder %s131, %s134
    %p140 = scmp.eq.s32.totalorder %s11, 0
    %p141 = por %p139, %p140
    %p142 = scmp.ne.s32.totalorder %s131, %s134
    %p143 = scmp.eq.s32.totalorder %s16, 1
    %p144 = por %p142, %p143
    %p145 = scmp.ne.s32.totalorder %s134, %s135
    %p146 = scmp.eq.s32.totalorder %s16, 0
    %p147 = por %p145, %p146
    %p148 = scmp.ne.s32.totalorder %s134, %s135
    %p149 = scmp.eq.s32.totalorder %s17, 1
    %p150 = por %p148, %p149
    %p152 = scmp.ne.s32.totalorder %s135, %s151
    %p153 = scmp.eq.s32.totalorder %s17, 0
    %p154 = por %p152, %p153
    %p155 = scmp.le.s32.totalorder 1, %s11
    %p156 = scmp.lt.s32.totalorder %s11, 3
    %p157 = pnand %p155, %p156
    %p158 = pneg %p157
    // Predicated region
    $region9: #{tpu_custom_call.1} parent=5 // pred_check
      _
    $region10: #{tpu_custom_call.1} parent=5 // pred_check_branch
      %160 = sbr.rel (%p157) target = $region12
    $region11: #{tpu_custom_call.1} parent=5 // pred_region
      %s161 = ssub.s32 %s11, 1
      // Predicated region
      $region13: #{tpu_custom_call.1} parent=11 // pred_check
        %p162 = pneg %p58
      $region14: #{tpu_custom_call.1} parent=11 // pred_check_branch
        %164 = sbr.rel (%p162) target = $region16
      $region15: #{tpu_custom_call.1} parent=11 // pred_region
        _
      $region16: #{tpu_custom_call.1} parent=11 // pred_fallthru
        _
      // Predicated region
      $region17: #{tpu_custom_call.1} parent=11 // pred_check
        %p165 = pneg %p79
      $region18: #{tpu_custom_call.1} parent=11 // pred_check_branch
        %167 = sbr.rel (%p165) target = $region20
      $region19: #{tpu_custom_call.1} parent=11 // pred_region
        _
      $region20: #{tpu_custom_call.1} parent=11 // pred_fallthru
        _
      // Predicated region
      $region21: #{tpu_custom_call.1} parent=11 // pred_check
        %p168 = pneg %p100
      $region22: #{tpu_custom_call.1} parent=11 // pred_check_branch
        %170 = sbr.rel (%p168) target = $region24
      $region23: #{tpu_custom_call.1} parent=11 // pred_region
        _
      $region24: #{tpu_custom_call.1} parent=11 // pred_fallthru
        _
      // Predicated region
      $region25: #{tpu_custom_call.1} parent=11 // pred_check
        %p171 = pneg %p121
      $region26: #{tpu_custom_call.1} parent=11 // pred_check_branch
        %173 = sbr.rel (%p171) target = $region28
      $region27: #{tpu_custom_call.1} parent=11 // pred_region
        _
      $region28: #{tpu_custom_call.1} parent=11 // pred_fallthru
        _
    $region12: #{tpu_custom_call.1} parent=5 // pred_fallthru
      _
    %p174 = scmp.lt.s32.totalorder %s11, 2
    // Predicated region
    $region29: #{tpu_custom_call.1} parent=5 // pred_check
      %p175 = pneg %p174
    $region30: #{tpu_custom_call.1} parent=5 // pred_check_branch
      %177 = sbr.rel (%p175) target = $region32
    $region31: #{tpu_custom_call.1} parent=5 // pred_region
      // Predicated region
      $region33: #{tpu_custom_call.1} parent=31 // pred_check
        %p178 = pneg %p31
      $region34: #{tpu_custom_call.1} parent=31 // pred_check_branch
        %180 = sbr.rel (%p178) target = $region36
      $region35: #{tpu_custom_call.1} parent=31 // pred_region
        %p181 = scmp.lt.s32.totalorder %s11, 1
        %s182 = scalar_select %p181, %s11, 1
        %s183 = smul.addr %s182, 14
        %s184 = smul.addr %s183, 4
        %s185 = scalar_lea.vmem %s0, %s184
      $region36: #{tpu_custom_call.1} parent=31 // pred_fallthru
        _
    $region32: #{tpu_custom_call.1} parent=5 // pred_fallthru
      _
    %p186 = scmp.le.s32.totalorder 1, %s11
    %p187 = scmp.lt.s32.totalorder %s11, 3
    %p188 = pnand %p186, %p187
    %p189 = pneg %p188
    // Predicated region
    $region37: #{tpu_custom_call.1} parent=5 // pred_check
      _
    $region38: #{tpu_custom_call.1} parent=5 // pred_check_branch
      %191 = sbr.rel (%p188) target = $region40
    $region39: #{tpu_custom_call.1} parent=5 // pred_region
      %s192 = ssub.s32 %s11, 1
      %p193 = scmp.lt.s32.totalorder %s16, 1
      %s194 = scalar_select %p193, %s16, 1
      %s195 = smul.addr %s194, 14
      %s196 = smul.addr %s195, 4
      %s197 = scalar_lea.vmem %s0, %s196
      %p198 = pneg %p37
      %p199 = pneg %p34
      %p200 = pneg %p58
      %p201 = pneg %p55
      %p202 = pneg %p79
      %p203 = pneg %p76
      %p204 = pneg %p100
      %p205 = pneg %p97
      %p206 = pneg %p121
      %p207 = pneg %p118
      %p208 = pneg %p147
      %p209 = pneg %p144
      %p210 = scmp.lt.s32.totalorder %s16, 1
      %s211 = scalar_select %p210, %s16, 1
      %s212 = smul.addr %s211, 8
      %s213 = smul.addr %s212, 8
      %s214 = scalar_lea.vmem %s5, %s213
      %p215 = scmp.lt.s32.totalorder %s16, 1
      %s216 = scalar_select %p215, %s16, 1
      %s217 = smul.addr %s216, 14
      %s218 = smul.addr %s217, 4
      %s219 = scalar_lea.vmem %s0, %s218
      %p220 = scmp.lt.s32.totalorder %s16, 1
      %s221 = scalar_select %p220, %s16, 1
      %s222 = smul.addr %s221, 8
      %s223 = smul.addr %s222, 8
      %s224 = scalar_lea.vmem %s5, %s223
      %v226 = vld [vmem:[%s219] sm:$0xf]
      %v227 = vld [vmem:[%s219 + $0x4] sm:$0xf]
      %v228 = vld [vmem:[%s219 + $0x8] sm:$0xf]
      %v229 = vld [vmem:[%s219 + $0xc] sm:$0xf]
      %v230 = vld [vmem:[%s219 + $0x10] sm:$0xf]
      %v231 = vld [vmem:[%s219 + $0x14] sm:$0xf]
      %v232 = vld [vmem:[%s219 + $0x18] sm:$0xf]
      %v233 = vld [vmem:[%s219 + $0x1c] sm:$0xf]
      %v234 = vld [vmem:[%s219 + $0x20] sm:$0xf]
      %v235 = vld [vmem:[%s219 + $0x24] sm:$0xf]
      %v236 = vld [vmem:[%s219 + $0x28] sm:$0xf]
      %v237 = vld [vmem:[%s219 + $0x2c] sm:$0xf]
      %vm238 = vcmask 125952
      %239 = vst.msk [vmem:[#allocation2] sm:$0xf] %vm238, %v226
      %240 = vst.msk [vmem:[#allocation2 + $0x4] sm:$0xf] %vm238, %v227
      %241 = vst.msk [vmem:[#allocation2 + $0x8] sm:$0xf] %vm238, %v228
      %242 = vst.msk [vmem:[#allocation2 + $0xc] sm:$0xf] %vm238, %v229
      %243 = vst.msk [vmem:[#allocation2 + $0x10] sm:$0xf] %vm238, %v230
      %244 = vst.msk [vmem:[#allocation2 + $0x14] sm:$0xf] %vm238, %v231
      %245 = vst.msk [vmem:[#allocation2 + $0x18] sm:$0xf] %vm238, %v232
      %246 = vst.msk [vmem:[#allocation2 + $0x1c] sm:$0xf] %vm238, %v233
      %247 = vst.msk [vmem:[#allocation2 + $0x20] sm:$0xf] %vm238, %v234
      %248 = vst.msk [vmem:[#allocation2 + $0x24] sm:$0xf] %vm238, %v235
      %249 = vst.msk [vmem:[#allocation2 + $0x28] sm:$0xf] %vm238, %v236
      %250 = vst.msk [vmem:[#allocation2 + $0x2c] sm:$0xf] %vm238, %v237
      %v251 = vld [vmem:[%s219] sm:$0xf]
      %v252 = vld [vmem:[%s219 + $0x4] sm:$0xf]
      %v253 = vld [vmem:[%s219 + $0x8] sm:$0xf]
      %v254 = vld [vmem:[%s219 + $0xc] sm:$0xf]
      %v255 = vld [vmem:[%s219 + $0x10] sm:$0xf]
      %v256 = vld [vmem:[%s219 + $0x14] sm:$0xf]
      %v257 = vld [vmem:[%s219 + $0x18] sm:$0xf]
      %v258 = vld [vmem:[%s219 + $0x1c] sm:$0xf]
      %v259 = vld [vmem:[%s219 + $0x20] sm:$0xf]
      %v260 = vld [vmem:[%s219 + $0x24] sm:$0xf]
      %v261 = vld [vmem:[%s219 + $0x28] sm:$0xf]
      %v262 = vld [vmem:[%s219 + $0x2c] sm:$0xf]
      %v263 = vld [vmem:[%s219 + $0x30] sm:$0x1]
      %vm264 = vsmask.f32 3328
      %vm265 = vsmask.f32 7440
      %vm266 = vmor %vm264, %vm265
      %v268 = vshrl.u32 %v251, 16
      %v270 = vrot.slane %v268, 4
      %v271 = vshll.u32 %v251, 16
      %v273 = vrot.slane %v271, 5
      %v274 = vor.u32 %v270, %v273
      %v275 = vrot.slane %v274, 4
      %v277 = vshll.u32 %v252, 16
      %v279 = vrot.slane %v277, 5
      %v280 = vsel %vm266, %v275, %v279
      %v281 = vshrl.u32 %v252, 16
      %v283 = vrot.slane %v281, 4
      %v284 = vor.u32 %v283, %v279
      %v285 = vrot.slane %v284, 4
      %v287 = vshll.u32 %v253, 16
      %v289 = vrot.slane %v287, 5
      %v290 = vsel %vm266, %v285, %v289
      %v291 = vshrl.u32 %v253, 16
      %v293 = vrot.slane %v291, 4
      %v294 = vor.u32 %v293, %v289
      %v295 = vrot.slane %v294, 4
      %v297 = vshll.u32 %v254, 16
      %v299 = vrot.slane %v297, 5
      %v300 = vsel %vm266, %v295, %v299
      %v301 = vshrl.u32 %v254, 16
      %v303 = vrot.slane %v301, 4
      %v304 = vor.u32 %v303, %v299
      %v305 = vrot.slane %v304, 4
      %v307 = vshll.u32 %v255, 16
      %v309 = vrot.slane %v307, 5
      %v310 = vsel %vm266, %v305, %v309
      %v311 = vshrl.u32 %v255, 16
      %v313 = vrot.slane %v311, 4
      %v314 = vor.u32 %v313, %v309
      %v315 = vrot.slane %v314, 4
      %v317 = vshll.u32 %v256, 16
      %v319 = vrot.slane %v317, 5
      %v320 = vsel %vm266, %v315, %v319
      %v321 = vshrl.u32 %v256, 16
      %v323 = vrot.slane %v321, 4
      %v324 = vor.u32 %v323, %v319
      %v325 = vrot.slane %v324, 4
      %v327 = vshll.u32 %v257, 16
      %v329 = vrot.slane %v327, 5
      %v330 = vsel %vm266, %v325, %v329
      %v331 = vshrl.u32 %v257, 16
      %v333 = vrot.slane %v331, 4
      %v334 = vor.u32 %v333, %v329
      %v335 = vrot.slane %v334, 4
      %v337 = vshll.u32 %v258, 16
      %v339 = vrot.slane %v337, 5
      %v340 = vsel %vm266, %v335, %v339
      %v341 = vshrl.u32 %v258, 16
      %v343 = vrot.slane %v341, 4
      %v344 = vor.u32 %v343, %v339
      %v345 = vrot.slane %v344, 4
      %v347 = vshll.u32 %v259, 16
      %v349 = vrot.slane %v347, 5
      %v350 = vsel %vm266, %v345, %v349
      %v351 = vshrl.u32 %v259, 16
      %v353 = vrot.slane %v351, 4
      %v354 = vor.u32 %v353, %v349
      %v355 = vrot.slane %v354, 4
      %v357 = vshll.u32 %v260, 16
      %v359 = vrot.slane %v357, 5
      %v360 = vsel %vm266, %v355, %v359
      %v361 = vshrl.u32 %v260, 16
      %v363 = vrot.slane %v361, 4
      %v364 = vor.u32 %v363, %v359
      %v365 = vrot.slane %v364, 4
      %v367 = vshll.u32 %v261, 16
      %v369 = vrot.slane %v367, 5
      %v370 = vsel %vm266, %v365, %v369
      %v371 = vshrl.u32 %v261, 16
      %v373 = vrot.slane %v371, 4
      %v374 = vor.u32 %v373, %v369
      %v375 = vrot.slane %v374, 4
      %v377 = vshll.u32 %v262, 16
      %v379 = vrot.slane %v377, 5
      %v380 = vsel %vm266, %v375, %v379
      %v381 = vshrl.u32 %v262, 16
      %v383 = vrot.slane %v381, 4
      %v384 = vor.u32 %v383, %v379
      %v385 = vrot.slane %v384, 4
      %v387 = vshll.u32 %v263, 16
      %v389 = vrot.slane %v387, 5
      %v390 = vsel %vm266, %v385, %v389
      %s403 = scalar_lea.vmem [#allocation2], 48
      %404 = vst.msk [vmem:[%s403] sm:$0xf] %vm238, %v280
      %405 = vst.msk [vmem:[%s403 + $0x4] sm:$0xf] %vm238, %v290
      %406 = vst.msk [vmem:[%s403 + $0x8] sm:$0xf] %vm238, %v300
      %407 = vst.msk [vmem:[%s403 + $0xc] sm:$0xf] %vm238, %v310
      %408 = vst.msk [vmem:[%s403 + $0x10] sm:$0xf] %vm238, %v320
      %409 = vst.msk [vmem:[%s403 + $0x14] sm:$0xf] %vm238, %v330
      %410 = vst.msk [vmem:[%s403 + $0x18] sm:$0xf] %vm238, %v340
      %411 = vst.msk [vmem:[%s403 + $0x1c] sm:$0xf] %vm238, %v350
      %412 = vst.msk [vmem:[%s403 + $0x20] sm:$0xf] %vm238, %v360
      %413 = vst.msk [vmem:[%s403 + $0x24] sm:$0xf] %vm238, %v370
      %414 = vst.msk [vmem:[%s403 + $0x28] sm:$0xf] %vm238, %v380
      %415 = vst.msk [vmem:[%s403 + $0x2c] sm:$0xf] %vm238, %v390
      %v416 = vld [vmem:[%s219] sm:$0xe]
      %v417 = vld [vmem:[%s219 + $0x4] sm:$0xf]
      %v418 = vld [vmem:[%s219 + $0x8] sm:$0xf]
      %v419 = vld [vmem:[%s219 + $0xc] sm:$0xf]
      %v420 = vld [vmem:[%s219 + $0x10] sm:$0xf]
      %v421 = vld [vmem:[%s219 + $0x14] sm:$0xf]
      %v422 = vld [vmem:[%s219 + $0x18] sm:$0xf]
      %v423 = vld [vmem:[%s219 + $0x1c] sm:$0xf]
      %v424 = vld [vmem:[%s219 + $0x20] sm:$0xf]
      %v425 = vld [vmem:[%s219 + $0x24] sm:$0xf]
      %v426 = vld [vmem:[%s219 + $0x28] sm:$0xf]
      %v427 = vld [vmem:[%s219 + $0x2c] sm:$0xf]
      %v428 = vld [vmem:[%s219 + $0x30] sm:$0x1]
      %vm442 = vcmask 1042432
      %vm443 = vcmask 1046532
      %vm444 = vmor %vm442, %vm443
      %v445 = vrot.slane %v416, 5
      %v446 = vrot.slane %v445, 4
      %v447 = vrot.slane %v417, 5
      %v448 = vsel %vm444, %v446, %v447
      %v449 = vrot.slane %v447, 4
      %v450 = vrot.slane %v418, 5
      %v451 = vsel %vm444, %v449, %v450
      %v452 = vrot.slane %v450, 4
      %v453 = vrot.slane %v419, 5
      %v454 = vsel %vm444, %v452, %v453
      %v455 = vrot.slane %v453, 4
      %v456 = vrot.slane %v420, 5
      %v457 = vsel %vm444, %v455, %v456
      %v458 = vrot.slane %v456, 4
      %v459 = vrot.slane %v421, 5
      %v460 = vsel %vm444, %v458, %v459
      %v461 = vrot.slane %v459, 4
      %v462 = vrot.slane %v422, 5
      %v463 = vsel %vm444, %v461, %v462
      %v464 = vrot.slane %v462, 4
      %v465 = vrot.slane %v423, 5
      %v466 = vsel %vm444, %v464, %v465
      %v467 = vrot.slane %v465, 4
      %v468 = vrot.slane %v424, 5
      %v469 = vsel %vm444, %v467, %v468
      %v470 = vrot.slane %v468, 4
      %v471 = vrot.slane %v425, 5
      %v472 = vsel %vm444, %v470, %v471
      %v473 = vrot.slane %v471, 4
      %v474 = vrot.slane %v426, 5
      %v475 = vsel %vm444, %v473, %v474
      %v476 = vrot.slane %v474, 4
      %v477 = vrot.slane %v427, 5
      %v478 = vsel %vm444, %v476, %v477
      %v479 = vrot.slane %v477, 4
      %v480 = vrot.slane %v428, 5
      %v481 = vsel %vm444, %v479, %v480
      %s494 = scalar_lea.vmem [#allocation2], 96
      %495 = vst.msk [vmem:[%s494] sm:$0xf] %vm238, %v448
      %496 = vst.msk [vmem:[%s494 + $0x4] sm:$0xf] %vm238, %v451
      %497 = vst.msk [vmem:[%s494 + $0x8] sm:$0xf] %vm238, %v454
      %498 = vst.msk [vmem:[%s494 + $0xc] sm:$0xf] %vm238, %v457
      %499 = vst.msk [vmem:[%s494 + $0x10] sm:$0xf] %vm238, %v460
      %500 = vst.msk [vmem:[%s494 + $0x14] sm:$0xf] %vm238, %v463
      %501 = vst.msk [vmem:[%s494 + $0x18] sm:$0xf] %vm238, %v466
      %502 = vst.msk [vmem:[%s494 + $0x1c] sm:$0xf] %vm238, %v469
      %503 = vst.msk [vmem:[%s494 + $0x20] sm:$0xf] %vm238, %v472
      %504 = vst.msk [vmem:[%s494 + $0x24] sm:$0xf] %vm238, %v475
      %505 = vst.msk [vmem:[%s494 + $0x28] sm:$0xf] %vm238, %v478
      %506 = vst.msk [vmem:[%s494 + $0x2c] sm:$0xf] %vm238, %v481
      %v507 = vld [vmem:[#allocation2] sm:$0xf]
      %v508 = vld [vmem:[#allocation2 + $0x4] sm:$0xf]
      %v509 = vld [vmem:[#allocation2 + $0x8] sm:$0xf]
      %v510 = vld [vmem:[#allocation2 + $0xc] sm:$0xf]
      %v511 = vld [vmem:[#allocation2 + $0x10] sm:$0xf]
      %v512 = vld [vmem:[#allocation2 + $0x14] sm:$0xf]
      %v513 = vld [vmem:[#allocation2 + $0x18] sm:$0xf]
      %v514 = vld [vmem:[#allocation2 + $0x1c] sm:$0xf]
      %v515 = vld [vmem:[%s1] sm:$0xf]
      %v516 = vld [vmem:[%s1 + $0x4] sm:$0xf]
      %v517 = vld [vmem:[%s403] sm:$0xf]
      %v518 = vld [vmem:[%s403 + $0x4] sm:$0xf]
      %v519 = vld [vmem:[%s403 + $0x8] sm:$0xf]
      %v520 = vld [vmem:[%s403 + $0xc] sm:$0xf]
      %v521 = vld [vmem:[%s403 + $0x10] sm:$0xf]
      %v522 = vld [vmem:[%s403 + $0x14] sm:$0xf]
      %v523 = vld [vmem:[%s403 + $0x18] sm:$0xf]
      %v524 = vld [vmem:[%s403 + $0x1c] sm:$0xf]
      %s525 = scalar_lea.vmem %s1, 8
      %v526 = vld [vmem:[%s525] sm:$0xf]
      %v527 = vld [vmem:[%s525 + $0x4] sm:$0xf]
      %v536 = vunpack.c.l.b16 %v517
      %v537 = vunpack.c.l.b16 %v518
      %v538 = vunpack.c.l.b16 %v519
      %v539 = vunpack.c.l.b16 %v520
      %v540 = vunpack.c.l.b16 %v521
      %v541 = vunpack.c.l.b16 %v522
      %v542 = vunpack.c.l.b16 %v523
      %v543 = vunpack.c.l.b16 %v524
      %v544 = vpack.c.b16 %v537, %v536
      %v545 = vpack.c.b16 %v539, %v538
      %v546 = vpack.c.b16 %v541, %v540
      %v547 = vpack.c.b16 %v543, %v542
      %v550 = vunpack.c.l.b16 %v526
      %v551 = vunpack.c.l.b16 %v527
      %v552 = vpack.c.b16 %v551, %v550
      %vm554 = vcmask 130048
      %v556 = vsel %vm554, %v544, 0
      %v559 = vsel %vm554, %v545, 0
      %v562 = vsel %vm554, %v546, 0
      %v565 = vsel %vm554, %v547, 0
      %567 = vmatpush.bf16.msra.mxu0 0
      %568 = vmatpush.bf16.msra.mxu0 0
      %569 = vmatpush.bf16.msra.mxu0 0
      %570 = vmatpush.bf16.msra.mxu0 0
      %571 = vmatpush.bf16.msra.mxu0 0
      %572 = vmatpush.bf16.msra.mxu0 0
      %573 = vmatpush.bf16.msra.mxu0 0
      %574 = vmatpush.bf16.msra.mxu0 %v552
      %575 = vmatmul.bf16.gmra.mxu0 %v556
      %v576 = vpop.f32.mrf.mxu0
      %v577 = vadd.f32 0.0, %v576
      %v578 = vpop.f32.mrf.mxu0
      %v579 = vadd.f32 0.0, %v578
      %580 = vmatmul.bf16.gmra.mxu0 %v559
      %v581 = vpop.f32.mrf.mxu0
      %v582 = vadd.f32 0.0, %v581
      %v583 = vpop.f32.mrf.mxu0
      %v584 = vadd.f32 0.0, %v583
      %585 = vmatmul.bf16.gmra.mxu0 %v562
      %v586 = vpop.f32.mrf.mxu0
      %v587 = vadd.f32 0.0, %v586
      %v588 = vpop.f32.mrf.mxu0
      %v589 = vadd.f32 0.0, %v588
      %590 = vmatmul.bf16.gmra.mxu0 %v565
      %v591 = vpop.f32.mrf.mxu0
      %v592 = vadd.f32 0.0, %v591
      %v593 = vpop.f32.mrf.mxu0
      %v594 = vadd.f32 0.0, %v593
      %595 = vdwg.mxu0
      %v604 = vunpack.c.l.b16 %v507
      %v605 = vunpack.c.l.b16 %v508
      %v606 = vunpack.c.l.b16 %v509
      %v607 = vunpack.c.l.b16 %v510
      %v608 = vunpack.c.l.b16 %v511
      %v609 = vunpack.c.l.b16 %v512
      %v610 = vunpack.c.l.b16 %v513
      %v611 = vunpack.c.l.b16 %v514
      %v612 = vpack.c.b16 %v605, %v604
      %v613 = vpack.c.b16 %v607, %v606
      %v614 = vpack.c.b16 %v609, %v608
      %v615 = vpack.c.b16 %v611, %v610
      %v618 = vunpack.c.l.b16 %v515
      %v619 = vunpack.c.l.b16 %v516
      %v620 = vpack.c.b16 %v619, %v618
      %v623 = vsel %vm554, %v612, 0
      %v626 = vsel %vm554, %v613, 0
      %v629 = vsel %vm554, %v614, 0
      %v632 = vsel %vm554, %v615, 0
      %634 = vmatpush.bf16.msra.mxu0 0
      %635 = vmatpush.bf16.msra.mxu0 0
      %636 = vmatpush.bf16.msra.mxu0 0
      %637 = vmatpush.bf16.msra.mxu0 0
      %638 = vmatpush.bf16.msra.mxu0 0
      %639 = vmatpush.bf16.msra.mxu0 0
      %640 = vmatpush.bf16.msra.mxu0 0
      %641 = vmatpush.bf16.msra.mxu0 %v620
      %642 = vmatmul.bf16.gmra.mxu0 %v623
      %v643 = vpop.f32.mrf.mxu0
      %v644 = vadd.f32 %v577, %v643
      %v645 = vpop.f32.mrf.mxu0
      %v646 = vadd.f32 %v579, %v645
      %647 = vmatmul.bf16.gmra.mxu0 %v626
      %v648 = vpop.f32.mrf.mxu0
      %v649 = vadd.f32 %v582, %v648
      %v650 = vpop.f32.mrf.mxu0
      %v651 = vadd.f32 %v584, %v650
      %652 = vmatmul.bf16.gmra.mxu0 %v629
      %v653 = vpop.f32.mrf.mxu0
      %v654 = vadd.f32 %v587, %v653
      %v655 = vpop.f32.mrf.mxu0
      %v656 = vadd.f32 %v589, %v655
      %657 = vmatmul.bf16.gmra.mxu0 %v632
      %v658 = vpop.f32.mrf.mxu0
      %v659 = vadd.f32 %v592, %v658
      %v660 = vpop.f32.mrf.mxu0
      %v661 = vadd.f32 %v594, %v660
      %662 = vdwg.mxu0
      %v663 = vld [vmem:[%s494] sm:$0xf]
      %v664 = vld [vmem:[%s494 + $0x4] sm:$0xf]
      %v665 = vld [vmem:[%s494 + $0x8] sm:$0xf]
      %v666 = vld [vmem:[%s494 + $0xc] sm:$0xf]
      %v667 = vld [vmem:[%s494 + $0x10] sm:$0xf]
      %v668 = vld [vmem:[%s494 + $0x14] sm:$0xf]
      %v669 = vld [vmem:[%s494 + $0x18] sm:$0xf]
      %v670 = vld [vmem:[%s494 + $0x1c] sm:$0xf]
      %s671 = scalar_lea.vmem %s1, 16
      %v672 = vld [vmem:[%s671] sm:$0xf]
      %v673 = vld [vmem:[%s671 + $0x4] sm:$0xf]
      %v682 = vunpack.c.l.b16 %v663
      %v683 = vunpack.c.l.b16 %v664
      %v684 = vunpack.c.l.b16 %v665
      %v685 = vunpack.c.l.b16 %v666
      %v686 = vunpack.c.l.b16 %v667
      %v687 = vunpack.c.l.b16 %v668
      %v688 = vunpack.c.l.b16 %v669
      %v689 = vunpack.c.l.b16 %v670
      %v690 = vpack.c.b16 %v683, %v682
      %v691 = vpack.c.b16 %v685, %v684
      %v692 = vpack.c.b16 %v687, %v686
      %v693 = vpack.c.b16 %v689, %v688
      %v696 = vunpack.c.l.b16 %v672
      %v697 = vunpack.c.l.b16 %v673
      %v698 = vpack.c.b16 %v697, %v696
      %v701 = vsel %vm554, %v690, 0
      %v704 = vsel %vm554, %v691, 0
      %v707 = vsel %vm554, %v692, 0
      %v710 = vsel %vm554, %v693, 0
      %712 = vmatpush.bf16.msra.mxu0 0
      %713 = vmatpush.bf16.msra.mxu0 0
      %714 = vmatpush.bf16.msra.mxu0 0
      %715 = vmatpush.bf16.msra.mxu0 0
      %716 = vmatpush.bf16.msra.mxu0 0
      %717 = vmatpush.bf16.msra.mxu0 0
      %718 = vmatpush.bf16.msra.mxu0 0
      %719 = vmatpush.bf16.msra.mxu0 %v698
      %720 = vmatmul.bf16.gmra.mxu0 %v701
      %v721 = vpop.f32.mrf.mxu0
      %v722 = vadd.f32 0.0, %v721
      %v723 = vpop.f32.mrf.mxu0
      %v724 = vadd.f32 0.0, %v723
      %725 = vmatmul.bf16.gmra.mxu0 %v704
      %v726 = vpop.f32.mrf.mxu0
      %v727 = vadd.f32 0.0, %v726
      %v728 = vpop.f32.mrf.mxu0
      %v729 = vadd.f32 0.0, %v728
      %730 = vmatmul.bf16.gmra.mxu0 %v707
      %v731 = vpop.f32.mrf.mxu0
      %v732 = vadd.f32 0.0, %v731
      %v733 = vpop.f32.mrf.mxu0
      %v734 = vadd.f32 0.0, %v733
      %735 = vmatmul.bf16.gmra.mxu0 %v710
      %v736 = vpop.f32.mrf.mxu0
      %v737 = vadd.f32 0.0, %v736
      %v738 = vpop.f32.mrf.mxu0
      %v739 = vadd.f32 0.0, %v738
      %740 = vdwg.mxu0
      %v741 = vadd.f32 %v644, %v722
      %v742 = vadd.f32 %v646, %v724
      %v743 = vadd.f32 %v649, %v727
      %v744 = vadd.f32 %v651, %v729
      %v745 = vadd.f32 %v654, %v732
      %v746 = vadd.f32 %v656, %v734
      %v747 = vadd.f32 %v659, %v737
      %v748 = vadd.f32 %v661, %v739
      %v749 = vld [vmem:[#allocation2 + $0x8] sm:$0xf]
      %v750 = vld [vmem:[#allocation2 + $0xc] sm:$0xf]
      %v751 = vld [vmem:[#allocation2 + $0x10] sm:$0xf]
      %v752 = vld [vmem:[#allocation2 + $0x14] sm:$0xf]
      %v753 = vld [vmem:[#allocation2 + $0x18] sm:$0xf]
      %v754 = vld [vmem:[#allocation2 + $0x1c] sm:$0xf]
      %v755 = vld [vmem:[#allocation2 + $0x20] sm:$0xf]
      %v756 = vld [vmem:[#allocation2 + $0x24] sm:$0xf]
      %s757 = scalar_lea.vmem %s1, 24
      %v758 = vld [vmem:[%s757] sm:$0xf]
      %v759 = vld [vmem:[%s757 + $0x4] sm:$0xf]
      %v768 = vunpack.c.l.b16 %v749
      %v769 = vunpack.c.l.b16 %v750
      %v770 = vunpack.c.l.b16 %v751
      %v771 = vunpack.c.l.b16 %v752
      %v772 = vunpack.c.l.b16 %v753
      %v773 = vunpack.c.l.b16 %v754
      %v774 = vunpack.c.l.b16 %v755
      %v775 = vunpack.c.l.b16 %v756
      %v776 = vpack.c.b16 %v769, %v768
      %v777 = vpack.c.b16 %v771, %v770
      %v778 = vpack.c.b16 %v773, %v772
      %v779 = vpack.c.b16 %v775, %v774
      %v782 = vunpack.c.l.b16 %v758
      %v783 = vunpack.c.l.b16 %v759
      %v784 = vpack.c.b16 %v783, %v782
      %v787 = vsel %vm554, %v776, 0
      %v790 = vsel %vm554, %v777, 0
      %v793 = vsel %vm554, %v778, 0
      %v796 = vsel %vm554, %v779, 0
      %798 = vmatpush.bf16.msra.mxu0 0
      %799 = vmatpush.bf16.msra.mxu0 0
      %800 = vmatpush.bf16.msra.mxu0 0
      %801 = vmatpush.bf16.msra.mxu0 0
      %802 = vmatpush.bf16.msra.mxu0 0
      %803 = vmatpush.bf16.msra.mxu0 0
      %804 = vmatpush.bf16.msra.mxu0 0
      %805 = vmatpush.bf16.msra.mxu0 %v784
      %806 = vmatmul.bf16.gmra.mxu0 %v787
      %v807 = vpop.f32.mrf.mxu0
      %v808 = vadd.f32 0.0, %v807
      %v809 = vpop.f32.mrf.mxu0
      %v810 = vadd.f32 0.0, %v809
      %811 = vmatmul.bf16.gmra.mxu0 %v790
      %v812 = vpop.f32.mrf.mxu0
      %v813 = vadd.f32 0.0, %v812
      %v814 = vpop.f32.mrf.mxu0
      %v815 = vadd.f32 0.0, %v814
      %816 = vmatmul.bf16.gmra.mxu0 %v793
      %v817 = vpop.f32.mrf.mxu0
      %v818 = vadd.f32 0.0, %v817
      %v819 = vpop.f32.mrf.mxu0
      %v820 = vadd.f32 0.0, %v819
      %821 = vmatmul.bf16.gmra.mxu0 %v796
      %v822 = vpop.f32.mrf.mxu0
      %v823 = vadd.f32 0.0, %v822
      %v824 = vpop.f32.mrf.mxu0
      %v825 = vadd.f32 0.0, %v824
      %826 = vdwg.mxu0
      %v827 = vadd.f32 %v741, %v808
      %v828 = vadd.f32 %v742, %v810
      %v829 = vadd.f32 %v743, %v813
      %v830 = vadd.f32 %v744, %v815
      %v831 = vadd.f32 %v745, %v818
      %v832 = vadd.f32 %v746, %v820
      %v833 = vadd.f32 %v747, %v823
      %v834 = vadd.f32 %v748, %v825
      %v835 = vld [vmem:[%s403 + $0x8] sm:$0xf]
      %v836 = vld [vmem:[%s403 + $0xc] sm:$0xf]
      %v837 = vld [vmem:[%s403 + $0x10] sm:$0xf]
      %v838 = vld [vmem:[%s403 + $0x14] sm:$0xf]
      %v839 = vld [vmem:[%s403 + $0x18] sm:$0xf]
      %v840 = vld [vmem:[%s403 + $0x1c] sm:$0xf]
      %v841 = vld [vmem:[%s403 + $0x20] sm:$0xf]
      %v842 = vld [vmem:[%s403 + $0x24] sm:$0xf]
      %s843 = scalar_lea.vmem %s1, 32
      %v844 = vld [vmem:[%s843] sm:$0xf]
      %v845 = vld [vmem:[%s843 + $0x4] sm:$0xf]
      %v854 = vunpack.c.l.b16 %v835
      %v855 = vunpack.c.l.b16 %v836
      %v856 = vunpack.c.l.b16 %v837
      %v857 = vunpack.c.l.b16 %v838
      %v858 = vunpack.c.l.b16 %v839
      %v859 = vunpack.c.l.b16 %v840
      %v860 = vunpack.c.l.b16 %v841
      %v861 = vunpack.c.l.b16 %v842
      %v862 = vpack.c.b16 %v855, %v854
      %v863 = vpack.c.b16 %v857, %v856
      %v864 = vpack.c.b16 %v859, %v858
      %v865 = vpack.c.b16 %v861, %v860
      %v868 = vunpack.c.l.b16 %v844
      %v869 = vunpack.c.l.b16 %v845
      %v870 = vpack.c.b16 %v869, %v868
      %v873 = vsel %vm554, %v862, 0
      %v876 = vsel %vm554, %v863, 0
      %v879 = vsel %vm554, %v864, 0
      %v882 = vsel %vm554, %v865, 0
      %884 = vmatpush.bf16.msra.mxu0 0
      %885 = vmatpush.bf16.msra.mxu0 0
      %886 = vmatpush.bf16.msra.mxu0 0
      %887 = vmatpush.bf16.msra.mxu0 0
      %888 = vmatpush.bf16.msra.mxu0 0
      %889 = vmatpush.bf16.msra.mxu0 0
      %890 = vmatpush.bf16.msra.mxu0 0
      %891 = vmatpush.bf16.msra.mxu0 %v870
      %892 = vmatmul.bf16.gmra.mxu0 %v873
      %v893 = vpop.f32.mrf.mxu0
      %v894 = vadd.f32 0.0, %v893
      %v895 = vpop.f32.mrf.mxu0
      %v896 = vadd.f32 0.0, %v895
      %897 = vmatmul.bf16.gmra.mxu0 %v876
      %v898 = vpop.f32.mrf.mxu0
      %v899 = vadd.f32 0.0, %v898
      %v900 = vpop.f32.mrf.mxu0
      %v901 = vadd.f32 0.0, %v900
      %902 = vmatmul.bf16.gmra.mxu0 %v879
      %v903 = vpop.f32.mrf.mxu0
      %v904 = vadd.f32 0.0, %v903
      %v905 = vpop.f32.mrf.mxu0
      %v906 = vadd.f32 0.0, %v905
      %907 = vmatmul.bf16.gmra.mxu0 %v882
      %v908 = vpop.f32.mrf.mxu0
      %v909 = vadd.f32 0.0, %v908
      %v910 = vpop.f32.mrf.mxu0
      %v911 = vadd.f32 0.0, %v910
      %912 = vdwg.mxu0
      %v913 = vadd.f32 %v827, %v894
      %v914 = vadd.f32 %v828, %v896
      %v915 = vadd.f32 %v829, %v899
      %v916 = vadd.f32 %v830, %v901
      %v917 = vadd.f32 %v831, %v904
      %v918 = vadd.f32 %v832, %v906
      %v919 = vadd.f32 %v833, %v909
      %v920 = vadd.f32 %v834, %v911
      %v921 = vld [vmem:[%s494 + $0x8] sm:$0xf]
      %v922 = vld [vmem:[%s494 + $0xc] sm:$0xf]
      %v923 = vld [vmem:[%s494 + $0x10] sm:$0xf]
      %v924 = vld [vmem:[%s494 + $0x14] sm:$0xf]
      %v925 = vld [vmem:[%s494 + $0x18] sm:$0xf]
      %v926 = vld [vmem:[%s494 + $0x1c] sm:$0xf]
      %v927 = vld [vmem:[%s494 + $0x20] sm:$0xf]
      %v928 = vld [vmem:[%s494 + $0x24] sm:$0xf]
      %s929 = scalar_lea.vmem %s1, 40
      %v930 = vld [vmem:[%s929] sm:$0xf]
      %v931 = vld [vmem:[%s929 + $0x4] sm:$0xf]
      %v940 = vunpack.c.l.b16 %v921
      %v941 = vunpack.c.l.b16 %v922
      %v942 = vunpack.c.l.b16 %v923
      %v943 = vunpack.c.l.b16 %v924
      %v944 = vunpack.c.l.b16 %v925
      %v945 = vunpack.c.l.b16 %v926
      %v946 = vunpack.c.l.b16 %v927
      %v947 = vunpack.c.l.b16 %v928
      %v948 = vpack.c.b16 %v941, %v940
      %v949 = vpack.c.b16 %v943, %v942
      %v950 = vpack.c.b16 %v945, %v944
      %v951 = vpack.c.b16 %v947, %v946
      %v954 = vunpack.c.l.b16 %v930
      %v955 = vunpack.c.l.b16 %v931
      %v956 = vpack.c.b16 %v955, %v954
      %v959 = vsel %vm554, %v948, 0
      %v962 = vsel %vm554, %v949, 0
      %v965 = vsel %vm554, %v950, 0
      %v968 = vsel %vm554, %v951, 0
      %970 = vmatpush.bf16.msra.mxu0 0
      %971 = vmatpush.bf16.msra.mxu0 0
      %972 = vmatpush.bf16.msra.mxu0 0
      %973 = vmatpush.bf16.msra.mxu0 0
      %974 = vmatpush.bf16.msra.mxu0 0
      %975 = vmatpush.bf16.msra.mxu0 0
      %976 = vmatpush.bf16.msra.mxu0 0
      %977 = vmatpush.bf16.msra.mxu0 %v956
      %978 = vmatmul.bf16.gmra.mxu0 %v959
      %v979 = vpop.f32.mrf.mxu0
      %v980 = vadd.f32 0.0, %v979
      %v981 = vpop.f32.mrf.mxu0
      %v982 = vadd.f32 0.0, %v981
      %983 = vmatmul.bf16.gmra.mxu0 %v962
      %v984 = vpop.f32.mrf.mxu0
      %v985 = vadd.f32 0.0, %v984
      %v986 = vpop.f32.mrf.mxu0
      %v987 = vadd.f32 0.0, %v986
      %988 = vmatmul.bf16.gmra.mxu0 %v965
      %v989 = vpop.f32.mrf.mxu0
      %v990 = vadd.f32 0.0, %v989
      %v991 = vpop.f32.mrf.mxu0
      %v992 = vadd.f32 0.0, %v991
      %993 = vmatmul.bf16.gmra.mxu0 %v968
      %v994 = vpop.f32.mrf.mxu0
      %v995 = vadd.f32 0.0, %v994
      %v996 = vpop.f32.mrf.mxu0
      %v997 = vadd.f32 0.0, %v996
      %998 = vdwg.mxu0
      %v999 = vadd.f32 %v913, %v980
      %v1000 = vadd.f32 %v914, %v982
      %v1001 = vadd.f32 %v915, %v985
      %v1002 = vadd.f32 %v916, %v987
      %v1003 = vadd.f32 %v917, %v990
      %v1004 = vadd.f32 %v918, %v992
      %v1005 = vadd.f32 %v919, %v995
      %v1006 = vadd.f32 %v920, %v997
      %v1007 = vld [vmem:[#allocation2 + $0x10] sm:$0xf]
      %v1008 = vld [vmem:[#allocation2 + $0x14] sm:$0xf]
      %v1009 = vld [vmem:[#allocation2 + $0x18] sm:$0xf]
      %v1010 = vld [vmem:[#allocation2 + $0x1c] sm:$0xf]
      %v1011 = vld [vmem:[#allocation2 + $0x20] sm:$0xf]
      %v1012 = vld [vmem:[#allocation2 + $0x24] sm:$0xf]
      %v1013 = vld [vmem:[#allocation2 + $0x28] sm:$0xf]
      %v1014 = vld [vmem:[#allocation2 + $0x2c] sm:$0xf]
      %s1015 = scalar_lea.vmem %s1, 48
      %v1016 = vld [vmem:[%s1015] sm:$0xf]
      %v1017 = vld [vmem:[%s1015 + $0x4] sm:$0xf]
      %v1026 = vunpack.c.l.b16 %v1007
      %v1027 = vunpack.c.l.b16 %v1008
      %v1028 = vunpack.c.l.b16 %v1009
      %v1029 = vunpack.c.l.b16 %v1010
      %v1030 = vunpack.c.l.b16 %v1011
      %v1031 = vunpack.c.l.b16 %v1012
      %v1032 = vunpack.c.l.b16 %v1013
      %v1033 = vunpack.c.l.b16 %v1014
      %v1034 = vpack.c.b16 %v1027, %v1026
      %v1035 = vpack.c.b16 %v1029, %v1028
      %v1036 = vpack.c.b16 %v1031, %v1030
      %v1037 = vpack.c.b16 %v1033, %v1032
      %v1040 = vunpack.c.l.b16 %v1016
      %v1041 = vunpack.c.l.b16 %v1017
      %v1042 = vpack.c.b16 %v1041, %v1040
      %v1045 = vsel %vm554, %v1034, 0
      %v1048 = vsel %vm554, %v1035, 0
      %v1051 = vsel %vm554, %v1036, 0
      %v1054 = vsel %vm554, %v1037, 0
      %1056 = vmatpush.bf16.msra.mxu0 0
      %1057 = vmatpush.bf16.msra.mxu0 0
      %1058 = vmatpush.bf16.msra.mxu0 0
      %1059 = vmatpush.bf16.msra.mxu0 0
      %1060 = vmatpush.bf16.msra.mxu0 0
      %1061 = vmatpush.bf16.msra.mxu0 0
      %1062 = vmatpush.bf16.msra.mxu0 0
      %1063 = vmatpush.bf16.msra.mxu0 %v1042
      %1064 = vmatmul.bf16.gmra.mxu0 %v1045
      %v1065 = vpop.f32.mrf.mxu0
      %v1066 = vadd.f32 0.0, %v1065
      %v1067 = vpop.f32.mrf.mxu0
      %v1068 = vadd.f32 0.0, %v1067
      %1069 = vmatmul.bf16.gmra.mxu0 %v1048
      %v1070 = vpop.f32.mrf.mxu0
      %v1071 = vadd.f32 0.0, %v1070
      %v1072 = vpop.f32.mrf.mxu0
      %v1073 = vadd.f32 0.0, %v1072
      %1074 = vmatmul.bf16.gmra.mxu0 %v1051
      %v1075 = vpop.f32.mrf.mxu0
      %v1076 = vadd.f32 0.0, %v1075
      %v1077 = vpop.f32.mrf.mxu0
      %v1078 = vadd.f32 0.0, %v1077
      %1079 = vmatmul.bf16.gmra.mxu0 %v1054
      %v1080 = vpop.f32.mrf.mxu0
      %v1081 = vadd.f32 0.0, %v1080
      %v1082 = vpop.f32.mrf.mxu0
      %v1083 = vadd.f32 0.0, %v1082
      %1084 = vdwg.mxu0
      %v1085 = vadd.f32 %v999, %v1066
      %v1086 = vadd.f32 %v1000, %v1068
      %v1087 = vadd.f32 %v1001, %v1071
      %v1088 = vadd.f32 %v1002, %v1073
      %v1089 = vadd.f32 %v1003, %v1076
      %v1090 = vadd.f32 %v1004, %v1078
      %v1091 = vadd.f32 %v1005, %v1081
      %v1092 = vadd.f32 %v1006, %v1083
      %v1093 = vld [vmem:[%s403 + $0x10] sm:$0xf]
      %v1094 = vld [vmem:[%s403 + $0x14] sm:$0xf]
      %v1095 = vld [vmem:[%s403 + $0x18] sm:$0xf]
      %v1096 = vld [vmem:[%s403 + $0x1c] sm:$0xf]
      %v1097 = vld [vmem:[%s403 + $0x20] sm:$0xf]
      %v1098 = vld [vmem:[%s403 + $0x24] sm:$0xf]
      %v1099 = vld [vmem:[%s403 + $0x28] sm:$0xf]
      %v1100 = vld [vmem:[%s403 + $0x2c] sm:$0xf]
      %s1101 = scalar_lea.vmem %s1, 56
      %v1102 = vld [vmem:[%s1101] sm:$0xf]
      %v1103 = vld [vmem:[%s1101 + $0x4] sm:$0xf]
      %v1112 = vunpack.c.l.b16 %v1093
      %v1113 = vunpack.c.l.b16 %v1094
      %v1114 = vunpack.c.l.b16 %v1095
      %v1115 = vunpack.c.l.b16 %v1096
      %v1116 = vunpack.c.l.b16 %v1097
      %v1117 = vunpack.c.l.b16 %v1098
      %v1118 = vunpack.c.l.b16 %v1099
      %v1119 = vunpack.c.l.b16 %v1100
      %v1120 = vpack.c.b16 %v1113, %v1112
      %v1121 = vpack.c.b16 %v1115, %v1114
      %v1122 = vpack.c.b16 %v1117, %v1116
      %v1123 = vpack.c.b16 %v1119, %v1118
      %v1126 = vunpack.c.l.b16 %v1102
      %v1127 = vunpack.c.l.b16 %v1103
      %v1128 = vpack.c.b16 %v1127, %v1126
      %v1131 = vsel %vm554, %v1120, 0
      %v1134 = vsel %vm554, %v1121, 0
      %v1137 = vsel %vm554, %v1122, 0
      %v1140 = vsel %vm554, %v1123, 0
      %1142 = vmatpush.bf16.msra.mxu0 0
      %1143 = vmatpush.bf16.msra.mxu0 0
      %1144 = vmatpush.bf16.msra.mxu0 0
      %1145 = vmatpush.bf16.msra.mxu0 0
      %1146 = vmatpush.bf16.msra.mxu0 0
      %1147 = vmatpush.bf16.msra.mxu0 0
      %1148 = vmatpush.bf16.msra.mxu0 0
      %1149 = vmatpush.bf16.msra.mxu0 %v1128
      %1150 = vmatmul.bf16.gmra.mxu0 %v1131
      %v1151 = vpop.f32.mrf.mxu0
      %v1152 = vadd.f32 0.0, %v1151
      %v1153 = vpop.f32.mrf.mxu0
      %v1154 = vadd.f32 0.0, %v1153
      %1155 = vmatmul.bf16.gmra.mxu0 %v1134
      %v1156 = vpop.f32.mrf.mxu0
      %v1157 = vadd.f32 0.0, %v1156
      %v1158 = vpop.f32.mrf.mxu0
      %v1159 = vadd.f32 0.0, %v1158
      %1160 = vmatmul.bf16.gmra.mxu0 %v1137
      %v1161 = vpop.f32.mrf.mxu0
      %v1162 = vadd.f32 0.0, %v1161
      %v1163 = vpop.f32.mrf.mxu0
      %v1164 = vadd.f32 0.0, %v1163
      %1165 = vmatmul.bf16.gmra.mxu0 %v1140
      %v1166 = vpop.f32.mrf.mxu0
      %v1167 = vadd.f32 0.0, %v1166
      %v1168 = vpop.f32.mrf.mxu0
      %v1169 = vadd.f32 0.0, %v1168
      %1170 = vdwg.mxu0
      %v1171 = vadd.f32 %v1085, %v1152
      %v1172 = vadd.f32 %v1086, %v1154
      %v1173 = vadd.f32 %v1087, %v1157
      %v1174 = vadd.f32 %v1088, %v1159
      %v1175 = vadd.f32 %v1089, %v1162
      %v1176 = vadd.f32 %v1090, %v1164
      %v1177 = vadd.f32 %v1091, %v1167
      %v1178 = vadd.f32 %v1092, %v1169
      %v1179 = vld [vmem:[%s494 + $0x10] sm:$0xf]
      %v1180 = vld [vmem:[%s494 + $0x14] sm:$0xf]
      %v1181 = vld [vmem:[%s494 + $0x18] sm:$0xf]
      %v1182 = vld [vmem:[%s494 + $0x1c] sm:$0xf]
      %v1183 = vld [vmem:[%s494 + $0x20] sm:$0xf]
      %v1184 = vld [vmem:[%s494 + $0x24] sm:$0xf]
      %v1185 = vld [vmem:[%s494 + $0x28] sm:$0xf]
      %v1186 = vld [vmem:[%s494 + $0x2c] sm:$0xf]
      %s1187 = scalar_lea.vmem %s1, 64
      %v1188 = vld [vmem:[%s1187] sm:$0xf]
      %v1189 = vld [vmem:[%s1187 + $0x4] sm:$0xf]
      %v1198 = vunpack.c.l.b16 %v1179
      %v1199 = vunpack.c.l.b16 %v1180
      %v1200 = vunpack.c.l.b16 %v1181
      %v1201 = vunpack.c.l.b16 %v1182
      %v1202 = vunpack.c.l.b16 %v1183
      %v1203 = vunpack.c.l.b16 %v1184
      %v1204 = vunpack.c.l.b16 %v1185
      %v1205 = vunpack.c.l.b16 %v1186
      %v1206 = vpack.c.b16 %v1199, %v1198
      %v1207 = vpack.c.b16 %v1201, %v1200
      %v1208 = vpack.c.b16 %v1203, %v1202
      %v1209 = vpack.c.b16 %v1205, %v1204
      %v1212 = vunpack.c.l.b16 %v1188
      %v1213 = vunpack.c.l.b16 %v1189
      %v1214 = vpack.c.b16 %v1213, %v1212
      %v1217 = vsel %vm554, %v1206, 0
      %v1220 = vsel %vm554, %v1207, 0
      %v1223 = vsel %vm554, %v1208, 0
      %v1226 = vsel %vm554, %v1209, 0
      %1228 = vmatpush.bf16.msra.mxu0 0
      %1229 = vmatpush.bf16.msra.mxu0 0
      %1230 = vmatpush.bf16.msra.mxu0 0
      %1231 = vmatpush.bf16.msra.mxu0 0
      %1232 = vmatpush.bf16.msra.mxu0 0
      %1233 = vmatpush.bf16.msra.mxu0 0
      %1234 = vmatpush.bf16.msra.mxu0 0
      %1235 = vmatpush.bf16.msra.mxu0 %v1214
      %1236 = vmatmul.bf16.gmra.mxu0 %v1217
      %v1237 = vpop.f32.mrf.mxu0
      %v1238 = vadd.f32 0.0, %v1237
      %v1239 = vpop.f32.mrf.mxu0
      %v1240 = vadd.f32 0.0, %v1239
      %1241 = vmatmul.bf16.gmra.mxu0 %v1220
      %v1242 = vpop.f32.mrf.mxu0
      %v1243 = vadd.f32 0.0, %v1242
      %v1244 = vpop.f32.mrf.mxu0
      %v1245 = vadd.f32 0.0, %v1244
      %1246 = vmatmul.bf16.gmra.mxu0 %v1223
      %v1247 = vpop.f32.mrf.mxu0
      %v1248 = vadd.f32 0.0, %v1247
      %v1249 = vpop.f32.mrf.mxu0
      %v1250 = vadd.f32 0.0, %v1249
      %1251 = vmatmul.bf16.gmra.mxu0 %v1226
      %v1252 = vpop.f32.mrf.mxu0
      %v1253 = vadd.f32 0.0, %v1252
      %v1254 = vpop.f32.mrf.mxu0
      %v1255 = vadd.f32 0.0, %v1254
      %1256 = vdwg.mxu0
      %v1257 = vadd.f32 %v1171, %v1238
      %v1258 = vadd.f32 %v1172, %v1240
      %v1259 = vadd.f32 %v1173, %v1243
      %v1260 = vadd.f32 %v1174, %v1245
      %v1261 = vadd.f32 %v1175, %v1248
      %v1262 = vadd.f32 %v1176, %v1250
      %v1263 = vadd.f32 %v1177, %v1253
      %v1264 = vadd.f32 %v1178, %v1255
      %v1265 = vlaneseq
      %v1266 = vshrl.u32 %v1265, 7
      %v1267 = vadd.s32 %v1266, 8
      %v1268 = vadd.s32 %v1266, 16
      %v1269 = vadd.s32 %v1266, 24
      %v1270 = vadd.s32 %v1266, 32
      %v1271 = vadd.s32 %v1266, 40
      %v1272 = vadd.s32 %v1266, 48
      %v1273 = vadd.s32 %v1266, 56
      %vm1274 = vcmp.lt.s32.totalorder %v1266, 0
      %v1275 = vsub.s32 0, %v1266
      %v1276 = vsel %vm1274, %v1275, %v1266
      %v1277 = vshrl.u32 %v1276, 4
      %v1278 = vand.u32 %v1276, 15
      %v1279 = vsub.s32 0, %v1278
      %v1280 = vsel %vm1274, %v1279, %v1278
      %vm1281 = vcmp.lt.s32.totalorder %v1267, 0
      %v1282 = vsub.s32 0, %v1267
      %v1283 = vsel %vm1281, %v1282, %v1267
      %v1284 = vshrl.u32 %v1283, 4
      %v1285 = vand.u32 %v1283, 15
      %v1286 = vsub.s32 0, %v1285
      %v1287 = vsel %vm1281, %v1286, %v1285
      %vm1288 = vcmp.lt.s32.totalorder %v1268, 0
      %v1289 = vsub.s32 0, %v1268
      %v1290 = vsel %vm1288, %v1289, %v1268
      %v1291 = vshrl.u32 %v1290, 4
      %v1292 = vand.u32 %v1290, 15
      %v1293 = vsub.s32 0, %v1292
      %v1294 = vsel %vm1288, %v1293, %v1292
      %vm1295 = vcmp.lt.s32.totalorder %v1269, 0
      %v1296 = vsub.s32 0, %v1269
      %v1297 = vsel %vm1295, %v1296, %v1269
      %v1298 = vshrl.u32 %v1297, 4
      %v1299 = vand.u32 %v1297, 15
      %v1300 = vsub.s32 0, %v1299
      %v1301 = vsel %vm1295, %v1300, %v1299
      %vm1302 = vcmp.lt.s32.totalorder %v1270, 0
      %v1303 = vsub.s32 0, %v1270
      %v1304 = vsel %vm1302, %v1303, %v1270
      %v1305 = vshrl.u32 %v1304, 4
      %v1306 = vand.u32 %v1304, 15
      %v1307 = vsub.s32 0, %v1306
      %v1308 = vsel %vm1302, %v1307, %v1306
      %vm1309 = vcmp.lt.s32.totalorder %v1271, 0
      %v1310 = vsub.s32 0, %v1271
      %v1311 = vsel %vm1309, %v1310, %v1271
      %v1312 = vshrl.u32 %v1311, 4
      %v1313 = vand.u32 %v1311, 15
      %v1314 = vsub.s32 0, %v1313
      %v1315 = vsel %vm1309, %v1314, %v1313
      %vm1316 = vcmp.lt.s32.totalorder %v1272, 0
      %v1317 = vsub.s32 0, %v1272
      %v1318 = vsel %vm1316, %v1317, %v1272
      %v1319 = vshrl.u32 %v1318, 4
      %v1320 = vand.u32 %v1318, 15
      %v1321 = vsub.s32 0, %v1320
      %v1322 = vsel %vm1316, %v1321, %v1320
      %vm1323 = vcmp.lt.s32.totalorder %v1273, 0
      %v1324 = vsub.s32 0, %v1273
      %v1325 = vsel %vm1323, %v1324, %v1273
      %v1326 = vshrl.u32 %v1325, 4
      %v1327 = vand.u32 %v1325, 15
      %v1328 = vsub.s32 0, %v1327
      %v1329 = vsel %vm1323, %v1328, %v1327
      %vm1330 = vcmp.ne.s32.totalorder %v1280, 0
      %vm1331 = vcmp.ne.s32.totalorder %v1287, 0
      %vm1332 = vcmp.ne.s32.totalorder %v1294, 0
      %vm1333 = vcmp.ne.s32.totalorder %v1301, 0
      %vm1334 = vcmp.ne.s32.totalorder %v1308, 0
      %vm1335 = vcmp.ne.s32.totalorder %v1315, 0
      %vm1336 = vcmp.ne.s32.totalorder %v1322, 0
      %vm1337 = vcmp.ne.s32.totalorder %v1329, 0
      %vm1338 = vcmp.lt.s32.totalorder %v1280, 0
      %vm1339 = vcmp.lt.s32.totalorder %v1287, 0
      %vm1340 = vcmp.lt.s32.totalorder %v1294, 0
      %vm1341 = vcmp.lt.s32.totalorder %v1301, 0
      %vm1342 = vcmp.lt.s32.totalorder %v1308, 0
      %vm1343 = vcmp.lt.s32.totalorder %v1315, 0
      %vm1344 = vcmp.lt.s32.totalorder %v1322, 0
      %vm1345 = vcmp.lt.s32.totalorder %v1329, 0
      %vm1346 = vmand %vm1338, %vm1330
      %vm1347 = vmand %vm1339, %vm1331
      %vm1348 = vmand %vm1340, %vm1332
      %vm1349 = vmand %vm1341, %vm1333
      %vm1350 = vmand %vm1342, %vm1334
      %vm1351 = vmand %vm1343, %vm1335
      %vm1352 = vmand %vm1344, %vm1336
      %vm1353 = vmand %vm1345, %vm1337
      %v1354 = vadd.s32 %v1280, 16
      %v1355 = vadd.s32 %v1287, 16
      %v1356 = vadd.s32 %v1294, 16
      %v1357 = vadd.s32 %v1301, 16
      %v1358 = vadd.s32 %v1308, 16
      %v1359 = vadd.s32 %v1315, 16
      %v1360 = vadd.s32 %v1322, 16
      %v1361 = vadd.s32 %v1329, 16
      %v1362 = vsel %vm1346, %v1354, %v1280
      %v1363 = vsel %vm1347, %v1355, %v1287
      %v1364 = vsel %vm1348, %v1356, %v1294
      %v1365 = vsel %vm1349, %v1357, %v1301
      %v1366 = vsel %vm1350, %v1358, %v1308
      %v1367 = vsel %vm1351, %v1359, %v1315
      %v1368 = vsel %vm1352, %v1360, %v1322
      %v1369 = vsel %vm1353, %v1361, %v1329
      %vm1370 = vcmp.ge.s32.totalorder %v1362, 1
      %vm1371 = vcmp.ge.s32.totalorder %v1363, 1
      %vm1372 = vcmp.ge.s32.totalorder %v1364, 1
      %vm1373 = vcmp.ge.s32.totalorder %v1365, 1
      %vm1374 = vcmp.ge.s32.totalorder %v1366, 1
      %vm1375 = vcmp.ge.s32.totalorder %v1367, 1
      %vm1376 = vcmp.ge.s32.totalorder %v1368, 1
      %vm1377 = vcmp.ge.s32.totalorder %v1369, 1
      %vm1378 = vcmp.lt.s32.totalorder %v1362, 9
      %vm1379 = vcmp.lt.s32.totalorder %v1363, 9
      %vm1380 = vcmp.lt.s32.totalorder %v1364, 9
      %vm1381 = vcmp.lt.s32.totalorder %v1365, 9
      %vm1382 = vcmp.lt.s32.totalorder %v1366, 9
      %vm1383 = vcmp.lt.s32.totalorder %v1367, 9
      %vm1384 = vcmp.lt.s32.totalorder %v1368, 9
      %vm1385 = vcmp.lt.s32.totalorder %v1369, 9
      %vm1386 = vmand %vm1370, %vm1378
      %vm1387 = vmand %vm1371, %vm1379
      %vm1388 = vmand %vm1372, %vm1380
      %vm1389 = vmand %vm1373, %vm1381
      %vm1390 = vmand %vm1374, %vm1382
      %vm1391 = vmand %vm1375, %vm1383
      %vm1392 = vmand %vm1376, %vm1384
      %vm1393 = vmand %vm1377, %vm1385
      %v1394 = vld [vmem:[%s2] sm:$0x1]
      %v1396 = vperm.slane %v1394, 0
      %v1398 = vadd.f32 %v1257, %v1396
      %v1399 = vadd.f32 %v1258, %v1396
      %v1400 = vadd.f32 %v1259, %v1396
      %v1401 = vadd.f32 %v1260, %v1396
      %v1402 = vadd.f32 %v1261, %v1396
      %v1403 = vadd.f32 %v1262, %v1396
      %v1404 = vadd.f32 %v1263, %v1396
      %v1405 = vadd.f32 %v1264, %v1396
      %v1406 = vmul.f32 %v1398, 0.70710677
      %v1407 = vmul.f32 %v1399, 0.70710677
      %v1408 = vmul.f32 %v1400, 0.70710677
      %v1409 = vmul.f32 %v1401, 0.70710677
      %v1410 = vmul.f32 %v1402, 0.70710677
      %v1411 = vmul.f32 %v1403, 0.70710677
      %v1412 = vmul.f32 %v1404, 0.70710677
      %v1413 = vmul.f32 %v1405, 0.70710677
      %v1414 = vand.u32 2147483647, %v1406
      %v1415 = vand.u32 2147483647, %v1407
      %v1416 = vand.u32 2147483647, %v1408
      %v1417 = vand.u32 2147483647, %v1409
      %v1418 = vand.u32 2147483647, %v1410
      %v1419 = vand.u32 2147483647, %v1411
      %v1420 = vand.u32 2147483647, %v1412
      %v1421 = vand.u32 2147483647, %v1413
      %v1422 = vmul.f32 %v1414, 0.3275911
      %v1423 = vmul.f32 %v1415, 0.3275911
      %v1424 = vmul.f32 %v1416, 0.3275911
      %v1425 = vmul.f32 %v1417, 0.3275911
      %v1426 = vmul.f32 %v1418, 0.3275911
      %v1427 = vmul.f32 %v1419, 0.3275911
      %v1428 = vmul.f32 %v1420, 0.3275911
      %v1429 = vmul.f32 %v1421, 0.3275911
      %v1430 = vadd.f32 %v1422, 1.0
      %v1431 = vadd.f32 %v1423, 1.0
      %v1432 = vadd.f32 %v1424, 1.0
      %v1433 = vadd.f32 %v1425, 1.0
      %v1434 = vadd.f32 %v1426, 1.0
      %v1435 = vadd.f32 %v1427, 1.0
      %v1436 = vadd.f32 %v1428, 1.0
      %v1437 = vadd.f32 %v1429, 1.0
      %v1438 = vrcp.pop %v1430
      %v1439 = vrcp.pop %v1431
      %v1440 = vrcp.pop %v1432
      %v1441 = vrcp.pop %v1433
      %v1442 = vrcp.pop %v1434
      %v1443 = vrcp.pop %v1435
      %v1444 = vrcp.pop %v1436
      %v1445 = vrcp.pop %v1437
      %v1446 = vmul.f32 %v1438, 1.0614054
      %v1447 = vmul.f32 %v1439, 1.0614054
      %v1448 = vmul.f32 %v1440, 1.0614054
      %v1449 = vmul.f32 %v1441, 1.0614054
      %v1450 = vmul.f32 %v1442, 1.0614054
      %v1451 = vmul.f32 %v1443, 1.0614054
      %v1452 = vmul.f32 %v1444, 1.0614054
      %v1453 = vmul.f32 %v1445, 1.0614054
      %v1454 = vadd.f32 %v1446, -1.4531521
      %v1455 = vadd.f32 %v1447, -1.4531521
      %v1456 = vadd.f32 %v1448, -1.4531521
      %v1457 = vadd.f32 %v1449, -1.4531521
      %v1458 = vadd.f32 %v1450, -1.4531521
      %v1459 = vadd.f32 %v1451, -1.4531521
      %v1460 = vadd.f32 %v1452, -1.4531521
      %v1461 = vadd.f32 %v1453, -1.4531521
      %v1462 = vmul.f32 %v1454, %v1438
      %v1463 = vmul.f32 %v1455, %v1439
      %v1464 = vmul.f32 %v1456, %v1440
      %v1465 = vmul.f32 %v1457, %v1441
      %v1466 = vmul.f32 %v1458, %v1442
      %v1467 = vmul.f32 %v1459, %v1443
      %v1468 = vmul.f32 %v1460, %v1444
      %v1469 = vmul.f32 %v1461, %v1445
      %v1470 = vadd.f32 %v1462, 1.4214138
      %v1471 = vadd.f32 %v1463, 1.4214138
      %v1472 = vadd.f32 %v1464, 1.4214138
      %v1473 = vadd.f32 %v1465, 1.4214138
      %v1474 = vadd.f32 %v1466, 1.4214138
      %v1475 = vadd.f32 %v1467, 1.4214138
      %v1476 = vadd.f32 %v1468, 1.4214138
      %v1477 = vadd.f32 %v1469, 1.4214138
      %v1478 = vmul.f32 %v1470, %v1438
      %v1479 = vmul.f32 %v1471, %v1439
      %v1480 = vmul.f32 %v1472, %v1440
      %v1481 = vmul.f32 %v1473, %v1441
      %v1482 = vmul.f32 %v1474, %v1442
      %v1483 = vmul.f32 %v1475, %v1443
      %v1484 = vmul.f32 %v1476, %v1444
      %v1485 = vmul.f32 %v1477, %v1445
      %v1486 = vadd.f32 %v1478, -0.28449672
      %v1487 = vadd.f32 %v1479, -0.28449672
      %v1488 = vadd.f32 %v1480, -0.28449672
      %v1489 = vadd.f32 %v1481, -0.28449672
      %v1490 = vadd.f32 %v1482, -0.28449672
      %v1491 = vadd.f32 %v1483, -0.28449672
      %v1492 = vadd.f32 %v1484, -0.28449672
      %v1493 = vadd.f32 %v1485, -0.28449672
      %v1494 = vmul.f32 %v1486, %v1438
      %v1495 = vmul.f32 %v1487, %v1439
      %v1496 = vmul.f32 %v1488, %v1440
      %v1497 = vmul.f32 %v1489, %v1441
      %v1498 = vmul.f32 %v1490, %v1442
      %v1499 = vmul.f32 %v1491, %v1443
      %v1500 = vmul.f32 %v1492, %v1444
      %v1501 = vmul.f32 %v1493, %v1445
      %v1502 = vadd.f32 %v1494, 0.2548296
      %v1503 = vadd.f32 %v1495, 0.2548296
      %v1504 = vadd.f32 %v1496, 0.2548296
      %v1505 = vadd.f32 %v1497, 0.2548296
      %v1506 = vadd.f32 %v1498, 0.2548296
      %v1507 = vadd.f32 %v1499, 0.2548296
      %v1508 = vadd.f32 %v1500, 0.2548296
      %v1509 = vadd.f32 %v1501, 0.2548296
      %v1510 = vmul.f32 %v1502, %v1438
      %v1511 = vmul.f32 %v1503, %v1439
      %v1512 = vmul.f32 %v1504, %v1440
      %v1513 = vmul.f32 %v1505, %v1441
      %v1514 = vmul.f32 %v1506, %v1442
      %v1515 = vmul.f32 %v1507, %v1443
      %v1516 = vmul.f32 %v1508, %v1444
      %v1517 = vmul.f32 %v1509, %v1445
      %v1518 = vsub.f32 0.0, %v1414
      %v1519 = vsub.f32 0.0, %v1415
      %v1520 = vsub.f32 0.0, %v1416
      %v1521 = vsub.f32 0.0, %v1417
      %v1522 = vsub.f32 0.0, %v1418
      %v1523 = vsub.f32 0.0, %v1419
      %v1524 = vsub.f32 0.0, %v1420
      %v1525 = vsub.f32 0.0, %v1421
      %v1526 = vmul.f32 %v1518, %v1414
      %v1527 = vmul.f32 %v1519, %v1415
      %v1528 = vmul.f32 %v1520, %v1416
      %v1529 = vmul.f32 %v1521, %v1417
      %v1530 = vmul.f32 %v1522, %v1418
      %v1531 = vmul.f32 %v1523, %v1419
      %v1532 = vmul.f32 %v1524, %v1420
      %v1533 = vmul.f32 %v1525, %v1421
      %v1534 = vmul.f32 %v1526, 1.442695
      %v1535 = vpow.pop %v1534
      %v1536 = vmul.f32 %v1527, 1.442695
      %v1537 = vpow.pop %v1536
      %v1538 = vmul.f32 %v1528, 1.442695
      %v1539 = vpow.pop %v1538
      %v1540 = vmul.f32 %v1529, 1.442695
      %v1541 = vpow.pop %v1540
      %v1542 = vmul.f32 %v1530, 1.442695
      %v1543 = vpow.pop %v1542
      %v1544 = vmul.f32 %v1531, 1.442695
      %v1545 = vpow.pop %v1544
      %v1546 = vmul.f32 %v1532, 1.442695
      %v1547 = vpow.pop %v1546
      %v1548 = vmul.f32 %v1533, 1.442695
      %v1549 = vpow.pop %v1548
      %v1550 = vmul.f32 %v1510, %v1535
      %v1551 = vmul.f32 %v1511, %v1537
      %v1552 = vmul.f32 %v1512, %v1539
      %v1553 = vmul.f32 %v1513, %v1541
      %v1554 = vmul.f32 %v1514, %v1543
      %v1555 = vmul.f32 %v1515, %v1545
      %v1556 = vmul.f32 %v1516, %v1547
      %v1557 = vmul.f32 %v1517, %v1549
      %v1558 = vsub.f32 1.0, %v1550
      %v1559 = vsub.f32 1.0, %v1551
      %v1560 = vsub.f32 1.0, %v1552
      %v1561 = vsub.f32 1.0, %v1553
      %v1562 = vsub.f32 1.0, %v1554
      %v1563 = vsub.f32 1.0, %v1555
      %v1564 = vsub.f32 1.0, %v1556
      %v1565 = vsub.f32 1.0, %v1557
      %vm1566 = vcmp.ge.f32.partialorder %v1406, 0.0
      %vm1567 = vcmp.ge.f32.partialorder %v1407, 0.0
      %vm1568 = vcmp.ge.f32.partialorder %v1408, 0.0
      %vm1569 = vcmp.ge.f32.partialorder %v1409, 0.0
      %vm1570 = vcmp.ge.f32.partialorder %v1410, 0.0
      %vm1571 = vcmp.ge.f32.partialorder %v1411, 0.0
      %vm1572 = vcmp.ge.f32.partialorder %v1412, 0.0
      %vm1573 = vcmp.ge.f32.partialorder %v1413, 0.0
      %v1574 = vsub.f32 0.0, %v1558
      %v1575 = vsub.f32 0.0, %v1559
      %v1576 = vsub.f32 0.0, %v1560
      %v1577 = vsub.f32 0.0, %v1561
      %v1578 = vsub.f32 0.0, %v1562
      %v1579 = vsub.f32 0.0, %v1563
      %v1580 = vsub.f32 0.0, %v1564
      %v1581 = vsub.f32 0.0, %v1565
      %v1582 = vsel %vm1566, %v1558, %v1574
      %v1583 = vsel %vm1567, %v1559, %v1575
      %v1584 = vsel %vm1568, %v1560, %v1576
      %v1585 = vsel %vm1569, %v1561, %v1577
      %v1586 = vsel %vm1570, %v1562, %v1578
      %v1587 = vsel %vm1571, %v1563, %v1579
      %v1588 = vsel %vm1572, %v1564, %v1580
      %v1589 = vsel %vm1573, %v1565, %v1581
      %v1590 = vmul.f32 %v1398, 0.5
      %v1591 = vmul.f32 %v1399, 0.5
      %v1592 = vmul.f32 %v1400, 0.5
      %v1593 = vmul.f32 %v1401, 0.5
      %v1594 = vmul.f32 %v1402, 0.5
      %v1595 = vmul.f32 %v1403, 0.5
      %v1596 = vmul.f32 %v1404, 0.5
      %v1597 = vmul.f32 %v1405, 0.5
      %v1598 = vadd.f32 %v1582, 1.0
      %v1599 = vadd.f32 %v1583, 1.0
      %v1600 = vadd.f32 %v1584, 1.0
      %v1601 = vadd.f32 %v1585, 1.0
      %v1602 = vadd.f32 %v1586, 1.0
      %v1603 = vadd.f32 %v1587, 1.0
      %v1604 = vadd.f32 %v1588, 1.0
      %v1605 = vadd.f32 %v1589, 1.0
      %v1606 = vmul.f32 %v1590, %v1598
      %v1607 = vmul.f32 %v1591, %v1599
      %v1608 = vmul.f32 %v1592, %v1600
      %v1609 = vmul.f32 %v1593, %v1601
      %v1610 = vmul.f32 %v1594, %v1602
      %v1611 = vmul.f32 %v1595, %v1603
      %v1612 = vmul.f32 %v1596, %v1604
      %v1613 = vmul.f32 %v1597, %v1605
      %v1614 = vsel %vm1386, 1, 0
      %v1615 = vsel %vm1387, 1, 0
      %v1616 = vsel %vm1388, 1, 0
      %v1617 = vsel %vm1389, 1, 0
      %v1618 = vsel %vm1390, 1, 0
      %v1619 = vsel %vm1391, 1, 0
      %v1620 = vsel %vm1392, 1, 0
      %v1621 = vsel %vm1393, 1, 0
      %vm1622 = vcmp.eq.s32.totalorder %v1614, 1
      %vm1623 = vcmp.eq.s32.totalorder %v1615, 1
      %vm1624 = vcmp.eq.s32.totalorder %v1616, 1
      %vm1625 = vcmp.eq.s32.totalorder %v1617, 1
      %vm1626 = vcmp.eq.s32.totalorder %v1618, 1
      %vm1627 = vcmp.eq.s32.totalorder %v1619, 1
      %vm1628 = vcmp.eq.s32.totalorder %v1620, 1
      %vm1629 = vcmp.eq.s32.totalorder %v1621, 1
      %v1630 = vsel %vm1622, %v1606, 0.0
      %v1631 = vsel %vm1623, %v1607, 0.0
      %v1632 = vsel %vm1624, %v1608, 0.0
      %v1633 = vsel %vm1625, %v1609, 0.0
      %v1634 = vsel %vm1626, %v1610, 0.0
      %v1635 = vsel %vm1627, %v1611, 0.0
      %v1636 = vsel %vm1628, %v1612, 0.0
      %v1637 = vsel %vm1629, %v1613, 0.0
      %v1638 = vpack.c.bf16 %v1630, %v1630
      %v1639 = vpack.c.bf16 %v1631, %v1631
      %v1640 = vpack.c.bf16 %v1632, %v1632
      %v1641 = vpack.c.bf16 %v1633, %v1633
      %v1642 = vpack.c.bf16 %v1634, %v1634
      %v1643 = vpack.c.bf16 %v1635, %v1635
      %v1644 = vpack.c.bf16 %v1636, %v1636
      %v1645 = vpack.c.bf16 %v1637, %v1637
      %vm1646 = vcmask 257024
      %1647 = vst.msk [vmem:[#allocation3 + $0x8] sm:$0xf] %vm1646, %v1638
      %1648 = vst.msk [vmem:[#allocation3 + $0xc] sm:$0xf] %vm1646, %v1639
      %1649 = vst.msk [vmem:[#allocation3 + $0x10] sm:$0xf] %vm1646, %v1640
      %1650 = vst.msk [vmem:[#allocation3 + $0x14] sm:$0xf] %vm1646, %v1641
      %1651 = vst.msk [vmem:[#allocation3 + $0x18] sm:$0xf] %vm1646, %v1642
      %1652 = vst.msk [vmem:[#allocation3 + $0x1c] sm:$0xf] %vm1646, %v1643
      %1653 = vst.msk [vmem:[#allocation3 + $0x20] sm:$0xf] %vm1646, %v1644
      %1654 = vst.msk [vmem:[#allocation3 + $0x24] sm:$0xf] %vm1646, %v1645
      %1655 = vst.msk [vmem:[#allocation3] sm:$0xf] %vm1646, 0
      %1656 = vst.msk [vmem:[#allocation3 + $0x4] sm:$0xf] %vm1646, 0
      %1657 = vst.msk [vmem:[#allocation3 + $0x28] sm:$0xf] %vm1646, 0
      %1658 = vst.msk [vmem:[#allocation3 + $0x2c] sm:$0xf] %vm1646, 0
      %1659 = vst.msk [vmem:[#allocation3 + $0x30] sm:$0xf] %vm1646, 0
      %1660 = vst.msk [vmem:[#allocation3 + $0x34] sm:$0xf] %vm1646, 0
      %v1661 = vld [vmem:[#allocation3] sm:$0xf]
      %v1662 = vld [vmem:[#allocation3 + $0x4] sm:$0xf]
      %v1663 = vld [vmem:[#allocation3 + $0x8] sm:$0xf]
      %v1664 = vld [vmem:[#allocation3 + $0xc] sm:$0xf]
      %v1665 = vld [vmem:[#allocation3 + $0x10] sm:$0xf]
      %v1666 = vld [vmem:[#allocation3 + $0x14] sm:$0xf]
      %v1667 = vld [vmem:[#allocation3 + $0x18] sm:$0xf]
      %v1668 = vld [vmem:[#allocation3 + $0x1c] sm:$0xf]
      %v1669 = vld [vmem:[%s3] sm:$0xf]
      %v1670 = vld [vmem:[%s3 + $0x4] sm:$0xf]
      %v1671 = vld [vmem:[%s3 + $0x8] sm:$0xf]
      %v1672 = vld [vmem:[%s3 + $0xc] sm:$0xf]
      %v1673 = vld [vmem:[#allocation3 + $0x20] sm:$0x1]
      %s1674 = scalar_lea.vmem %s3, 16
      %v1675 = vld [vmem:[%s1674] sm:$0xf]
      %v1676 = vld [vmem:[%s1674 + $0x4] sm:$0xf]
      %v1677 = vld [vmem:[%s1674 + $0x8] sm:$0xf]
      %v1678 = vld [vmem:[%s1674 + $0xc] sm:$0xf]
      %v1688 = vunpack.c.l.b16 %v1661
      %v1689 = vunpack.c.l.b16 %v1662
      %v1690 = vunpack.c.l.b16 %v1663
      %v1691 = vunpack.c.l.b16 %v1664
      %v1692 = vunpack.c.l.b16 %v1665
      %v1693 = vunpack.c.l.b16 %v1666
      %v1694 = vunpack.c.l.b16 %v1667
      %v1695 = vunpack.c.l.b16 %v1668
      %v1696 = vunpack.c.l.b16 %v1673
      %v1697 = vpack.c.b16 %v1689, %v1688
      %v1698 = vpack.c.b16 %v1691, %v1690
      %v1699 = vpack.c.b16 %v1693, %v1692
      %v1700 = vpack.c.b16 %v1695, %v1694
      %v1701 = vpack.c.b16 %v1696, %v1696
      %vm1702 = vsmask.f32 7424
      %v1704 = vshrl.u32 %v1697, 16
      %v1706 = vshll.u32 %v1697, 16
      %v1708 = vrot.slane %v1706, 1
      %v1709 = vor.u32 %v1704, %v1708
      %v1711 = vshll.u32 %v1698, 16
      %v1713 = vrot.slane %v1711, 1
      %v1714 = vsel %vm1702, %v1709, %v1713
      %v1715 = vshrl.u32 %v1698, 16
      %v1717 = vor.u32 %v1715, %v1713
      %v1719 = vshll.u32 %v1699, 16
      %v1721 = vrot.slane %v1719, 1
      %v1722 = vsel %vm1702, %v1717, %v1721
      %v1723 = vshrl.u32 %v1699, 16
      %v1725 = vor.u32 %v1723, %v1721
      %v1727 = vshll.u32 %v1700, 16
      %v1729 = vrot.slane %v1727, 1
      %v1730 = vsel %vm1702, %v1725, %v1729
      %v1731 = vshrl.u32 %v1700, 16
      %v1733 = vor.u32 %v1731, %v1729
      %v1735 = vshll.u32 %v1701, 16
      %v1737 = vrot.slane %v1735, 1
      %v1738 = vsel %vm1702, %v1733, %v1737
      %v1743 = vunpack.c.l.b16 %v1675
      %v1744 = vunpack.c.l.b16 %v1676
      %v1745 = vunpack.c.l.b16 %v1677
      %v1746 = vunpack.c.l.b16 %v1678
      %v1747 = vpack.c.b16 %v1744, %v1743
      %v1748 = vpack.c.b16 %v1746, %v1745
      %vm1751 = vcmask 261120
      %v1753 = vsel %vm1751, %v1714, 0
      %v1756 = vsel %vm1751, %v1722, 0
      %v1759 = vsel %vm1751, %v1730, 0
      %v1762 = vsel %vm1751, %v1738, 0
      %1764 = vmatpush.bf16.msra.mxu0 0
      %1765 = vmatpush.bf16.msra.mxu0 0
      %1766 = vmatpush.bf16.msra.mxu0 0
      %1767 = vmatpush.bf16.msra.mxu0 0
      %1768 = vmatpush.bf16.msra.mxu0 0
      %1769 = vmatpush.bf16.msra.mxu0 0
      %1770 = vmatpush.bf16.msra.mxu0 %v1748
      %1771 = vmatpush.bf16.msra.mxu0 %v1747
      %1772 = vmatmul.bf16.gmra.mxu0 %v1753
      %v1773 = vpop.f32.mrf.mxu0
      %v1774 = vadd.f32 0.0, %v1773
      %v1775 = vpop.f32.mrf.mxu0
      %v1776 = vadd.f32 0.0, %v1775
      %1777 = vmatmul.bf16.gmra.mxu0 %v1756
      %v1778 = vpop.f32.mrf.mxu0
      %v1779 = vadd.f32 0.0, %v1778
      %v1780 = vpop.f32.mrf.mxu0
      %v1781 = vadd.f32 0.0, %v1780
      %1782 = vmatmul.bf16.gmra.mxu0 %v1759
      %v1783 = vpop.f32.mrf.mxu0
      %v1784 = vadd.f32 0.0, %v1783
      %v1785 = vpop.f32.mrf.mxu0
      %v1786 = vadd.f32 0.0, %v1785
      %1787 = vmatmul.bf16.gmra.mxu0 %v1762
      %v1788 = vpop.f32.mrf.mxu0
      %v1789 = vadd.f32 0.0, %v1788
      %v1790 = vpop.f32.mrf.mxu0
      %v1791 = vadd.f32 0.0, %v1790
      %1792 = vdwg.mxu0
      %v1797 = vunpack.c.l.b16 %v1669
      %v1798 = vunpack.c.l.b16 %v1670
      %v1799 = vunpack.c.l.b16 %v1671
      %v1800 = vunpack.c.l.b16 %v1672
      %v1801 = vpack.c.b16 %v1798, %v1797
      %v1802 = vpack.c.b16 %v1800, %v1799
      %v1805 = vsel %vm1751, %v1697, 0
      %v1807 = vsel %vm1751, %v1698, 0
      %v1809 = vsel %vm1751, %v1699, 0
      %v1811 = vsel %vm1751, %v1700, 0
      %1813 = vmatpush.bf16.msra.mxu0 0
      %1814 = vmatpush.bf16.msra.mxu0 0
      %1815 = vmatpush.bf16.msra.mxu0 0
      %1816 = vmatpush.bf16.msra.mxu0 0
      %1817 = vmatpush.bf16.msra.mxu0 0
      %1818 = vmatpush.bf16.msra.mxu0 0
      %1819 = vmatpush.bf16.msra.mxu0 %v1802
      %1820 = vmatpush.bf16.msra.mxu0 %v1801
      %1821 = vmatmul.bf16.gmra.mxu0 %v1805
      %v1822 = vpop.f32.mrf.mxu0
      %v1823 = vadd.f32 %v1774, %v1822
      %v1824 = vpop.f32.mrf.mxu0
      %v1825 = vadd.f32 %v1776, %v1824
      %1826 = vmatmul.bf16.gmra.mxu0 %v1807
      %v1827 = vpop.f32.mrf.mxu0
      %v1828 = vadd.f32 %v1779, %v1827
      %v1829 = vpop.f32.mrf.mxu0
      %v1830 = vadd.f32 %v1781, %v1829
      %1831 = vmatmul.bf16.gmra.mxu0 %v1809
      %v1832 = vpop.f32.mrf.mxu0
      %v1833 = vadd.f32 %v1784, %v1832
      %v1834 = vpop.f32.mrf.mxu0
      %v1835 = vadd.f32 %v1786, %v1834
      %1836 = vmatmul.bf16.gmra.mxu0 %v1811
      %v1837 = vpop.f32.mrf.mxu0
      %v1838 = vadd.f32 %v1789, %v1837
      %v1839 = vpop.f32.mrf.mxu0
      %v1840 = vadd.f32 %v1791, %v1839
      %1841 = vdwg.mxu0
      %v1842 = vld [vmem:[#allocation3] sm:$0xe]
      %s1843 = scalar_lea.vmem %s3, 32
      %v1844 = vld [vmem:[%s1843] sm:$0xf]
      %v1845 = vld [vmem:[%s1843 + $0x4] sm:$0xf]
      %v1846 = vld [vmem:[%s1843 + $0x8] sm:$0xf]
      %v1847 = vld [vmem:[%s1843 + $0xc] sm:$0xf]
      %v1849 = vunpack.c.l.b16 %v1842
      %v1850 = vpack.c.b16 %v1689, %v1849
      %vm1851 = vcmask 1046528
      %v1852 = vrot.slane %v1850, 1
      %v1853 = vrot.slane %v1698, 1
      %v1854 = vsel %vm1851, %v1852, %v1853
      %v1855 = vrot.slane %v1699, 1
      %v1856 = vsel %vm1851, %v1853, %v1855
      %v1857 = vrot.slane %v1700, 1
      %v1858 = vsel %vm1851, %v1855, %v1857
      %v1859 = vrot.slane %v1701, 1
      %v1860 = vsel %vm1851, %v1857, %v1859
      %v1865 = vunpack.c.l.b16 %v1844
      %v1866 = vunpack.c.l.b16 %v1845
      %v1867 = vunpack.c.l.b16 %v1846
      %v1868 = vunpack.c.l.b16 %v1847
      %v1869 = vpack.c.b16 %v1866, %v1865
      %v1870 = vpack.c.b16 %v1868, %v1867
      %v1874 = vsel %vm1751, %v1854, 0
      %v1877 = vsel %vm1751, %v1856, 0
      %v1880 = vsel %vm1751, %v1858, 0
      %v1883 = vsel %vm1751, %v1860, 0
      %1885 = vmatpush.bf16.msra.mxu0 0
      %1886 = vmatpush.bf16.msra.mxu0 0
      %1887 = vmatpush.bf16.msra.mxu0 0
      %1888 = vmatpush.bf16.msra.mxu0 0
      %1889 = vmatpush.bf16.msra.mxu0 0
      %1890 = vmatpush.bf16.msra.mxu0 0
      %1891 = vmatpush.bf16.msra.mxu0 %v1870
      %1892 = vmatpush.bf16.msra.mxu0 %v1869
      %1893 = vmatmul.bf16.gmra.mxu0 %v1874
      %v1894 = vpop.f32.mrf.mxu0
      %v1895 = vadd.f32 0.0, %v1894
      %v1896 = vpop.f32.mrf.mxu0
      %v1897 = vadd.f32 0.0, %v1896
      %1898 = vmatmul.bf16.gmra.mxu0 %v1877
      %v1899 = vpop.f32.mrf.mxu0
      %v1900 = vadd.f32 0.0, %v1899
      %v1901 = vpop.f32.mrf.mxu0
      %v1902 = vadd.f32 0.0, %v1901
      %1903 = vmatmul.bf16.gmra.mxu0 %v1880
      %v1904 = vpop.f32.mrf.mxu0
      %v1905 = vadd.f32 0.0, %v1904
      %v1906 = vpop.f32.mrf.mxu0
      %v1907 = vadd.f32 0.0, %v1906
      %1908 = vmatmul.bf16.gmra.mxu0 %v1883
      %v1909 = vpop.f32.mrf.mxu0
      %v1910 = vadd.f32 0.0, %v1909
      %v1911 = vpop.f32.mrf.mxu0
      %v1912 = vadd.f32 0.0, %v1911
      %1913 = vdwg.mxu0
      %v1914 = vadd.f32 %v1823, %v1895
      %v1915 = vadd.f32 %v1825, %v1897
      %v1916 = vadd.f32 %v1828, %v1900
      %v1917 = vadd.f32 %v1830, %v1902
      %v1918 = vadd.f32 %v1833, %v1905
      %v1919 = vadd.f32 %v1835, %v1907
      %v1920 = vadd.f32 %v1838, %v1910
      %v1921 = vadd.f32 %v1840, %v1912
      %v1922 = vld [vmem:[#allocation3 + $0x8] sm:$0xf]
      %v1923 = vld [vmem:[#allocation3 + $0xc] sm:$0xf]
      %v1924 = vld [vmem:[#allocation3 + $0x10] sm:$0xf]
      %v1925 = vld [vmem:[#allocation3 + $0x14] sm:$0xf]
      %v1926 = vld [vmem:[#allocation3 + $0x18] sm:$0xf]
      %v1927 = vld [vmem:[#allocation3 + $0x1c] sm:$0xf]
      %v1928 = vld [vmem:[#allocation3 + $0x20] sm:$0xf]
      %v1929 = vld [vmem:[#allocation3 + $0x24] sm:$0xf]
      %s1930 = scalar_lea.vmem %s3, 48
      %v1931 = vld [vmem:[%s1930] sm:$0xf]
      %v1932 = vld [vmem:[%s1930 + $0x4] sm:$0xf]
      %v1933 = vld [vmem:[%s1930 + $0x8] sm:$0xf]
      %v1934 = vld [vmem:[%s1930 + $0xc] sm:$0xf]
      %v1943 = vunpack.c.l.b16 %v1922
      %v1944 = vunpack.c.l.b16 %v1923
      %v1945 = vunpack.c.l.b16 %v1924
      %v1946 = vunpack.c.l.b16 %v1925
      %v1947 = vunpack.c.l.b16 %v1926
      %v1948 = vunpack.c.l.b16 %v1927
      %v1949 = vunpack.c.l.b16 %v1928
      %v1950 = vunpack.c.l.b16 %v1929
      %v1951 = vpack.c.b16 %v1944, %v1943
      %v1952 = vpack.c.b16 %v1946, %v1945
      %v1953 = vpack.c.b16 %v1948, %v1947
      %v1954 = vpack.c.b16 %v1950, %v1949
      %v1959 = vunpack.c.l.b16 %v1931
      %v1960 = vunpack.c.l.b16 %v1932
      %v1961 = vunpack.c.l.b16 %v1933
      %v1962 = vunpack.c.l.b16 %v1934
      %v1963 = vpack.c.b16 %v1960, %v1959
      %v1964 = vpack.c.b16 %v1962, %v1961
      %v1968 = vsel %vm1751, %v1951, 0
      %v1971 = vsel %vm1751, %v1952, 0
      %v1974 = vsel %vm1751, %v1953, 0
      %v1977 = vsel %vm1751, %v1954, 0
      %1979 = vmatpush.bf16.msra.mxu0 0
      %1980 = vmatpush.bf16.msra.mxu0 0
      %1981 = vmatpush.bf16.msra.mxu0 0
      %1982 = vmatpush.bf16.msra.mxu0 0
      %1983 = vmatpush.bf16.msra.mxu0 0
      %1984 = vmatpush.bf16.msra.mxu0 0
      %1985 = vmatpush.bf16.msra.mxu0 %v1964
      %1986 = vmatpush.bf16.msra.mxu0 %v1963
      %1987 = vmatmul.bf16.gmra.mxu0 %v1968
      %v1988 = vpop.f32.mrf.mxu0
      %v1989 = vadd.f32 0.0, %v1988
      %v1990 = vpop.f32.mrf.mxu0
      %v1991 = vadd.f32 0.0, %v1990
      %1992 = vmatmul.bf16.gmra.mxu0 %v1971
      %v1993 = vpop.f32.mrf.mxu0
      %v1994 = vadd.f32 0.0, %v1993
      %v1995 = vpop.f32.mrf.mxu0
      %v1996 = vadd.f32 0.0, %v1995
      %1997 = vmatmul.bf16.gmra.mxu0 %v1974
      %v1998 = vpop.f32.mrf.mxu0
      %v1999 = vadd.f32 0.0, %v1998
      %v2000 = vpop.f32.mrf.mxu0
      %v2001 = vadd.f32 0.0, %v2000
      %2002 = vmatmul.bf16.gmra.mxu0 %v1977
      %v2003 = vpop.f32.mrf.mxu0
      %v2004 = vadd.f32 0.0, %v2003
      %v2005 = vpop.f32.mrf.mxu0
      %v2006 = vadd.f32 0.0, %v2005
      %2007 = vdwg.mxu0
      %v2008 = vadd.f32 %v1914, %v1989
      %v2009 = vadd.f32 %v1915, %v1991
      %v2010 = vadd.f32 %v1916, %v1994
      %v2011 = vadd.f32 %v1917, %v1996
      %v2012 = vadd.f32 %v1918, %v1999
      %v2013 = vadd.f32 %v1919, %v2001
      %v2014 = vadd.f32 %v1920, %v2004
      %v2015 = vadd.f32 %v1921, %v2006
      %v2016 = vld [vmem:[#allocation3 + $0x8] sm:$0xf]
      %v2017 = vld [vmem:[#allocation3 + $0xc] sm:$0xf]
      %v2018 = vld [vmem:[#allocation3 + $0x10] sm:$0xf]
      %v2019 = vld [vmem:[#allocation3 + $0x14] sm:$0xf]
      %v2020 = vld [vmem:[#allocation3 + $0x18] sm:$0xf]
      %v2021 = vld [vmem:[#allocation3 + $0x1c] sm:$0xf]
      %v2022 = vld [vmem:[#allocation3 + $0x20] sm:$0xf]
      %v2023 = vld [vmem:[#allocation3 + $0x24] sm:$0xf]
      %v2024 = vld [vmem:[#allocation3 + $0x28] sm:$0x1]
      %s2025 = scalar_lea.vmem %s3, 64
      %v2026 = vld [vmem:[%s2025] sm:$0xf]
      %v2027 = vld [vmem:[%s2025 + $0x4] sm:$0xf]
      %v2028 = vld [vmem:[%s2025 + $0x8] sm:$0xf]
      %v2029 = vld [vmem:[%s2025 + $0xc] sm:$0xf]
      %v2039 = vunpack.c.l.b16 %v2016
      %v2040 = vunpack.c.l.b16 %v2017
      %v2041 = vunpack.c.l.b16 %v2018
      %v2042 = vunpack.c.l.b16 %v2019
      %v2043 = vunpack.c.l.b16 %v2020
      %v2044 = vunpack.c.l.b16 %v2021
      %v2045 = vunpack.c.l.b16 %v2022
      %v2046 = vunpack.c.l.b16 %v2023
      %v2047 = vunpack.c.l.b16 %v2024
      %v2048 = vpack.c.b16 %v2040, %v2039
      %v2049 = vpack.c.b16 %v2042, %v2041
      %v2050 = vpack.c.b16 %v2044, %v2043
      %v2051 = vpack.c.b16 %v2046, %v2045
      %v2052 = vpack.c.b16 %v2047, %v2047
      %v2054 = vshrl.u32 %v2048, 16
      %v2056 = vshll.u32 %v2048, 16
      %v2058 = vrot.slane %v2056, 1
      %v2059 = vor.u32 %v2054, %v2058
      %v2061 = vshll.u32 %v2049, 16
      %v2063 = vrot.slane %v2061, 1
      %v2064 = vsel %vm1702, %v2059, %v2063
      %v2065 = vshrl.u32 %v2049, 16
      %v2067 = vor.u32 %v2065, %v2063
      %v2069 = vshll.u32 %v2050, 16
      %v2071 = vrot.slane %v2069, 1
      %v2072 = vsel %vm1702, %v2067, %v2071
      %v2073 = vshrl.u32 %v2050, 16
      %v2075 = vor.u32 %v2073, %v2071
      %v2077 = vshll.u32 %v2051, 16
      %v2079 = vrot.slane %v2077, 1
      %v2080 = vsel %vm1702, %v2075, %v2079
      %v2081 = vshrl.u32 %v2051, 16
      %v2083 = vor.u32 %v2081, %v2079
      %v2085 = vshll.u32 %v2052, 16
      %v2087 = vrot.slane %v2085, 1
      %v2088 = vsel %vm1702, %v2083, %v2087
      %v2093 = vunpack.c.l.b16 %v2026
      %v2094 = vunpack.c.l.b16 %v2027
      %v2095 = vunpack.c.l.b16 %v2028
      %v2096 = vunpack.c.l.b16 %v2029
      %v2097 = vpack.c.b16 %v2094, %v2093
      %v2098 = vpack.c.b16 %v2096, %v2095
      %v2102 = vsel %vm1751, %v2064, 0
      %v2105 = vsel %vm1751, %v2072, 0
      %v2108 = vsel %vm1751, %v2080, 0
      %v2111 = vsel %vm1751, %v2088, 0
      %2113 = vmatpush.bf16.msra.mxu0 0
      %2114 = vmatpush.bf16.msra.mxu0 0
      %2115 = vmatpush.bf16.msra.mxu0 0
      %2116 = vmatpush.bf16.msra.mxu0 0
      %2117 = vmatpush.bf16.msra.mxu0 0
      %2118 = vmatpush.bf16.msra.mxu0 0
      %2119 = vmatpush.bf16.msra.mxu0 %v2098
      %2120 = vmatpush.bf16.msra.mxu0 %v2097
      %2121 = vmatmul.bf16.gmra.mxu0 %v2102
      %v2122 = vpop.f32.mrf.mxu0
      %v2123 = vadd.f32 0.0, %v2122
      %v2124 = vpop.f32.mrf.mxu0
      %v2125 = vadd.f32 0.0, %v2124
      %2126 = vmatmul.bf16.gmra.mxu0 %v2105
      %v2127 = vpop.f32.mrf.mxu0
      %v2128 = vadd.f32 0.0, %v2127
      %v2129 = vpop.f32.mrf.mxu0
      %v2130 = vadd.f32 0.0, %v2129
      %2131 = vmatmul.bf16.gmra.mxu0 %v2108
      %v2132 = vpop.f32.mrf.mxu0
      %v2133 = vadd.f32 0.0, %v2132
      %v2134 = vpop.f32.mrf.mxu0
      %v2135 = vadd.f32 0.0, %v2134
      %2136 = vmatmul.bf16.gmra.mxu0 %v2111
      %v2137 = vpop.f32.mrf.mxu0
      %v2138 = vadd.f32 0.0, %v2137
      %v2139 = vpop.f32.mrf.mxu0
      %v2140 = vadd.f32 0.0, %v2139
      %2141 = vdwg.mxu0
      %v2142 = vadd.f32 %v2008, %v2123
      %v2143 = vadd.f32 %v2009, %v2125
      %v2144 = vadd.f32 %v2010, %v2128
      %v2145 = vadd.f32 %v2011, %v2130
      %v2146 = vadd.f32 %v2012, %v2133
      %v2147 = vadd.f32 %v2013, %v2135
      %v2148 = vadd.f32 %v2014, %v2138
      %v2149 = vadd.f32 %v2015, %v2140
      %v2150 = vld [vmem:[#allocation3 + $0x8] sm:$0xe]
      %s2151 = scalar_lea.vmem %s3, 80
      %v2152 = vld [vmem:[%s2151] sm:$0xf]
      %v2153 = vld [vmem:[%s2151 + $0x4] sm:$0xf]
      %v2154 = vld [vmem:[%s2151 + $0x8] sm:$0xf]
      %v2155 = vld [vmem:[%s2151 + $0xc] sm:$0xf]
      %v2157 = vunpack.c.l.b16 %v2150
      %v2158 = vpack.c.b16 %v2040, %v2157
      %v2159 = vrot.slane %v2158, 1
      %v2160 = vrot.slane %v2049, 1
      %v2161 = vsel %vm1851, %v2159, %v2160
      %v2162 = vrot.slane %v2050, 1
      %v2163 = vsel %vm1851, %v2160, %v2162
      %v2164 = vrot.slane %v2051, 1
      %v2165 = vsel %vm1851, %v2162, %v2164
      %v2166 = vrot.slane %v2052, 1
      %v2167 = vsel %vm1851, %v2164, %v2166
      %v2172 = vunpack.c.l.b16 %v2152
      %v2173 = vunpack.c.l.b16 %v2153
      %v2174 = vunpack.c.l.b16 %v2154
      %v2175 = vunpack.c.l.b16 %v2155
      %v2176 = vpack.c.b16 %v2173, %v2172
      %v2177 = vpack.c.b16 %v2175, %v2174
      %v2181 = vsel %vm1751, %v2161, 0
      %v2184 = vsel %vm1751, %v2163, 0
      %v2187 = vsel %vm1751, %v2165, 0
      %v2190 = vsel %vm1751, %v2167, 0
      %2192 = vmatpush.bf16.msra.mxu0 0
      %2193 = vmatpush.bf16.msra.mxu0 0
      %2194 = vmatpush.bf16.msra.mxu0 0
      %2195 = vmatpush.bf16.msra.mxu0 0
      %2196 = vmatpush.bf16.msra.mxu0 0
      %2197 = vmatpush.bf16.msra.mxu0 0
      %2198 = vmatpush.bf16.msra.mxu0 %v2177
      %2199 = vmatpush.bf16.msra.mxu0 %v2176
      %2200 = vmatmul.bf16.gmra.mxu0 %v2181
      %v2201 = vpop.f32.mrf.mxu0
      %v2202 = vadd.f32 0.0, %v2201
      %v2203 = vpop.f32.mrf.mxu0
      %v2204 = vadd.f32 0.0, %v2203
      %2205 = vmatmul.bf16.gmra.mxu0 %v2184
      %v2206 = vpop.f32.mrf.mxu0
      %v2207 = vadd.f32 0.0, %v2206
      %v2208 = vpop.f32.mrf.mxu0
      %v2209 = vadd.f32 0.0, %v2208
      %2210 = vmatmul.bf16.gmra.mxu0 %v2187
      %v2211 = vpop.f32.mrf.mxu0
      %v2212 = vadd.f32 0.0, %v2211
      %v2213 = vpop.f32.mrf.mxu0
      %v2214 = vadd.f32 0.0, %v2213
      %2215 = vmatmul.bf16.gmra.mxu0 %v2190
      %v2216 = vpop.f32.mrf.mxu0
      %v2217 = vadd.f32 0.0, %v2216
      %v2218 = vpop.f32.mrf.mxu0
      %v2219 = vadd.f32 0.0, %v2218
      %2220 = vdwg.mxu0
      %v2221 = vadd.f32 %v2142, %v2202
      %v2222 = vadd.f32 %v2143, %v2204
      %v2223 = vadd.f32 %v2144, %v2207
      %v2224 = vadd.f32 %v2145, %v2209
      %v2225 = vadd.f32 %v2146, %v2212
      %v2226 = vadd.f32 %v2147, %v2214
      %v2227 = vadd.f32 %v2148, %v2217
      %v2228 = vadd.f32 %v2149, %v2219
      %v2229 = vld [vmem:[#allocation3 + $0x10] sm:$0xf]
      %v2230 = vld [vmem:[#allocation3 + $0x14] sm:$0xf]
      %v2231 = vld [vmem:[#allocation3 + $0x18] sm:$0xf]
      %v2232 = vld [vmem:[#allocation3 + $0x1c] sm:$0xf]
      %v2233 = vld [vmem:[#allocation3 + $0x20] sm:$0xf]
      %v2234 = vld [vmem:[#allocation3 + $0x24] sm:$0xf]
      %v2235 = vld [vmem:[#allocation3 + $0x28] sm:$0xf]
      %v2236 = vld [vmem:[#allocation3 + $0x2c] sm:$0xf]
      %s2237 = scalar_lea.vmem %s3, 96
      %v2238 = vld [vmem:[%s2237] sm:$0xf]
      %v2239 = vld [vmem:[%s2237 + $0x4] sm:$0xf]
      %v2240 = vld [vmem:[%s2237 + $0x8] sm:$0xf]
      %v2241 = vld [vmem:[%s2237 + $0xc] sm:$0xf]
      %v2250 = vunpack.c.l.b16 %v2229
      %v2251 = vunpack.c.l.b16 %v2230
      %v2252 = vunpack.c.l.b16 %v2231
      %v2253 = vunpack.c.l.b16 %v2232
      %v2254 = vunpack.c.l.b16 %v2233
      %v2255 = vunpack.c.l.b16 %v2234
      %v2256 = vunpack.c.l.b16 %v2235
      %v2257 = vunpack.c.l.b16 %v2236
      %v2258 = vpack.c.b16 %v2251, %v2250
      %v2259 = vpack.c.b16 %v2253, %v2252
      %v2260 = vpack.c.b16 %v2255, %v2254
      %v2261 = vpack.c.b16 %v2257, %v2256
      %v2266 = vunpack.c.l.b16 %v2238
      %v2267 = vunpack.c.l.b16 %v2239
      %v2268 = vunpack.c.l.b16 %v2240
      %v2269 = vunpack.c.l.b16 %v2241
      %v2270 = vpack.c.b16 %v2267, %v2266
      %v2271 = vpack.c.b16 %v2269, %v2268
      %v2275 = vsel %vm1751, %v2258, 0
      %v2278 = vsel %vm1751, %v2259, 0
      %v2281 = vsel %vm1751, %v2260, 0
      %v2284 = vsel %vm1751, %v2261, 0
      %2286 = vmatpush.bf16.msra.mxu0 0
      %2287 = vmatpush.bf16.msra.mxu0 0
      %2288 = vmatpush.bf16.msra.mxu0 0
      %2289 = vmatpush.bf16.msra.mxu0 0
      %2290 = vmatpush.bf16.msra.mxu0 0
      %2291 = vmatpush.bf16.msra.mxu0 0
      %2292 = vmatpush.bf16.msra.mxu0 %v2271
      %2293 = vmatpush.bf16.msra.mxu0 %v2270
      %2294 = vmatmul.bf16.gmra.mxu0 %v2275
      %v2295 = vpop.f32.mrf.mxu0
      %v2296 = vadd.f32 0.0, %v2295
      %v2297 = vpop.f32.mrf.mxu0
      %v2298 = vadd.f32 0.0, %v2297
      %2299 = vmatmul.bf16.gmra.mxu0 %v2278
      %v2300 = vpop.f32.mrf.mxu0
      %v2301 = vadd.f32 0.0, %v2300
      %v2302 = vpop.f32.mrf.mxu0
      %v2303 = vadd.f32 0.0, %v2302
      %2304 = vmatmul.bf16.gmra.mxu0 %v2281
      %v2305 = vpop.f32.mrf.mxu0
      %v2306 = vadd.f32 0.0, %v2305
      %v2307 = vpop.f32.mrf.mxu0
      %v2308 = vadd.f32 0.0, %v2307
      %2309 = vmatmul.bf16.gmra.mxu0 %v2284
      %v2310 = vpop.f32.mrf.mxu0
      %v2311 = vadd.f32 0.0, %v2310
      %v2312 = vpop.f32.mrf.mxu0
      %v2313 = vadd.f32 0.0, %v2312
      %2314 = vdwg.mxu0
      %v2315 = vadd.f32 %v2221, %v2296
      %v2316 = vadd.f32 %v2222, %v2298
      %v2317 = vadd.f32 %v2223, %v2301
      %v2318 = vadd.f32 %v2224, %v2303
      %v2319 = vadd.f32 %v2225, %v2306
      %v2320 = vadd.f32 %v2226, %v2308
      %v2321 = vadd.f32 %v2227, %v2311
      %v2322 = vadd.f32 %v2228, %v2313
      %v2323 = vld [vmem:[#allocation3 + $0x10] sm:$0xf]
      %v2324 = vld [vmem:[#allocation3 + $0x14] sm:$0xf]
      %v2325 = vld [vmem:[#allocation3 + $0x18] sm:$0xf]
      %v2326 = vld [vmem:[#allocation3 + $0x1c] sm:$0xf]
      %v2327 = vld [vmem:[#allocation3 + $0x20] sm:$0xf]
      %v2328 = vld [vmem:[#allocation3 + $0x24] sm:$0xf]
      %v2329 = vld [vmem:[#allocation3 + $0x28] sm:$0xf]
      %v2330 = vld [vmem:[#allocation3 + $0x2c] sm:$0xf]
      %v2331 = vld [vmem:[#allocation3 + $0x30] sm:$0x1]
      %s2332 = scalar_lea.vmem %s3, 112
      %v2333 = vld [vmem:[%s2332] sm:$0xf]
      %v2334 = vld [vmem:[%s2332 + $0x4] sm:$0xf]
      %v2335 = vld [vmem:[%s2332 + $0x8] sm:$0xf]
      %v2336 = vld [vmem:[%s2332 + $0xc] sm:$0xf]
      %v2346 = vunpack.c.l.b16 %v2323
      %v2347 = vunpack.c.l.b16 %v2324
      %v2348 = vunpack.c.l.b16 %v2325
      %v2349 = vunpack.c.l.b16 %v2326
      %v2350 = vunpack.c.l.b16 %v2327
      %v2351 = vunpack.c.l.b16 %v2328
      %v2352 = vunpack.c.l.b16 %v2329
      %v2353 = vunpack.c.l.b16 %v2330
      %v2354 = vunpack.c.l.b16 %v2331
      %v2355 = vpack.c.b16 %v2347, %v2346
      %v2356 = vpack.c.b16 %v2349, %v2348
      %v2357 = vpack.c.b16 %v2351, %v2350
      %v2358 = vpack.c.b16 %v2353, %v2352
      %v2359 = vpack.c.b16 %v2354, %v2354
      %v2361 = vshrl.u32 %v2355, 16
      %v2363 = vshll.u32 %v2355, 16
      %v2365 = vrot.slane %v2363, 1
      %v2366 = vor.u32 %v2361, %v2365
      %v2368 = vshll.u32 %v2356, 16
      %v2370 = vrot.slane %v2368, 1
      %v2371 = vsel %vm1702, %v2366, %v2370
      %v2372 = vshrl.u32 %v2356, 16
      %v2374 = vor.u32 %v2372, %v2370
      %v2376 = vshll.u32 %v2357, 16
      %v2378 = vrot.slane %v2376, 1
      %v2379 = vsel %vm1702, %v2374, %v2378
      %v2380 = vshrl.u32 %v2357, 16
      %v2382 = vor.u32 %v2380, %v2378
      %v2384 = vshll.u32 %v2358, 16
      %v2386 = vrot.slane %v2384, 1
      %v2387 = vsel %vm1702, %v2382, %v2386
      %v2388 = vshrl.u32 %v2358, 16
      %v2390 = vor.u32 %v2388, %v2386
      %v2392 = vshll.u32 %v2359, 16
      %v2394 = vrot.slane %v2392, 1
      %v2395 = vsel %vm1702, %v2390, %v2394
      %v2400 = vunpack.c.l.b16 %v2333
      %v2401 = vunpack.c.l.b16 %v2334
      %v2402 = vunpack.c.l.b16 %v2335
      %v2403 = vunpack.c.l.b16 %v2336
      %v2404 = vpack.c.b16 %v2401, %v2400
      %v2405 = vpack.c.b16 %v2403, %v2402
      %v2409 = vsel %vm1751, %v2371, 0
      %v2412 = vsel %vm1751, %v2379, 0
      %v2415 = vsel %vm1751, %v2387, 0
      %v2418 = vsel %vm1751, %v2395, 0
      %2420 = vmatpush.bf16.msra.mxu0 0
      %2421 = vmatpush.bf16.msra.mxu0 0
      %2422 = vmatpush.bf16.msra.mxu0 0
      %2423 = vmatpush.bf16.msra.mxu0 0
      %2424 = vmatpush.bf16.msra.mxu0 0
      %2425 = vmatpush.bf16.msra.mxu0 0
      %2426 = vmatpush.bf16.msra.mxu0 %v2405
      %2427 = vmatpush.bf16.msra.mxu0 %v2404
      %2428 = vmatmul.bf16.gmra.mxu0 %v2409
      %v2429 = vpop.f32.mrf.mxu0
      %v2430 = vadd.f32 0.0, %v2429
      %v2431 = vpop.f32.mrf.mxu0
      %v2432 = vadd.f32 0.0, %v2431
      %2433 = vmatmul.bf16.gmra.mxu0 %v2412
      %v2434 = vpop.f32.mrf.mxu0
      %v2435 = vadd.f32 0.0, %v2434
      %v2436 = vpop.f32.mrf.mxu0
      %v2437 = vadd.f32 0.0, %v2436
      %2438 = vmatmul.bf16.gmra.mxu0 %v2415
      %v2439 = vpop.f32.mrf.mxu0
      %v2440 = vadd.f32 0.0, %v2439
      %v2441 = vpop.f32.mrf.mxu0
      %v2442 = vadd.f32 0.0, %v2441
      %2443 = vmatmul.bf16.gmra.mxu0 %v2418
      %v2444 = vpop.f32.mrf.mxu0
      %v2445 = vadd.f32 0.0, %v2444
      %v2446 = vpop.f32.mrf.mxu0
      %v2447 = vadd.f32 0.0, %v2446
      %2448 = vdwg.mxu0
      %v2449 = vadd.f32 %v2315, %v2430
      %v2450 = vadd.f32 %v2316, %v2432
      %v2451 = vadd.f32 %v2317, %v2435
      %v2452 = vadd.f32 %v2318, %v2437
      %v2453 = vadd.f32 %v2319, %v2440
      %v2454 = vadd.f32 %v2320, %v2442
      %v2455 = vadd.f32 %v2321, %v2445
      %v2456 = vadd.f32 %v2322, %v2447
      %v2457 = vld [vmem:[#allocation3 + $0x10] sm:$0xe]
      %s2458 = scalar_lea.vmem %s3, 128
      %v2459 = vld [vmem:[%s2458] sm:$0xf]
      %v2460 = vld [vmem:[%s2458 + $0x4] sm:$0xf]
      %v2461 = vld [vmem:[%s2458 + $0x8] sm:$0xf]
      %v2462 = vld [vmem:[%s2458 + $0xc] sm:$0xf]
      %v2464 = vunpack.c.l.b16 %v2457
      %v2465 = vpack.c.b16 %v2347, %v2464
      %v2466 = vrot.slane %v2465, 1
      %v2467 = vrot.slane %v2356, 1
      %v2468 = vsel %vm1851, %v2466, %v2467
      %v2469 = vrot.slane %v2357, 1
      %v2470 = vsel %vm1851, %v2467, %v2469
      %v2471 = vrot.slane %v2358, 1
      %v2472 = vsel %vm1851, %v2469, %v2471
      %v2473 = vrot.slane %v2359, 1
      %v2474 = vsel %vm1851, %v2471, %v2473
      %v2479 = vunpack.c.l.b16 %v2459
      %v2480 = vunpack.c.l.b16 %v2460
      %v2481 = vunpack.c.l.b16 %v2461
      %v2482 = vunpack.c.l.b16 %v2462
      %v2483 = vpack.c.b16 %v2480, %v2479
      %v2484 = vpack.c.b16 %v2482, %v2481
      %v2488 = vsel %vm1751, %v2468, 0
      %v2491 = vsel %vm1751, %v2470, 0
      %v2494 = vsel %vm1751, %v2472, 0
      %v2497 = vsel %vm1751, %v2474, 0
      %2499 = vmatpush.bf16.msra.mxu0 0
      %2500 = vmatpush.bf16.msra.mxu0 0
      %2501 = vmatpush.bf16.msra.mxu0 0
      %2502 = vmatpush.bf16.msra.mxu0 0
      %2503 = vmatpush.bf16.msra.mxu0 0
      %2504 = vmatpush.bf16.msra.mxu0 0
      %2505 = vmatpush.bf16.msra.mxu0 %v2484
      %2506 = vmatpush.bf16.msra.mxu0 %v2483
      %2507 = vmatmul.bf16.gmra.mxu0 %v2488
      %v2508 = vpop.f32.mrf.mxu0
      %v2509 = vadd.f32 0.0, %v2508
      %v2510 = vpop.f32.mrf.mxu0
      %v2511 = vadd.f32 0.0, %v2510
      %2512 = vmatmul.bf16.gmra.mxu0 %v2491
      %v2513 = vpop.f32.mrf.mxu0
      %v2514 = vadd.f32 0.0, %v2513
      %v2515 = vpop.f32.mrf.mxu0
      %v2516 = vadd.f32 0.0, %v2515
      %2517 = vmatmul.bf16.gmra.mxu0 %v2494
      %v2518 = vpop.f32.mrf.mxu0
      %v2519 = vadd.f32 0.0, %v2518
      %v2520 = vpop.f32.mrf.mxu0
      %v2521 = vadd.f32 0.0, %v2520
      %2522 = vmatmul.bf16.gmra.mxu0 %v2497
      %v2523 = vpop.f32.mrf.mxu0
      %v2524 = vadd.f32 0.0, %v2523
      %v2525 = vpop.f32.mrf.mxu0
      %v2526 = vadd.f32 0.0, %v2525
      %2527 = vdwg.mxu0
      %v2528 = vadd.f32 %v2449, %v2509
      %v2529 = vadd.f32 %v2450, %v2511
      %v2530 = vadd.f32 %v2451, %v2514
      %v2531 = vadd.f32 %v2452, %v2516
      %v2532 = vadd.f32 %v2453, %v2519
      %v2533 = vadd.f32 %v2454, %v2521
      %v2534 = vadd.f32 %v2455, %v2524
      %v2535 = vadd.f32 %v2456, %v2526
      %v2536 = vld [vmem:[%s4] sm:$0x1]
      %v2538 = vperm.slane %v2536, 0
      %v2540 = vadd.f32 %v2528, %v2538
      %v2541 = vadd.f32 %v2529, %v2538
      %v2542 = vadd.f32 %v2530, %v2538
      %v2543 = vadd.f32 %v2531, %v2538
      %v2544 = vadd.f32 %v2532, %v2538
      %v2545 = vadd.f32 %v2533, %v2538
      %v2546 = vadd.f32 %v2534, %v2538
      %v2547 = vadd.f32 %v2535, %v2538
      %2548 = vst.msk [vmem:[%s224] sm:$0xff] %vm554, %v2540
      %2549 = vst.msk [vmem:[%s224 + $0x8] sm:$0xff] %vm554, %v2541
      %2550 = vst.msk [vmem:[%s224 + $0x10] sm:$0xff] %vm554, %v2542
      %2551 = vst.msk [vmem:[%s224 + $0x18] sm:$0xff] %vm554, %v2543
      %2552 = vst.msk [vmem:[%s224 + $0x20] sm:$0xff] %vm554, %v2544
      %2553 = vst.msk [vmem:[%s224 + $0x28] sm:$0xff] %vm554, %v2545
      %2554 = vst.msk [vmem:[%s224 + $0x30] sm:$0xff] %vm554, %v2546
      %2555 = vst.msk [vmem:[%s224 + $0x38] sm:$0xff] %vm554, %v2547
      %p2556 = scmp.lt.s32.totalorder %s16, 1
      %s2557 = scalar_select %p2556, %s16, 1
      %s2558 = smul.addr %s2557, 8
      %s2559 = smul.addr %s2558, 8
      %s2560 = scalar_lea.vmem %s5, %s2559
      // Predicated region
      $region41: #{tpu_custom_call.1} parent=39 // pred_check
        %p2561 = pneg %p144
      $region42: #{tpu_custom_call.1} parent=39 // pred_check_branch
        %2563 = sbr.rel (%p2561) target = $region44
      $region43: #{tpu_custom_call.1} parent=39 // pred_region
        _
      $region44: #{tpu_custom_call.1} parent=39 // pred_fallthru
        _
    $region40: #{tpu_custom_call.1} parent=5 // pred_fallthru
      _
    %p2564 = scmp.le.s32.totalorder 2, %s11
    // Predicated region
    $region45: #{tpu_custom_call.1} parent=5 // pred_check
      %p2565 = pneg %p2564
    $region46: #{tpu_custom_call.1} parent=5 // pred_check_branch
      %2567 = sbr.rel (%p2565) target = $region48
    $region47: #{tpu_custom_call.1} parent=5 // pred_region
      %s2568 = ssub.s32 %s11, 2
      // Predicated region
      $region49: #{tpu_custom_call.1} parent=47 // pred_check
        %p2569 = pneg %p150
      $region50: #{tpu_custom_call.1} parent=47 // pred_check_branch
        %2571 = sbr.rel (%p2569) target = $region52
      $region51: #{tpu_custom_call.1} parent=47 // pred_region
        %p2572 = scmp.lt.s32.totalorder %s17, 1
        %s2573 = scalar_select %p2572, %s17, 1
        %s2574 = smul.addr %s2573, 8
        %s2575 = smul.addr %s2574, 8
        %s2576 = scalar_lea.vmem %s5, %s2575
      $region52: #{tpu_custom_call.1} parent=47 // pred_fallthru
        _
    $region48: #{tpu_custom_call.1} parent=5 // pred_fallthru
      _
  $region6: #{tpu_custom_call.1} parent=0 // loop_footer
    %s15 = sadd.s32 1, %s11
  $region7: #{tpu_custom_call.1} parent=0 // loop_footer_branch
    %10 = sbr.rel target = $region3
  $region8: #{tpu_custom_call.1} parent=0 // loop_exit
    _

</llo_original>
